<compile_context>
chip_gen: v7x
topology: tpu7x:2x2x1
jax: 0.10.0
libtpu: 0.0.40
codegen_flags: <defaults>
</compile_context>

<pallas_src>
import functools

import jax
import jax.numpy as jnp
from jax.experimental import pallas as pl
from jax.experimental.pallas import tpu as pltpu


def _round_up(x, m):
    return ((x + m - 1) // m) * m


def _sdf_decoder_kernel(
    p_ref,                  # (TM, D)   point row-tile, f32
    w_pos_ref, b_pos_ref,   # (D, H) f32, (1, H) f32    (VPU first layer)
    w0_ref, b0_ref,         # (H, H) f32|bf16, (1, H) f32
    w1_ref, b1_ref,
    w2_ref, b2_ref,
    w3_ref, b3_ref,
    w_c_ref, b_c_ref,       # (1, H) f32, (1, 1) f32    (VPU/XLU head)
    o_ref,                  # (TM, 1)   output tile, f32
    *, mm_dtype,
):
    d_in = p_ref.shape[1]
    x = p_ref[...]                                        # (TM, D) f32

    # --- fc_pos: K=3 would waste a full MXU pass -> 3 VPU rank-1 updates ----
    h = x[:, 0:1] * w_pos_ref[0:1, :]
    for d in range(1, d_in):
        h = h + x[:, d:d + 1] * w_pos_ref[d:d + 1, :]
    h = jnp.maximum(h + b_pos_ref[...], 0.0)              # (TM, H) f32
    # (dropout = identity in eval mode)

    # --- fc_0..fc_3: one full-tile MXU dot per layer (RHS latched once,
    #     tm rows streamed); bf16 operands, f32 accumulation. -----------------
    def hidden(h, w_ref, b_ref):
        y = jnp.dot(h.astype(mm_dtype), w_ref[...],
                    preferred_element_type=jnp.float32)
        return jnp.maximum(y + b_ref[...], 0.0)           # f32 (TM, H)

    h = hidden(h, w0_ref, b0_ref)
    h = hidden(h, w1_ref, b1_ref)
    h = hidden(h, w2_ref, b2_ref)
    h = hidden(h, w3_ref, b3_ref)                         # (TM, H) f32

    # --- fc_c + tanh: VPU multiply + cross-lane reduce. No N=1 MXU pass and
    #     no h.T transpose; exact f32. ----------------------------------------
    c = jnp.sum(h * w_c_ref[...], axis=-1, keepdims=True) + b_c_ref[...]
    o_ref[...] = jnp.tanh(c)                              # (TM, 1)


def sdf_decoder_pointnet(p, params, *, tm_max=2048, use_bf16=True):
    """p: (B, T, D) float32 -> (B, T, 1) float32 (eval-mode forward)."""
    B, T, D = p.shape
    N = B * T
    H = params["w_pos"].shape[1]
    C = params["w_c"].shape[1]
    assert C == 1, "only c_dim == 1 supported"      # TODO(synk): general c_dim
    assert H % 128 == 0, "hidden_dim must be a multiple of 128"

    # Row tile: as big as possible (amortizes per-grid-step overhead) but
    # clamped so there are >= 2 grid steps (keeps both v7x TCs busy) when N
    # allows it.  Weights + activations at tm=2048, H=256 are ~10-15 MiB VMEM,
    # far under the limit on every generation.
    tm = max(128, min(_round_up(tm_max, 128), _round_up(pl.cdiv(N, 2), 128)))
    num_tiles = pl.cdiv(N, tm)
    n_pad = num_tiles * tm

    p_flat = p.reshape(N, D).astype(jnp.float32)
    if n_pad != N:
        p_flat = jnp.pad(p_flat, ((0, n_pad - N), (0, 0)))

    mm_dtype = jnp.bfloat16 if use_bf16 else jnp.float32

    weights = [
        params["w_pos"].astype(jnp.float32),              # (D, H) VPU path
        params["b_pos"].astype(jnp.float32),              # (1, H)
        params["w_0"].astype(mm_dtype), params["b_0"].astype(jnp.float32),
        params["w_1"].astype(mm_dtype), params["b_1"].astype(jnp.float32),
        params["w_2"].astype(mm_dtype), params["b_2"].astype(jnp.float32),
        params["w_3"].astype(mm_dtype), params["b_3"].astype(jnp.float32),
        params["w_c"].T.astype(jnp.float32),              # (1, H) VPU/XLU head
        params["b_c"].reshape(1, 1).astype(jnp.float32),  # (1, 1)
    ]

    def full_spec(arr):
        # Whole array resident in VMEM; constant index_map -> fetched once.
        return pl.BlockSpec(arr.shape, lambda i: (0, 0))

    kernel = functools.partial(_sdf_decoder_kernel, mm_dtype=mm_dtype)

    out = pl.pallas_call(
        kernel,
        out_shape=jax.ShapeDtypeStruct((n_pad, 1), jnp.float32),
        grid_spec=pltpu.PrefetchScalarGridSpec(
            num_scalar_prefetch=0,
            grid=(num_tiles,),
            in_specs=[pl.BlockSpec((tm, D), lambda i: (i, 0))]
                     + [full_spec(w) for w in weights],
            out_specs=pl.BlockSpec((tm, 1), lambda i: (i, 0)),
        ),
        compiler_params=pltpu.CompilerParams(
            dimension_semantics=("parallel",),
            vmem_limit_bytes=48 * 1024 * 1024),
    )(p_flat, *weights)

    return out[:N].reshape(B, T, C)


def init_params(key, dim=3, hidden_dim=256, c_dim=1):
    """PyTorch-nn.Linear-style init. Weights stored (in_features, out_features)."""
    shapes = [
        ("w_pos", (dim, hidden_dim)), ("b_pos", (1, hidden_dim)),
        ("w_0", (hidden_dim, hidden_dim)), ("b_0", (1, hidden_dim)),
        ("w_1", (hidden_dim, hidden_dim)), ("b_1", (1, hidden_dim)),
        ("w_2", (hidden_dim, hidden_dim)), ("b_2", (1, hidden_dim)),
        ("w_3", (hidden_dim, hidden_dim)), ("b_3", (1, hidden_dim)),
        ("w_c", (hidden_dim, c_dim)), ("b_c", (1, c_dim)),
    ]
    params = {}
    keys = jax.random.split(key, len(shapes))
    for (name, shape), k in zip(shapes, keys):
        if name.startswith("w"):
            bound = 1.0 / (shape[0] ** 0.5)
        else:
            w_shape = dict(shapes)["w" + name[1:]]
            bound = 1.0 / (w_shape[0] ** 0.5)
        params[name] = jax.random.uniform(
            k, shape, dtype=jnp.float32, minval=-bound, maxval=bound)
    return params


def reference_forward(p, params):
    """Plain-JAX reference (eval-mode dropout = identity)."""
    net = jax.nn.relu(p @ params["w_pos"] + params["b_pos"])
    net = jax.nn.relu(net @ params["w_0"] + params["b_0"])
    net = jax.nn.relu(net @ params["w_1"] + params["b_1"])
    net = jax.nn.relu(net @ params["w_2"] + params["b_2"])
    net = jax.nn.relu(net @ params["w_3"] + params["b_3"])
    c = net @ params["w_c"] + params["b_c"]
    return jnp.tanh(c)


if __name__ == "__main__":
    key = jax.random.PRNGKey(0)
    k_param, k_input = jax.random.split(key)

    B, T, D = 2, 512, 3          # 1024 points -> tm=512, 2 grid steps
    HIDDEN = 256                 # module default hidden_dim
    C_DIM = 1

    params = init_params(k_param, dim=D, hidden_dim=HIDDEN, c_dim=C_DIM)
    p = jax.random.normal(k_input, (B, T, D), dtype=jnp.float32)

    ref = reference_forward(p, params)

    out_f32 = jax.block_until_ready(
        sdf_decoder_pointnet(p, params, use_bf16=False))
    out_bf16 = jax.block_until_ready(
        sdf_decoder_pointnet(p, params, use_bf16=True))

    assert out_f32.shape == (B, T, C_DIM), out_f32.shape
    assert out_bf16.shape == (B, T, C_DIM), out_bf16.shape

    # The plain-JAX reference also runs its matmuls as default-precision bf16
    # MXU passes (only the first layer / head differ: kernel does them exactly
    # on the VPU), so bf16-scale tolerances apply; structural bugs would be
    # O(0.1-1).
    assert jnp.allclose(out_f32, ref, atol=3e-2), float(jnp.max(jnp.abs(out_f32 - ref)))
    assert jnp.allclose(out_bf16, ref, atol=5e-2), float(jnp.max(jnp.abs(out_bf16 - ref)))
    assert jnp.allclose(out_f32, out_bf16, atol=5e-2), \
        float(jnp.max(jnp.abs(out_f32 - out_bf16)))

    # Ragged point count (exercises the pl.cdiv grid + row-padding path).
    T_r = 500
    out_r = jax.block_until_ready(
        sdf_decoder_pointnet(p[:, :T_r, :], params, use_bf16=False))
    assert out_r.shape == (B, T_r, C_DIM), out_r.shape
    assert jnp.allclose(out_r, ref[:, :T_r, :], atol=3e-2), \
        float(jnp.max(jnp.abs(out_r - ref[:, :T_r, :])))

    print("KERNEL_OK")
</pallas_src>

<mosaic_0001>
module attributes {stable_mosaic.version = 11 : i64} {
  func.func @_sdf_decoder_kernel(%arg0: i32, %arg1: memref<512x3xf32, #tpu.memory_space<vmem>>, %arg2: memref<3x256xf32, #tpu.memory_space<vmem>>, %arg3: memref<1x256xf32, #tpu.memory_space<vmem>>, %arg4: memref<256x256xf32, #tpu.memory_space<vmem>>, %arg5: memref<1x256xf32, #tpu.memory_space<vmem>>, %arg6: memref<256x256xf32, #tpu.memory_space<vmem>>, %arg7: memref<1x256xf32, #tpu.memory_space<vmem>>, %arg8: memref<256x256xf32, #tpu.memory_space<vmem>>, %arg9: memref<1x256xf32, #tpu.memory_space<vmem>>, %arg10: memref<256x256xf32, #tpu.memory_space<vmem>>, %arg11: memref<1x256xf32, #tpu.memory_space<vmem>>, %arg12: memref<1x256xf32, #tpu.memory_space<vmem>>, %arg13: memref<1x1xf32, #tpu.memory_space<vmem>>, %arg14: memref<512x1xf32, #tpu.memory_space<vmem>>) attributes {dimension_semantics = [#tpu.dimension_semantics<parallel>], iteration_bounds = array<i64: 2>, scalar_prefetch = 0 : i64, scratch_operands = 0 : i64, tpu.core_type = #tpu.core_type<tc>, window_params = [{transform_indices = @transform_0, window_bounds = array<i64: 512, 3>}, {pipeline_mode = #tpu.pipeline_mode<synchronous>, transform_indices = @transform_1, window_bounds = array<i64: 3, 256>}, {pipeline_mode = #tpu.pipeline_mode<synchronous>, transform_indices = @transform_2, window_bounds = array<i64: 1, 256>}, {pipeline_mode = #tpu.pipeline_mode<synchronous>, transform_indices = @transform_3, window_bounds = array<i64: 256, 256>}, {pipeline_mode = #tpu.pipeline_mode<synchronous>, transform_indices = @transform_4, window_bounds = array<i64: 1, 256>}, {pipeline_mode = #tpu.pipeline_mode<synchronous>, transform_indices = @transform_5, window_bounds = array<i64: 256, 256>}, {pipeline_mode = #tpu.pipeline_mode<synchronous>, transform_indices = @transform_6, window_bounds = array<i64: 1, 256>}, {pipeline_mode = #tpu.pipeline_mode<synchronous>, transform_indices = @transform_7, window_bounds = array<i64: 256, 256>}, {pipeline_mode = #tpu.pipeline_mode<synchronous>, transform_indices = @transform_8, window_bounds = array<i64: 1, 256>}, {pipeline_mode = #tpu.pipeline_mode<synchronous>, transform_indices = @transform_9, window_bounds = array<i64: 256, 256>}, {pipeline_mode = #tpu.pipeline_mode<synchronous>, transform_indices = @transform_10, window_bounds = array<i64: 1, 256>}, {pipeline_mode = #tpu.pipeline_mode<synchronous>, transform_indices = @transform_11, window_bounds = array<i64: 1, 256>}, {pipeline_mode = #tpu.pipeline_mode<synchronous>, transform_indices = @transform_12, window_bounds = array<i64: 1, 1>}, {transform_indices = @transform_13, window_bounds = array<i64: 512, 1>}]} {
    %c0 = arith.constant 0 : index
    %c0_0 = arith.constant 0 : index
    %0 = vector.load %arg1[%c0, %c0_0] : memref<512x3xf32, #tpu.memory_space<vmem>>, vector<512x3xf32>
    %1 = vector.extract_strided_slice %0 {offsets = [0, 0], sizes = [512, 1], strides = [1, 1]} : vector<512x3xf32> to vector<512x1xf32>
    %c0_1 = arith.constant 0 : index
    %c0_2 = arith.constant 0 : index
    %2 = vector.load %arg2[%c0_1, %c0_2] : memref<3x256xf32, #tpu.memory_space<vmem>>, vector<1x256xf32>
    %3 = vector.broadcast %1 : vector<512x1xf32> to vector<512x256xf32>
    %4 = vector.broadcast %2 : vector<1x256xf32> to vector<512x256xf32>
    %5 = arith.mulf %3, %4 : vector<512x256xf32>
    %6 = vector.extract_strided_slice %0 {offsets = [0, 1], sizes = [512, 1], strides = [1, 1]} : vector<512x3xf32> to vector<512x1xf32>
    %c1 = arith.constant 1 : index
    %c0_3 = arith.constant 0 : index
    %7 = vector.load %arg2[%c1, %c0_3] : memref<3x256xf32, #tpu.memory_space<vmem>>, vector<1x256xf32>
    %8 = vector.broadcast %6 : vector<512x1xf32> to vector<512x256xf32>
    %9 = vector.broadcast %7 : vector<1x256xf32> to vector<512x256xf32>
    %10 = arith.mulf %8, %9 : vector<512x256xf32>
    %11 = arith.addf %5, %10 : vector<512x256xf32>
    %12 = vector.extract_strided_slice %0 {offsets = [0, 2], sizes = [512, 1], strides = [1, 1]} : vector<512x3xf32> to vector<512x1xf32>
    %c2 = arith.constant 2 : index
    %c0_4 = arith.constant 0 : index
    %13 = vector.load %arg2[%c2, %c0_4] : memref<3x256xf32, #tpu.memory_space<vmem>>, vector<1x256xf32>
    %14 = vector.broadcast %12 : vector<512x1xf32> to vector<512x256xf32>
    %15 = vector.broadcast %13 : vector<1x256xf32> to vector<512x256xf32>
    %16 = arith.mulf %14, %15 : vector<512x256xf32>
    %17 = arith.addf %11, %16 : vector<512x256xf32>
    %c0_5 = arith.constant 0 : index
    %c0_6 = arith.constant 0 : index
    %18 = vector.load %arg3[%c0_5, %c0_6] : memref<1x256xf32, #tpu.memory_space<vmem>>, vector<1x256xf32>
    %19 = vector.broadcast %18 : vector<1x256xf32> to vector<512x256xf32>
    %20 = arith.addf %17, %19 : vector<512x256xf32>
    %cst = arith.constant 0.000000e+00 : f32
    %21 = vector.broadcast %cst : f32 to vector<512x256xf32>
    %22 = arith.maximumf %20, %21 : vector<512x256xf32>
    %c0_7 = arith.constant 0 : index
    %c0_8 = arith.constant 0 : index
    %23 = vector.load %arg4[%c0_7, %c0_8] : memref<256x256xf32, #tpu.memory_space<vmem>>, vector<256x256xf32>
    %cst_9 = arith.constant dense<0.000000e+00> : vector<512x256xf32>
    %24 = tpu.matmul %22, %23, %cst_9 {dimension_numbers = #tpu.dot_dimension_numbers<[1], [0], [0], [1], [0, 0, 1, 1], [], []>} : vector<512x256xf32>, vector<256x256xf32>, vector<512x256xf32> -> vector<512x256xf32>
    %c0_10 = arith.constant 0 : index
    %c0_11 = arith.constant 0 : index
    %25 = vector.load %arg5[%c0_10, %c0_11] : memref<1x256xf32, #tpu.memory_space<vmem>>, vector<1x256xf32>
    %26 = vector.broadcast %25 : vector<1x256xf32> to vector<512x256xf32>
    %27 = arith.addf %24, %26 : vector<512x256xf32>
    %cst_12 = arith.constant 0.000000e+00 : f32
    %28 = vector.broadcast %cst_12 : f32 to vector<512x256xf32>
    %29 = arith.maximumf %27, %28 : vector<512x256xf32>
    %c0_13 = arith.constant 0 : index
    %c0_14 = arith.constant 0 : index
    %30 = vector.load %arg6[%c0_13, %c0_14] : memref<256x256xf32, #tpu.memory_space<vmem>>, vector<256x256xf32>
    %cst_15 = arith.constant dense<0.000000e+00> : vector<512x256xf32>
    %31 = tpu.matmul %29, %30, %cst_15 {dimension_numbers = #tpu.dot_dimension_numbers<[1], [0], [0], [1], [0, 0, 1, 1], [], []>} : vector<512x256xf32>, vector<256x256xf32>, vector<512x256xf32> -> vector<512x256xf32>
    %c0_16 = arith.constant 0 : index
    %c0_17 = arith.constant 0 : index
    %32 = vector.load %arg7[%c0_16, %c0_17] : memref<1x256xf32, #tpu.memory_space<vmem>>, vector<1x256xf32>
    %33 = vector.broadcast %32 : vector<1x256xf32> to vector<512x256xf32>
    %34 = arith.addf %31, %33 : vector<512x256xf32>
    %cst_18 = arith.constant 0.000000e+00 : f32
    %35 = vector.broadcast %cst_18 : f32 to vector<512x256xf32>
    %36 = arith.maximumf %34, %35 : vector<512x256xf32>
    %c0_19 = arith.constant 0 : index
    %c0_20 = arith.constant 0 : index
    %37 = vector.load %arg8[%c0_19, %c0_20] : memref<256x256xf32, #tpu.memory_space<vmem>>, vector<256x256xf32>
    %cst_21 = arith.constant dense<0.000000e+00> : vector<512x256xf32>
    %38 = tpu.matmul %36, %37, %cst_21 {dimension_numbers = #tpu.dot_dimension_numbers<[1], [0], [0], [1], [0, 0, 1, 1], [], []>} : vector<512x256xf32>, vector<256x256xf32>, vector<512x256xf32> -> vector<512x256xf32>
    %c0_22 = arith.constant 0 : index
    %c0_23 = arith.constant 0 : index
    %39 = vector.load %arg9[%c0_22, %c0_23] : memref<1x256xf32, #tpu.memory_space<vmem>>, vector<1x256xf32>
    %40 = vector.broadcast %39 : vector<1x256xf32> to vector<512x256xf32>
    %41 = arith.addf %38, %40 : vector<512x256xf32>
    %cst_24 = arith.constant 0.000000e+00 : f32
    %42 = vector.broadcast %cst_24 : f32 to vector<512x256xf32>
    %43 = arith.maximumf %41, %42 : vector<512x256xf32>
    %c0_25 = arith.constant 0 : index
    %c0_26 = arith.constant 0 : index
    %44 = vector.load %arg10[%c0_25, %c0_26] : memref<256x256xf32, #tpu.memory_space<vmem>>, vector<256x256xf32>
    %cst_27 = arith.constant dense<0.000000e+00> : vector<512x256xf32>
    %45 = tpu.matmul %43, %44, %cst_27 {dimension_numbers = #tpu.dot_dimension_numbers<[1], [0], [0], [1], [0, 0, 1, 1], [], []>} : vector<512x256xf32>, vector<256x256xf32>, vector<512x256xf32> -> vector<512x256xf32>
    %c0_28 = arith.constant 0 : index
    %c0_29 = arith.constant 0 : index
    %46 = vector.load %arg11[%c0_28, %c0_29] : memref<1x256xf32, #tpu.memory_space<vmem>>, vector<1x256xf32>
    %47 = vector.broadcast %46 : vector<1x256xf32> to vector<512x256xf32>
    %48 = arith.addf %45, %47 : vector<512x256xf32>
    %cst_30 = arith.constant 0.000000e+00 : f32
    %49 = vector.broadcast %cst_30 : f32 to vector<512x256xf32>
    %50 = arith.maximumf %48, %49 : vector<512x256xf32>
    %c0_31 = arith.constant 0 : index
    %c0_32 = arith.constant 0 : index
    %51 = vector.load %arg12[%c0_31, %c0_32] : memref<1x256xf32, #tpu.memory_space<vmem>>, vector<1x256xf32>
    %52 = vector.broadcast %51 : vector<1x256xf32> to vector<512x256xf32>
    %53 = arith.mulf %50, %52 : vector<512x256xf32>
    %cst_33 = arith.constant dense<0.000000e+00> : vector<512xf32>
    %54 = vector.multi_reduction <add>, %53, %cst_33 [1] : vector<512x256xf32> to vector<512xf32>
    %55 = vector.shape_cast %54 : vector<512xf32> to vector<512x1xf32>
    %c0_34 = arith.constant 0 : index
    %c0_35 = arith.constant 0 : index
    %56 = vector.load %arg13[%c0_34, %c0_35] : memref<1x1xf32, #tpu.memory_space<vmem>>, vector<1x1xf32>
    %57 = vector.broadcast %56 : vector<1x1xf32> to vector<512x1xf32>
    %58 = arith.addf %55, %57 : vector<512x1xf32>
    %59 = math.tanh %58 : vector<512x1xf32>
    %c0_36 = arith.constant 0 : index
    %c0_37 = arith.constant 0 : index
    %60 = vector.load %arg14[%c0_36, %c0_37] : memref<512x1xf32, #tpu.memory_space<vmem>>, vector<512x1xf32>
    tpu.vector_store %arg14[%c0_36, %c0_37], %59 {strides = array<i32>} : memref<512x1xf32, #tpu.memory_space<vmem>>, vector<512x1xf32>,
    return
  }
  func.func @transform_0(%arg0: i32) -> (i32, i32) {
    %c0_i32 = arith.constant 0 : i32
    %c0_i32_0 = arith.constant 0 : i32
    return %arg0, %c0_i32 : i32, i32
  }
  func.func @transform_1(%arg0: i32) -> (i32, i32) {
    %c0_i32 = arith.constant 0 : i32
    %c0_i32_0 = arith.constant 0 : i32
    %c0_i32_1 = arith.constant 0 : i32
    return %c0_i32, %c0_i32_0 : i32, i32
  }
  func.func @transform_2(%arg0: i32) -> (i32, i32) {
    %c0_i32 = arith.constant 0 : i32
    %c0_i32_0 = arith.constant 0 : i32
    %c0_i32_1 = arith.constant 0 : i32
    return %c0_i32, %c0_i32_0 : i32, i32
  }
  func.func @transform_3(%arg0: i32) -> (i32, i32) {
    %c0_i32 = arith.constant 0 : i32
    %c0_i32_0 = arith.constant 0 : i32
    %c0_i32_1 = arith.constant 0 : i32
    return %c0_i32, %c0_i32_0 : i32, i32
  }
  func.func @transform_4(%arg0: i32) -> (i32, i32) {
    %c0_i32 = arith.constant 0 : i32
    %c0_i32_0 = arith.constant 0 : i32
    %c0_i32_1 = arith.constant 0 : i32
    return %c0_i32, %c0_i32_0 : i32, i32
  }
  func.func @transform_5(%arg0: i32) -> (i32, i32) {
    %c0_i32 = arith.constant 0 : i32
    %c0_i32_0 = arith.constant 0 : i32
    %c0_i32_1 = arith.constant 0 : i32
    return %c0_i32, %c0_i32_0 : i32, i32
  }
  func.func @transform_6(%arg0: i32) -> (i32, i32) {
    %c0_i32 = arith.constant 0 : i32
    %c0_i32_0 = arith.constant 0 : i32
    %c0_i32_1 = arith.constant 0 : i32
    return %c0_i32, %c0_i32_0 : i32, i32
  }
  func.func @transform_7(%arg0: i32) -> (i32, i32) {
    %c0_i32 = arith.constant 0 : i32
    %c0_i32_0 = arith.constant 0 : i32
    %c0_i32_1 = arith.constant 0 : i32
    return %c0_i32, %c0_i32_0 : i32, i32
  }
  func.func @transform_8(%arg0: i32) -> (i32, i32) {
    %c0_i32 = arith.constant 0 : i32
    %c0_i32_0 = arith.constant 0 : i32
    %c0_i32_1 = arith.constant 0 : i32
    return %c0_i32, %c0_i32_0 : i32, i32
  }
  func.func @transform_9(%arg0: i32) -> (i32, i32) {
    %c0_i32 = arith.constant 0 : i32
    %c0_i32_0 = arith.constant 0 : i32
    %c0_i32_1 = arith.constant 0 : i32
    return %c0_i32, %c0_i32_0 : i32, i32
  }
  func.func @transform_10(%arg0: i32) -> (i32, i32) {
    %c0_i32 = arith.constant 0 : i32
    %c0_i32_0 = arith.constant 0 : i32
    %c0_i32_1 = arith.constant 0 : i32
    return %c0_i32, %c0_i32_0 : i32, i32
  }
  func.func @transform_11(%arg0: i32) -> (i32, i32) {
    %c0_i32 = arith.constant 0 : i32
    %c0_i32_0 = arith.constant 0 : i32
    %c0_i32_1 = arith.constant 0 : i32
    return %c0_i32, %c0_i32_0 : i32, i32
  }
  func.func @transform_12(%arg0: i32) -> (i32, i32) {
    %c0_i32 = arith.constant 0 : i32
    %c0_i32_0 = arith.constant 0 : i32
    %c0_i32_1 = arith.constant 0 : i32
    return %c0_i32, %c0_i32_0 : i32, i32
  }
  func.func @transform_13(%arg0: i32) -> (i32, i32) {
    %c0_i32 = arith.constant 0 : i32
    %c0_i32_0 = arith.constant 0 : i32
    return %arg0, %c0_i32 : i32, i32
  }
}

</mosaic_0001>

<llo_original>
// kernel: tpu_custom_call.1
$region0: #{tpu_custom_call.1}
  #allocation0 [shape = 'u32[]', space=smem, size = 0x4, offset = 0x4, fixed_abs, tag = 'smem constant byte address 0x4 - core index']
  #allocation1 [shape = 'u32[144,128]{1,0:T(1,128)}', space=vmem, size = 0x12000, scoped, tag = 'internal scratch']
  #allocation2 [shape = 'f32[1,1]{1,0:T(1,128)S(1)}', space=vmem, size = 0x200, scoped, tag = 'scoped memory for tpu_custom_call.1']
  %s0 = inlined_call_operand.vmem [shape: f32[1024,3], index: 0, kind: input, shape index: {}]
  %s1 = inlined_call_operand.vmem [shape: f32[3,256], index: 1, kind: input, shape index: {}]
  %s2 = inlined_call_operand.vmem [shape: f32[1,256], index: 2, kind: input, shape index: {}]
  %s3 = inlined_call_operand.vmem [shape: f32[256,256], index: 3, kind: input, shape index: {}]
  %s4 = inlined_call_operand.vmem [shape: f32[1,256], index: 4, kind: input, shape index: {}]
  %s5 = inlined_call_operand.vmem [shape: f32[256,256], index: 5, kind: input, shape index: {}]
  %s6 = inlined_call_operand.vmem [shape: f32[1,256], index: 6, kind: input, shape index: {}]
  %s7 = inlined_call_operand.hbm [shape: f32[256,256], index: 7, kind: input, shape index: {}]
  %s8 = inlined_call_operand.vmem [shape: f32[1,256], index: 8, kind: input, shape index: {}]
  %s9 = inlined_call_operand.hbm [shape: f32[256,256], index: 9, kind: input, shape index: {}]
  %s10 = inlined_call_operand.vmem [shape: f32[1,256], index: 10, kind: input, shape index: {}]
  %s11 = inlined_call_operand.vmem [shape: f32[1,256], index: 11, kind: input, shape index: {}]
  %s12 = inlined_call_operand.<no memory space> [shape: f32[1,1], index: 12, kind: input, shape index: {}]
  %s13 = inlined_call_operand.vmem [shape: f32[1024,1], index: 13, kind: output, shape index: {}]
  %s14 = sld [smem:[#allocation0]]
  $region93: #{tpu_custom_call.1} parent=0
    _
  %s16 = ssub.s32 1, %s14
  %s17 = scalar_select 0, %s16, %s14
  %v18 = vstv %s12
  %19 = vst [vmem:[#allocation2] sm:$0x1] %v18
  $region1: #{tpu_custom_call.1} parent=0
    #allocation3 [shape = 'u8[262144]{0}', space=vmem, size = 0x40000, scoped, tag = 'input window, operand 7, single buffered']
    #allocation4 [shape = 's32[2]{0}', space=sflag, size = 0x8, scoped, tag = 'scoped memory for tpu_custom_call.1']
    #allocation5 [shape = 'u8[262144]{0}', space=vmem, size = 0x40000, scoped, tag = 'input window, operand 9, single buffered']
    #allocation6 [shape = 's32[1]{0}', space=sflag, size = 0x4, scoped, tag = 'scoped memory for tpu_custom_call.1']
    %20 = vsyncpa [#allocation4], 0
    %21 = vsyncpa [#allocation6], 0
    loop: start=0, step=1, limit=4
    $region2: #{tpu_custom_call.1} parent=1 // loop_pre_header
      _
    $region3: #{tpu_custom_call.1} parent=1 // loop_header
      %s23 = sphi 0, %s27
      %p24 = scmp.ge.s32.totalorder %s23, 4
      %s33 = sphi 0, %s35
      %s36 = sphi 0, %s33
      %s37 = sphi 0, %s36
      %s53 = sphi 0, %s37
      %s57 = sphi 0, %s57
      %s59 = sphi 0, %s57
      %s60 = sphi 0, %s59
      %s74 = sphi 0, %s60
      %s78 = sphi 0, %s78
      %s80 = sphi 0, %s78
      %s81 = sphi 0, %s80
      %s95 = sphi 0, %s81
      %s99 = sphi 0, %s99
      %s101 = sphi 0, %s99
      %s102 = sphi 0, %s101
      %s116 = sphi 0, %s102
      %s120 = sphi 0, %s120
      %s122 = sphi 0, %s120
      %s123 = sphi 0, %s122
      %s137 = sphi 0, %s123
      %s141 = sphi 0, %s141
      %s143 = sphi 0, %s141
      %s144 = sphi 0, %s143
      %s158 = sphi 0, %s144
      %s162 = sphi 0, %s162
      %s164 = sphi 0, %s162
      %s165 = sphi 0, %s164
      %s179 = sphi 0, %s165
      %s183 = sphi 0, %s183
      %s185 = sphi 0, %s183
      %s186 = sphi 0, %s185
      %s200 = sphi 0, %s186
      %s204 = sphi 0, %s204
      %s206 = sphi 0, %s204
      %s207 = sphi 0, %s206
      %s221 = sphi 0, %s207
      %s225 = sphi 0, %s225
      %s227 = sphi 0, %s225
      %s228 = sphi 0, %s227
      %s242 = sphi 0, %s228
      %s246 = sphi 0, %s246
      %s248 = sphi 0, %s246
      %s249 = sphi 0, %s248
      %s263 = sphi 0, %s249
      %s267 = sphi 0, %s267
      %s269 = sphi 0, %s267
      %s270 = sphi 0, %s269
      %s284 = sphi 0, %s270
      %s288 = sphi 0, %s288
      %s290 = sphi 0, %s288
      %s291 = sphi 0, %s290
      %s305 = sphi 0, %s291
      %s311 = sphi 0, %s313
      %s314 = sphi 0, %s311
      %s315 = sphi 0, %s314
      %s331 = sphi 0, %s315
    $region4: #{tpu_custom_call.1} parent=1 // loop_header_branch
      %26 = sbr.rel (%p24) target = $region8
    $region5: #{tpu_custom_call.1} parent=1 // loop_body
      %s28 = ssub.s32 %s23, 1
      %s29 = ssub.s32 %s23, 2
      %s30 = sadd.s32 %s23, 1
      %s31 = ssub.s32 %s23, %s30
      %p32 = scmp.eq.s32.totalorder %s31, 0
      %s34 = sadd.s32 %s33, 1
      %s35 = scalar_select %p32, %s33, %s34
      %p38 = pneg %p32
      %p39 = scmp.eq.s32.totalorder %s23, 1
      %p40 = por %p38, %p39
      %p41 = scmp.ne.s32.totalorder %s33, %s36
      %p42 = scmp.eq.s32.totalorder %s23, 0
      %p43 = por %p41, %p42
      %p44 = scmp.ne.s32.totalorder %s33, %s36
      %p45 = scmp.eq.s32.totalorder %s28, 1
      %p46 = por %p44, %p45
      %p47 = scmp.ne.s32.totalorder %s36, %s37
      %p48 = scmp.eq.s32.totalorder %s28, 0
      %p49 = por %p47, %p48
      %p50 = scmp.ne.s32.totalorder %s36, %s37
      %p51 = scmp.eq.s32.totalorder %s29, 1
      %p52 = por %p50, %p51
      %p54 = scmp.ne.s32.totalorder %s37, %s53
      %p55 = scmp.eq.s32.totalorder %s29, 0
      %p56 = por %p54, %p55
      %s58 = sadd.s32 %s57, 1
      %p61 = scmp.eq.s32.totalorder %s23, 1
      %p62 = scmp.ne.s32.totalorder %s57, %s59
      %p63 = scmp.eq.s32.totalorder %s23, 0
      %p64 = por %p62, %p63
      %p65 = scmp.ne.s32.totalorder %s57, %s59
      %p66 = scmp.eq.s32.totalorder %s28, 1
      %p67 = por %p65, %p66
      %p68 = scmp.ne.s32.totalorder %s59, %s60
      %p69 = scmp.eq.s32.totalorder %s28, 0
      %p70 = por %p68, %p69
      %p71 = scmp.ne.s32.totalorder %s59, %s60
      %p72 = scmp.eq.s32.totalorder %s29, 1
      %p73 = por %p71, %p72
      %p75 = scmp.ne.s32.totalorder %s60, %s74
      %p76 = scmp.eq.s32.totalorder %s29, 0
      %p77 = por %p75, %p76
      %s79 = sadd.s32 %s78, 1
      %p82 = scmp.eq.s32.totalorder %s23, 1
      %p83 = scmp.ne.s32.totalorder %s78, %s80
      %p84 = scmp.eq.s32.totalorder %s23, 0
      %p85 = por %p83, %p84
      %p86 = scmp.ne.s32.totalorder %s78, %s80
      %p87 = scmp.eq.s32.totalorder %s28, 1
      %p88 = por %p86, %p87
      %p89 = scmp.ne.s32.totalorder %s80, %s81
      %p90 = scmp.eq.s32.totalorder %s28, 0
      %p91 = por %p89, %p90
      %p92 = scmp.ne.s32.totalorder %s80, %s81
      %p93 = scmp.eq.s32.totalorder %s29, 1
      %p94 = por %p92, %p93
      %p96 = scmp.ne.s32.totalorder %s81, %s95
      %p97 = scmp.eq.s32.totalorder %s29, 0
      %p98 = por %p96, %p97
      %s100 = sadd.s32 %s99, 1
      %p103 = scmp.eq.s32.totalorder %s23, 1
      %p104 = scmp.ne.s32.totalorder %s99, %s101
      %p105 = scmp.eq.s32.totalorder %s23, 0
      %p106 = por %p104, %p105
      %p107 = scmp.ne.s32.totalorder %s99, %s101
      %p108 = scmp.eq.s32.totalorder %s28, 1
      %p109 = por %p107, %p108
      %p110 = scmp.ne.s32.totalorder %s101, %s102
      %p111 = scmp.eq.s32.totalorder %s28, 0
      %p112 = por %p110, %p111
      %p113 = scmp.ne.s32.totalorder %s101, %s102
      %p114 = scmp.eq.s32.totalorder %s29, 1
      %p115 = por %p113, %p114
      %p117 = scmp.ne.s32.totalorder %s102, %s116
      %p118 = scmp.eq.s32.totalorder %s29, 0
      %p119 = por %p117, %p118
      %s121 = sadd.s32 %s120, 1
      %p124 = scmp.eq.s32.totalorder %s23, 1
      %p125 = scmp.ne.s32.totalorder %s120, %s122
      %p126 = scmp.eq.s32.totalorder %s23, 0
      %p127 = por %p125, %p126
      %p128 = scmp.ne.s32.totalorder %s120, %s122
      %p129 = scmp.eq.s32.totalorder %s28, 1
      %p130 = por %p128, %p129
      %p131 = scmp.ne.s32.totalorder %s122, %s123
      %p132 = scmp.eq.s32.totalorder %s28, 0
      %p133 = por %p131, %p132
      %p134 = scmp.ne.s32.totalorder %s122, %s123
      %p135 = scmp.eq.s32.totalorder %s29, 1
      %p136 = por %p134, %p135
      %p138 = scmp.ne.s32.totalorder %s123, %s137
      %p139 = scmp.eq.s32.totalorder %s29, 0
      %p140 = por %p138, %p139
      %s142 = sadd.s32 %s141, 1
      %p145 = scmp.eq.s32.totalorder %s23, 1
      %p146 = scmp.ne.s32.totalorder %s141, %s143
      %p147 = scmp.eq.s32.totalorder %s23, 0
      %p148 = por %p146, %p147
      %p149 = scmp.ne.s32.totalorder %s141, %s143
      %p150 = scmp.eq.s32.totalorder %s28, 1
      %p151 = por %p149, %p150
      %p152 = scmp.ne.s32.totalorder %s143, %s144
      %p153 = scmp.eq.s32.totalorder %s28, 0
      %p154 = por %p152, %p153
      %p155 = scmp.ne.s32.totalorder %s143, %s144
      %p156 = scmp.eq.s32.totalorder %s29, 1
      %p157 = por %p155, %p156
      %p159 = scmp.ne.s32.totalorder %s144, %s158
      %p160 = scmp.eq.s32.totalorder %s29, 0
      %p161 = por %p159, %p160
      %s163 = sadd.s32 %s162, 1
      %p166 = scmp.eq.s32.totalorder %s23, 1
      %p167 = scmp.ne.s32.totalorder %s162, %s164
      %p168 = scmp.eq.s32.totalorder %s23, 0
      %p169 = por %p167, %p168
      %p170 = scmp.ne.s32.totalorder %s162, %s164
      %p171 = scmp.eq.s32.totalorder %s28, 1
      %p172 = por %p170, %p171
      %p173 = scmp.ne.s32.totalorder %s164, %s165
      %p174 = scmp.eq.s32.totalorder %s28, 0
      %p175 = por %p173, %p174
      %p176 = scmp.ne.s32.totalorder %s164, %s165
      %p177 = scmp.eq.s32.totalorder %s29, 1
      %p178 = por %p176, %p177
      %p180 = scmp.ne.s32.totalorder %s165, %s179
      %p181 = scmp.eq.s32.totalorder %s29, 0
      %p182 = por %p180, %p181
      %s184 = sadd.s32 %s183, 1
      %p187 = scmp.eq.s32.totalorder %s23, 1
      %p188 = scmp.ne.s32.totalorder %s183, %s185
      %p189 = scmp.eq.s32.totalorder %s23, 0
      %p190 = por %p188, %p189
      %p191 = scmp.ne.s32.totalorder %s183, %s185
      %p192 = scmp.eq.s32.totalorder %s28, 1
      %p193 = por %p191, %p192
      %p194 = scmp.ne.s32.totalorder %s185, %s186
      %p195 = scmp.eq.s32.totalorder %s28, 0
      %p196 = por %p194, %p195
      %p197 = scmp.ne.s32.totalorder %s185, %s186
      %p198 = scmp.eq.s32.totalorder %s29, 1
      %p199 = por %p197, %p198
      %p201 = scmp.ne.s32.totalorder %s186, %s200
      %p202 = scmp.eq.s32.totalorder %s29, 0
      %p203 = por %p201, %p202
      %s205 = sadd.s32 %s204, 1
      %p208 = scmp.eq.s32.totalorder %s23, 1
      %p209 = scmp.ne.s32.totalorder %s204, %s206
      %p210 = scmp.eq.s32.totalorder %s23, 0
      %p211 = por %p209, %p210
      %p212 = scmp.ne.s32.totalorder %s204, %s206
      %p213 = scmp.eq.s32.totalorder %s28, 1
      %p214 = por %p212, %p213
      %p215 = scmp.ne.s32.totalorder %s206, %s207
      %p216 = scmp.eq.s32.totalorder %s28, 0
      %p217 = por %p215, %p216
      %p218 = scmp.ne.s32.totalorder %s206, %s207
      %p219 = scmp.eq.s32.totalorder %s29, 1
      %p220 = por %p218, %p219
      %p222 = scmp.ne.s32.totalorder %s207, %s221
      %p223 = scmp.eq.s32.totalorder %s29, 0
      %p224 = por %p222, %p223
      %s226 = sadd.s32 %s225, 1
      %p229 = scmp.eq.s32.totalorder %s23, 1
      %p230 = scmp.ne.s32.totalorder %s225, %s227
      %p231 = scmp.eq.s32.totalorder %s23, 0
      %p232 = por %p230, %p231
      %p233 = scmp.ne.s32.totalorder %s225, %s227
      %p234 = scmp.eq.s32.totalorder %s28, 1
      %p235 = por %p233, %p234
      %p236 = scmp.ne.s32.totalorder %s227, %s228
      %p237 = scmp.eq.s32.totalorder %s28, 0
      %p238 = por %p236, %p237
      %p239 = scmp.ne.s32.totalorder %s227, %s228
      %p240 = scmp.eq.s32.totalorder %s29, 1
      %p241 = por %p239, %p240
      %p243 = scmp.ne.s32.totalorder %s228, %s242
      %p244 = scmp.eq.s32.totalorder %s29, 0
      %p245 = por %p243, %p244
      %s247 = sadd.s32 %s246, 1
      %p250 = scmp.eq.s32.totalorder %s23, 1
      %p251 = scmp.ne.s32.totalorder %s246, %s248
      %p252 = scmp.eq.s32.totalorder %s23, 0
      %p253 = por %p251, %p252
      %p254 = scmp.ne.s32.totalorder %s246, %s248
      %p255 = scmp.eq.s32.totalorder %s28, 1
      %p256 = por %p254, %p255
      %p257 = scmp.ne.s32.totalorder %s248, %s249
      %p258 = scmp.eq.s32.totalorder %s28, 0
      %p259 = por %p257, %p258
      %p260 = scmp.ne.s32.totalorder %s248, %s249
      %p261 = scmp.eq.s32.totalorder %s29, 1
      %p262 = por %p260, %p261
      %p264 = scmp.ne.s32.totalorder %s249, %s263
      %p265 = scmp.eq.s32.totalorder %s29, 0
      %p266 = por %p264, %p265
      %s268 = sadd.s32 %s267, 1
      %p271 = scmp.eq.s32.totalorder %s23, 1
      %p272 = scmp.ne.s32.totalorder %s267, %s269
      %p273 = scmp.eq.s32.totalorder %s23, 0
      %p274 = por %p272, %p273
      %p275 = scmp.ne.s32.totalorder %s267, %s269
      %p276 = scmp.eq.s32.totalorder %s28, 1
      %p277 = por %p275, %p276
      %p278 = scmp.ne.s32.totalorder %s269, %s270
      %p279 = scmp.eq.s32.totalorder %s28, 0
      %p280 = por %p278, %p279
      %p281 = scmp.ne.s32.totalorder %s269, %s270
      %p282 = scmp.eq.s32.totalorder %s29, 1
      %p283 = por %p281, %p282
      %p285 = scmp.ne.s32.totalorder %s270, %s284
      %p286 = scmp.eq.s32.totalorder %s29, 0
      %p287 = por %p285, %p286
      %s289 = sadd.s32 %s288, 1
      %p292 = scmp.eq.s32.totalorder %s23, 1
      %p293 = scmp.ne.s32.totalorder %s288, %s290
      %p294 = scmp.eq.s32.totalorder %s23, 0
      %p295 = por %p293, %p294
      %p296 = scmp.ne.s32.totalorder %s288, %s290
      %p297 = scmp.eq.s32.totalorder %s28, 1
      %p298 = por %p296, %p297
      %p299 = scmp.ne.s32.totalorder %s290, %s291
      %p300 = scmp.eq.s32.totalorder %s28, 0
      %p301 = por %p299, %p300
      %p302 = scmp.ne.s32.totalorder %s290, %s291
      %p303 = scmp.eq.s32.totalorder %s29, 1
      %p304 = por %p302, %p303
      %p306 = scmp.ne.s32.totalorder %s291, %s305
      %p307 = scmp.eq.s32.totalorder %s29, 0
      %p308 = por %p306, %p307
      %s309 = ssub.s32 %s23, %s30
      %p310 = scmp.eq.s32.totalorder %s309, 0
      %s312 = sadd.s32 %s311, 1
      %s313 = scalar_select %p310, %s311, %s312
      %p316 = pneg %p310
      %p317 = scmp.eq.s32.totalorder %s23, 1
      %p318 = por %p316, %p317
      %p319 = scmp.ne.s32.totalorder %s311, %s314
      %p320 = scmp.eq.s32.totalorder %s23, 0
      %p321 = por %p319, %p320
      %p322 = scmp.ne.s32.totalorder %s311, %s314
      %p323 = scmp.eq.s32.totalorder %s28, 1
      %p324 = por %p322, %p323
      %p325 = scmp.ne.s32.totalorder %s314, %s315
      %p326 = scmp.eq.s32.totalorder %s28, 0
      %p327 = por %p325, %p326
      %p328 = scmp.ne.s32.totalorder %s314, %s315
      %p329 = scmp.eq.s32.totalorder %s29, 1
      %p330 = por %p328, %p329
      %p332 = scmp.ne.s32.totalorder %s315, %s331
      %p333 = scmp.eq.s32.totalorder %s29, 0
      %p334 = por %p332, %p333
      %p335 = scmp.le.s32.totalorder 1, %s23
      %p336 = scmp.lt.s32.totalorder %s23, 3
      %p337 = pnand %p335, %p336
      %p338 = pneg %p337
      // Predicated region
      $region9: #{tpu_custom_call.1} parent=5 // pred_check
        _
      $region10: #{tpu_custom_call.1} parent=5 // pred_check_branch
        %340 = sbr.rel (%p337) target = $region12
      $region11: #{tpu_custom_call.1} parent=5 // pred_region
        %s341 = ssub.s32 %s23, 1
        // Predicated region
        $region13: #{tpu_custom_call.1} parent=11 // pred_check
          %p342 = pneg %p70
        $region14: #{tpu_custom_call.1} parent=11 // pred_check_branch
          %344 = sbr.rel (%p342) target = $region16
        $region15: #{tpu_custom_call.1} parent=11 // pred_region
          _
        $region16: #{tpu_custom_call.1} parent=11 // pred_fallthru
          _
        // Predicated region
        $region17: #{tpu_custom_call.1} parent=11 // pred_check
          %p345 = pneg %p91
        $region18: #{tpu_custom_call.1} parent=11 // pred_check_branch
          %347 = sbr.rel (%p345) target = $region20
        $region19: #{tpu_custom_call.1} parent=11 // pred_region
          _
        $region20: #{tpu_custom_call.1} parent=11 // pred_fallthru
          _
        // Predicated region
        $region21: #{tpu_custom_call.1} parent=11 // pred_check
          %p348 = pneg %p112
        $region22: #{tpu_custom_call.1} parent=11 // pred_check_branch
          %350 = sbr.rel (%p348) target = $region24
        $region23: #{tpu_custom_call.1} parent=11 // pred_region
          _
        $region24: #{tpu_custom_call.1} parent=11 // pred_fallthru
          _
        // Predicated region
        $region25: #{tpu_custom_call.1} parent=11 // pred_check
          %p351 = pneg %p133
        $region26: #{tpu_custom_call.1} parent=11 // pred_check_branch
          %353 = sbr.rel (%p351) target = $region28
        $region27: #{tpu_custom_call.1} parent=11 // pred_region
          _
        $region28: #{tpu_custom_call.1} parent=11 // pred_fallthru
          _
        // Predicated region
        $region29: #{tpu_custom_call.1} parent=11 // pred_check
          %p354 = pneg %p154
        $region30: #{tpu_custom_call.1} parent=11 // pred_check_branch
          %356 = sbr.rel (%p354) target = $region32
        $region31: #{tpu_custom_call.1} parent=11 // pred_region
          _
        $region32: #{tpu_custom_call.1} parent=11 // pred_fallthru
          _
        // Predicated region
        $region33: #{tpu_custom_call.1} parent=11 // pred_check
          %p357 = pneg %p175
        $region34: #{tpu_custom_call.1} parent=11 // pred_check_branch
          %359 = sbr.rel (%p357) target = $region36
        $region35: #{tpu_custom_call.1} parent=11 // pred_region
          _
        $region36: #{tpu_custom_call.1} parent=11 // pred_fallthru
          _
        // Predicated region
        $region37: #{tpu_custom_call.1} parent=11 // pred_check
          %p360 = pneg %p196
        $region38: #{tpu_custom_call.1} parent=11 // pred_check_branch
          %362 = sbr.rel (%p360) target = $region40
        $region39: #{tpu_custom_call.1} parent=11 // pred_region
          %s364 = ssub.s32 8192, 8192
          %365 = vsyncadd [#allocation4], %s364
          %s366 = sshll.u32 [#allocation3], 4
          %s367 = int_to_ptr.vmem [resolvable:$true] %s366
          %372 = dma.hbm_to_vmem [thread:$0]  %s7, 8192, %s367, [#allocation4], 256, 256, 16
        $region40: #{tpu_custom_call.1} parent=11 // pred_fallthru
          _
        // Predicated region
        $region41: #{tpu_custom_call.1} parent=11 // pred_check
          %p373 = pneg %p217
        $region42: #{tpu_custom_call.1} parent=11 // pred_check_branch
          %375 = sbr.rel (%p373) target = $region44
        $region43: #{tpu_custom_call.1} parent=11 // pred_region
          _
        $region44: #{tpu_custom_call.1} parent=11 // pred_fallthru
          _
        // Predicated region
        $region45: #{tpu_custom_call.1} parent=11 // pred_check
          %p376 = pneg %p238
        $region46: #{tpu_custom_call.1} parent=11 // pred_check_branch
          %378 = sbr.rel (%p376) target = $region48
        $region47: #{tpu_custom_call.1} parent=11 // pred_region
          %s380 = ssub.s32 8192, 8192
          %381 = vsyncadd [#allocation6], %s380
          %s382 = sshll.u32 [#allocation5], 4
          %s383 = int_to_ptr.vmem [resolvable:$true] %s382
          %388 = dma.hbm_to_vmem [thread:$0]  %s9, 8192, %s383, [#allocation6], 256, 256, 16
        $region48: #{tpu_custom_call.1} parent=11 // pred_fallthru
          _
        // Predicated region
        $region49: #{tpu_custom_call.1} parent=11 // pred_check
          %p389 = pneg %p259
        $region50: #{tpu_custom_call.1} parent=11 // pred_check_branch
          %391 = sbr.rel (%p389) target = $region52
        $region51: #{tpu_custom_call.1} parent=11 // pred_region
          _
        $region52: #{tpu_custom_call.1} parent=11 // pred_fallthru
          _
        // Predicated region
        $region53: #{tpu_custom_call.1} parent=11 // pred_check
          %p392 = pneg %p280
        $region54: #{tpu_custom_call.1} parent=11 // pred_check_branch
          %394 = sbr.rel (%p392) target = $region56
        $region55: #{tpu_custom_call.1} parent=11 // pred_region
          _
        $region56: #{tpu_custom_call.1} parent=11 // pred_fallthru
          _
        // Predicated region
        $region57: #{tpu_custom_call.1} parent=11 // pred_check
          %p395 = pneg %p301
        $region58: #{tpu_custom_call.1} parent=11 // pred_check_branch
          %397 = sbr.rel (%p395) target = $region60
        $region59: #{tpu_custom_call.1} parent=11 // pred_region
          _
        $region60: #{tpu_custom_call.1} parent=11 // pred_fallthru
          _
      $region12: #{tpu_custom_call.1} parent=5 // pred_fallthru
        _
      %p398 = scmp.lt.s32.totalorder %s23, 2
      // Predicated region
      $region61: #{tpu_custom_call.1} parent=5 // pred_check
        %p399 = pneg %p398
      $region62: #{tpu_custom_call.1} parent=5 // pred_check_branch
        %401 = sbr.rel (%p399) target = $region64
      $region63: #{tpu_custom_call.1} parent=5 // pred_region
        // Predicated region
        $region65: #{tpu_custom_call.1} parent=63 // pred_check
          %p402 = pneg %p43
        $region66: #{tpu_custom_call.1} parent=63 // pred_check_branch
          %404 = sbr.rel (%p402) target = $region68
        $region67: #{tpu_custom_call.1} parent=63 // pred_region
          %s405 = smul.u32 64, %s23
          %p406 = scmp.lt.s32.totalorder %s405, 127
          %s407 = scalar_select %p406, %s405, 127
          %s408 = smul.addr %s407, 8
          %s409 = scalar_lea.vmem %s0, %s408
          %s410 = smul.u32 64, %s23
        $region68: #{tpu_custom_call.1} parent=63 // pred_fallthru
          _
      $region64: #{tpu_custom_call.1} parent=5 // pred_fallthru
        _
      %p411 = scmp.le.s32.totalorder 1, %s23
      %p412 = scmp.lt.s32.totalorder %s23, 3
      %p413 = pnand %p411, %p412
      %p414 = pneg %p413
      // Predicated region
      $region69: #{tpu_custom_call.1} parent=5 // pred_check
        _
      $region70: #{tpu_custom_call.1} parent=5 // pred_check_branch
        %416 = sbr.rel (%p413) target = $region72
      $region71: #{tpu_custom_call.1} parent=5 // pred_region
        %s417 = ssub.s32 %s23, 1
        // Predicated region
        $region73: #{tpu_custom_call.1} parent=71 // pred_check
          %p418 = pneg %p196
        $region74: #{tpu_custom_call.1} parent=71 // pred_check_branch
          %420 = sbr.rel (%p418) target = $region76
        $region75: #{tpu_custom_call.1} parent=71 // pred_region
          %421 = dma.done [#allocation4], 8192
        $region76: #{tpu_custom_call.1} parent=71 // pred_fallthru
          _
        // Predicated region
        $region77: #{tpu_custom_call.1} parent=71 // pred_check
          %p422 = pneg %p238
        $region78: #{tpu_custom_call.1} parent=71 // pred_check_branch
          %424 = sbr.rel (%p422) target = $region80
        $region79: #{tpu_custom_call.1} parent=71 // pred_region
          %425 = dma.done [#allocation6], 8192
        $region80: #{tpu_custom_call.1} parent=71 // pred_fallthru
          _
        %s426 = smul.u32 64, %s28
        %p427 = scmp.lt.s32.totalorder %s426, 127
        %s428 = scalar_select %p427, %s426, 127
        %s429 = smul.addr %s428, 8
        %s430 = scalar_lea.vmem %s0, %s429
        %p431 = pneg %p49
        %p432 = pneg %p46
        %p433 = pneg %p70
        %p434 = pneg %p67
        %p435 = pneg %p91
        %p436 = pneg %p88
        %p437 = pneg %p112
        %p438 = pneg %p109
        %p439 = pneg %p133
        %p440 = pneg %p130
        %p441 = pneg %p154
        %p442 = pneg %p151
        %p443 = pneg %p175
        %p444 = pneg %p172
        %p445 = pneg %p196
        %p446 = pneg %p193
        %p447 = pneg %p217
        %p448 = pneg %p214
        %p449 = pneg %p238
        %p450 = pneg %p235
        %p451 = pneg %p259
        %p452 = pneg %p256
        %p453 = pneg %p280
        %p454 = pneg %p277
        %p455 = pneg %p301
        %p456 = pneg %p298
        %p457 = pneg %p327
        %p458 = pneg %p324
        %s459 = smul.u32 64, %s28
        %p460 = scmp.lt.s32.totalorder %s459, 127
        %s461 = scalar_select %p460, %s459, 127
        %s462 = smul.addr %s461, 8
        %s463 = scalar_lea.vmem %s13, %s462
        %s464 = smul.u32 64, %s28
        %p465 = scmp.lt.s32.totalorder %s464, 127
        %s466 = scalar_select %p465, %s464, 127
        %s467 = smul.addr %s466, 8
        %s468 = scalar_lea.vmem %s0, %s467
        %s469 = smul.u32 64, %s28
        %s470 = smul.u32 64, %s28
        %p471 = scmp.lt.s32.totalorder %s470, 127
        %s472 = scalar_select %p471, %s470, 127
        %s473 = smul.addr %s472, 8
        %s474 = scalar_lea.vmem %s13, %s473
        %s475 = smul.u32 64, %s28
        %v476 = vld [vmem:[%s468] sm:$0xff]
        %v477 = vld [vmem:[%s468 + $0x8] sm:$0xff]
        %v478 = vld [vmem:[%s468 + $0x10] sm:$0xff]
        %v479 = vld [vmem:[%s468 + $0x18] sm:$0xff]
        %v480 = vld [vmem:[%s468 + $0x20] sm:$0xff]
        %v481 = vld [vmem:[%s468 + $0x28] sm:$0xff]
        %v482 = vld [vmem:[%s468 + $0x30] sm:$0xff]
        %v483 = vld [vmem:[%s468 + $0x38] sm:$0xff]
        %v484 = vld [vmem:[%s468 + $0x40] sm:$0xff]
        %v485 = vld [vmem:[%s468 + $0x48] sm:$0xff]
        %v486 = vld [vmem:[%s468 + $0x50] sm:$0xff]
        %v487 = vld [vmem:[%s468 + $0x58] sm:$0xff]
        %v488 = vld [vmem:[%s468 + $0x60] sm:$0xff]
        %v489 = vld [vmem:[%s468 + $0x68] sm:$0xff]
        %v490 = vld [vmem:[%s468 + $0x70] sm:$0xff]
        %v491 = vld [vmem:[%s468 + $0x78] sm:$0xff]
        %v492 = vld [vmem:[%s468 + $0x80] sm:$0xff]
        %v493 = vld [vmem:[%s468 + $0x88] sm:$0xff]
        %v494 = vld [vmem:[%s468 + $0x90] sm:$0xff]
        %v495 = vld [vmem:[%s468 + $0x98] sm:$0xff]
        %v496 = vld [vmem:[%s468 + $0xa0] sm:$0xff]
        %v497 = vld [vmem:[%s468 + $0xa8] sm:$0xff]
        %v498 = vld [vmem:[%s468 + $0xb0] sm:$0xff]
        %v499 = vld [vmem:[%s468 + $0xb8] sm:$0xff]
        %v500 = vld [vmem:[%s468 + $0xc0] sm:$0xff]
        %v501 = vld [vmem:[%s468 + $0xc8] sm:$0xff]
        %v502 = vld [vmem:[%s468 + $0xd0] sm:$0xff]
        %v503 = vld [vmem:[%s468 + $0xd8] sm:$0xff]
        %v504 = vld [vmem:[%s468 + $0xe0] sm:$0xff]
        %v505 = vld [vmem:[%s468 + $0xe8] sm:$0xff]
        %v506 = vld [vmem:[%s468 + $0xf0] sm:$0xff]
        %v507 = vld [vmem:[%s468 + $0xf8] sm:$0xff]
        %v508 = vld [vmem:[%s468 + $0x100] sm:$0xff]
        %v509 = vld [vmem:[%s468 + $0x108] sm:$0xff]
        %v510 = vld [vmem:[%s468 + $0x110] sm:$0xff]
        %v511 = vld [vmem:[%s468 + $0x118] sm:$0xff]
        %v512 = vld [vmem:[%s468 + $0x120] sm:$0xff]
        %v513 = vld [vmem:[%s468 + $0x128] sm:$0xff]
        %v514 = vld [vmem:[%s468 + $0x130] sm:$0xff]
        %v515 = vld [vmem:[%s468 + $0x138] sm:$0xff]
        %v516 = vld [vmem:[%s468 + $0x140] sm:$0xff]
        %v517 = vld [vmem:[%s468 + $0x148] sm:$0xff]
        %v518 = vld [vmem:[%s468 + $0x150] sm:$0xff]
        %v519 = vld [vmem:[%s468 + $0x158] sm:$0xff]
        %v520 = vld [vmem:[%s468 + $0x160] sm:$0xff]
        %v521 = vld [vmem:[%s468 + $0x168] sm:$0xff]
        %v522 = vld [vmem:[%s468 + $0x170] sm:$0xff]
        %v523 = vld [vmem:[%s468 + $0x178] sm:$0xff]
        %v524 = vld [vmem:[%s468 + $0x180] sm:$0xff]
        %v525 = vld [vmem:[%s468 + $0x188] sm:$0xff]
        %v526 = vld [vmem:[%s468 + $0x190] sm:$0xff]
        %v527 = vld [vmem:[%s468 + $0x198] sm:$0xff]
        %v528 = vld [vmem:[%s468 + $0x1a0] sm:$0xff]
        %v529 = vld [vmem:[%s468 + $0x1a8] sm:$0xff]
        %v530 = vld [vmem:[%s468 + $0x1b0] sm:$0xff]
        %v531 = vld [vmem:[%s468 + $0x1b8] sm:$0xff]
        %v532 = vld [vmem:[%s468 + $0x1c0] sm:$0xff]
        %v533 = vld [vmem:[%s468 + $0x1c8] sm:$0xff]
        %v534 = vld [vmem:[%s468 + $0x1d0] sm:$0xff]
        %v535 = vld [vmem:[%s468 + $0x1d8] sm:$0xff]
        %v536 = vld [vmem:[%s468 + $0x1e0] sm:$0xff]
        %v537 = vld [vmem:[%s468 + $0x1e8] sm:$0xff]
        %v538 = vld [vmem:[%s468 + $0x1f0] sm:$0xff]
        %v539 = vld [vmem:[%s468 + $0x1f8] sm:$0xff]
        %v540 = vld [vmem:[%s1] ss:$4 sm:$0x3]
        %542 = vset.pattern.permute.xlu0 0
        %543 = vperm.xlu0 %542, %v476
        %v544 = vpop.permute.xlu0 %543
        %547 = vset.pattern.permute.xlu0 0
        %548 = vperm.xlu0 %547, %v477
        %v549 = vpop.permute.xlu0 %548
        %552 = vset.pattern.permute.xlu0 0
        %553 = vperm.xlu0 %552, %v478
        %v554 = vpop.permute.xlu0 %553
        %557 = vset.pattern.permute.xlu0 0
        %558 = vperm.xlu0 %557, %v479
        %v559 = vpop.permute.xlu0 %558
        %562 = vset.pattern.permute.xlu0 0
        %563 = vperm.xlu0 %562, %v480
        %v564 = vpop.permute.xlu0 %563
        %567 = vset.pattern.permute.xlu0 0
        %568 = vperm.xlu0 %567, %v481
        %v569 = vpop.permute.xlu0 %568
        %572 = vset.pattern.permute.xlu0 0
        %573 = vperm.xlu0 %572, %v482
        %v574 = vpop.permute.xlu0 %573
        %577 = vset.pattern.permute.xlu0 0
        %578 = vperm.xlu0 %577, %v483
        %v579 = vpop.permute.xlu0 %578
        %582 = vset.pattern.permute.xlu0 0
        %583 = vperm.xlu0 %582, %v484
        %v584 = vpop.permute.xlu0 %583
        %587 = vset.pattern.permute.xlu0 0
        %588 = vperm.xlu0 %587, %v485
        %v589 = vpop.permute.xlu0 %588
        %592 = vset.pattern.permute.xlu0 0
        %593 = vperm.xlu0 %592, %v486
        %v594 = vpop.permute.xlu0 %593
        %597 = vset.pattern.permute.xlu0 0
        %598 = vperm.xlu0 %597, %v487
        %v599 = vpop.permute.xlu0 %598
        %602 = vset.pattern.permute.xlu0 0
        %603 = vperm.xlu0 %602, %v488
        %v604 = vpop.permute.xlu0 %603
        %607 = vset.pattern.permute.xlu0 0
        %608 = vperm.xlu0 %607, %v489
        %v609 = vpop.permute.xlu0 %608
        %612 = vset.pattern.permute.xlu0 0
        %613 = vperm.xlu0 %612, %v490
        %v614 = vpop.permute.xlu0 %613
        %617 = vset.pattern.permute.xlu0 0
        %618 = vperm.xlu0 %617, %v491
        %v619 = vpop.permute.xlu0 %618
        %622 = vset.pattern.permute.xlu0 0
        %623 = vperm.xlu0 %622, %v492
        %v624 = vpop.permute.xlu0 %623
        %627 = vset.pattern.permute.xlu0 0
        %628 = vperm.xlu0 %627, %v493
        %v629 = vpop.permute.xlu0 %628
        %632 = vset.pattern.permute.xlu0 0
        %633 = vperm.xlu0 %632, %v494
        %v634 = vpop.permute.xlu0 %633
        %637 = vset.pattern.permute.xlu0 0
        %638 = vperm.xlu0 %637, %v495
        %v639 = vpop.permute.xlu0 %638
        %642 = vset.pattern.permute.xlu0 0
        %643 = vperm.xlu0 %642, %v496
        %v644 = vpop.permute.xlu0 %643
        %647 = vset.pattern.permute.xlu0 0
        %648 = vperm.xlu0 %647, %v497
        %v649 = vpop.permute.xlu0 %648
        %652 = vset.pattern.permute.xlu0 0
        %653 = vperm.xlu0 %652, %v498
        %v654 = vpop.permute.xlu0 %653
        %657 = vset.pattern.permute.xlu0 0
        %658 = vperm.xlu0 %657, %v499
        %v659 = vpop.permute.xlu0 %658
        %662 = vset.pattern.permute.xlu0 0
        %663 = vperm.xlu0 %662, %v500
        %v664 = vpop.permute.xlu0 %663
        %667 = vset.pattern.permute.xlu0 0
        %668 = vperm.xlu0 %667, %v501
        %v669 = vpop.permute.xlu0 %668
        %672 = vset.pattern.permute.xlu0 0
        %673 = vperm.xlu0 %672, %v502
        %v674 = vpop.permute.xlu0 %673
        %677 = vset.pattern.permute.xlu0 0
        %678 = vperm.xlu0 %677, %v503
        %v679 = vpop.permute.xlu0 %678
        %682 = vset.pattern.permute.xlu0 0
        %683 = vperm.xlu0 %682, %v504
        %v684 = vpop.permute.xlu0 %683
        %687 = vset.pattern.permute.xlu0 0
        %688 = vperm.xlu0 %687, %v505
        %v689 = vpop.permute.xlu0 %688
        %692 = vset.pattern.permute.xlu0 0
        %693 = vperm.xlu0 %692, %v506
        %v694 = vpop.permute.xlu0 %693
        %697 = vset.pattern.permute.xlu0 0
        %698 = vperm.xlu0 %697, %v507
        %v699 = vpop.permute.xlu0 %698
        %702 = vset.pattern.permute.xlu0 0
        %703 = vperm.xlu0 %702, %v508
        %v704 = vpop.permute.xlu0 %703
        %707 = vset.pattern.permute.xlu0 0
        %708 = vperm.xlu0 %707, %v509
        %v709 = vpop.permute.xlu0 %708
        %712 = vset.pattern.permute.xlu0 0
        %713 = vperm.xlu0 %712, %v510
        %v714 = vpop.permute.xlu0 %713
        %717 = vset.pattern.permute.xlu0 0
        %718 = vperm.xlu0 %717, %v511
        %v719 = vpop.permute.xlu0 %718
        %722 = vset.pattern.permute.xlu0 0
        %723 = vperm.xlu0 %722, %v512
        %v724 = vpop.permute.xlu0 %723
        %727 = vset.pattern.permute.xlu0 0
        %728 = vperm.xlu0 %727, %v513
        %v729 = vpop.permute.xlu0 %728
        %732 = vset.pattern.permute.xlu0 0
        %733 = vperm.xlu0 %732, %v514
        %v734 = vpop.permute.xlu0 %733
        %737 = vset.pattern.permute.xlu0 0
        %738 = vperm.xlu0 %737, %v515
        %v739 = vpop.permute.xlu0 %738
        %742 = vset.pattern.permute.xlu0 0
        %743 = vperm.xlu0 %742, %v516
        %v744 = vpop.permute.xlu0 %743
        %747 = vset.pattern.permute.xlu0 0
        %748 = vperm.xlu0 %747, %v517
        %v749 = vpop.permute.xlu0 %748
        %752 = vset.pattern.permute.xlu0 0
        %753 = vperm.xlu0 %752, %v518
        %v754 = vpop.permute.xlu0 %753
        %757 = vset.pattern.permute.xlu0 0
        %758 = vperm.xlu0 %757, %v519
        %v759 = vpop.permute.xlu0 %758
        %762 = vset.pattern.permute.xlu0 0
        %763 = vperm.xlu0 %762, %v520
        %v764 = vpop.permute.xlu0 %763
        %767 = vset.pattern.permute.xlu0 0
        %768 = vperm.xlu0 %767, %v521
        %v769 = vpop.permute.xlu0 %768
        %772 = vset.pattern.permute.xlu0 0
        %773 = vperm.xlu0 %772, %v522
        %v774 = vpop.permute.xlu0 %773
        %777 = vset.pattern.permute.xlu0 0
        %778 = vperm.xlu0 %777, %v523
        %v779 = vpop.permute.xlu0 %778
        %782 = vset.pattern.permute.xlu0 0
        %783 = vperm.xlu0 %782, %v524
        %v784 = vpop.permute.xlu0 %783
        %787 = vset.pattern.permute.xlu0 0
        %788 = vperm.xlu0 %787, %v525
        %v789 = vpop.permute.xlu0 %788
        %792 = vset.pattern.permute.xlu0 0
        %793 = vperm.xlu0 %792, %v526
        %v794 = vpop.permute.xlu0 %793
        %797 = vset.pattern.permute.xlu0 0
        %798 = vperm.xlu0 %797, %v527
        %v799 = vpop.permute.xlu0 %798
        %802 = vset.pattern.permute.xlu0 0
        %803 = vperm.xlu0 %802, %v528
        %v804 = vpop.permute.xlu0 %803
        %807 = vset.pattern.permute.xlu0 0
        %808 = vperm.xlu0 %807, %v529
        %v809 = vpop.permute.xlu0 %808
        %812 = vset.pattern.permute.xlu0 0
        %813 = vperm.xlu0 %812, %v530
        %v814 = vpop.permute.xlu0 %813
        %817 = vset.pattern.permute.xlu0 0
        %818 = vperm.xlu0 %817, %v531
        %v819 = vpop.permute.xlu0 %818
        %822 = vset.pattern.permute.xlu0 0
        %823 = vperm.xlu0 %822, %v532
        %v824 = vpop.permute.xlu0 %823
        %827 = vset.pattern.permute.xlu0 0
        %828 = vperm.xlu0 %827, %v533
        %v829 = vpop.permute.xlu0 %828
        %832 = vset.pattern.permute.xlu0 0
        %833 = vperm.xlu0 %832, %v534
        %v834 = vpop.permute.xlu0 %833
        %837 = vset.pattern.permute.xlu0 0
        %838 = vperm.xlu0 %837, %v535
        %v839 = vpop.permute.xlu0 %838
        %842 = vset.pattern.permute.xlu0 0
        %843 = vperm.xlu0 %842, %v536
        %v844 = vpop.permute.xlu0 %843
        %847 = vset.pattern.permute.xlu0 0
        %848 = vperm.xlu0 %847, %v537
        %v849 = vpop.permute.xlu0 %848
        %852 = vset.pattern.permute.xlu0 0
        %853 = vperm.xlu0 %852, %v538
        %v854 = vpop.permute.xlu0 %853
        %857 = vset.pattern.permute.xlu0 0
        %858 = vperm.xlu0 %857, %v539
        %v859 = vpop.permute.xlu0 %858
        %v862 = vlaneseq
        %v863 = vshrl.u32 %v862, 7
        %v864 = vsub.s32 0, %v863
        %v865 = vrot.slane %v540, %v864
        %v866 = vlaneseq
        %v867 = vshrl.u32 %v866, 7
        %v868 = vsub.s32 1, %v867
        %v869 = vrot.slane %v540, %v868
        %v872 = vmul.f32 %v544, %v865
        %v873 = vmul.f32 %v544, %v869
        %v874 = vmul.f32 %v549, %v865
        %v875 = vmul.f32 %v549, %v869
        %v876 = vmul.f32 %v554, %v865
        %v877 = vmul.f32 %v554, %v869
        %v878 = vmul.f32 %v559, %v865
        %v879 = vmul.f32 %v559, %v869
        %v880 = vmul.f32 %v564, %v865
        %v881 = vmul.f32 %v564, %v869
        %v882 = vmul.f32 %v569, %v865
        %v883 = vmul.f32 %v569, %v869
        %v884 = vmul.f32 %v574, %v865
        %v885 = vmul.f32 %v574, %v869
        %v886 = vmul.f32 %v579, %v865
        %v887 = vmul.f32 %v579, %v869
        %v888 = vmul.f32 %v584, %v865
        %v889 = vmul.f32 %v584, %v869
        %v890 = vmul.f32 %v589, %v865
        %v891 = vmul.f32 %v589, %v869
        %v892 = vmul.f32 %v594, %v865
        %v893 = vmul.f32 %v594, %v869
        %v894 = vmul.f32 %v599, %v865
        %v895 = vmul.f32 %v599, %v869
        %v896 = vmul.f32 %v604, %v865
        %v897 = vmul.f32 %v604, %v869
        %v898 = vmul.f32 %v609, %v865
        %v899 = vmul.f32 %v609, %v869
        %v900 = vmul.f32 %v614, %v865
        %v901 = vmul.f32 %v614, %v869
        %v902 = vmul.f32 %v619, %v865
        %v903 = vmul.f32 %v619, %v869
        %v904 = vmul.f32 %v624, %v865
        %v905 = vmul.f32 %v624, %v869
        %v906 = vmul.f32 %v629, %v865
        %v907 = vmul.f32 %v629, %v869
        %v908 = vmul.f32 %v634, %v865
        %v909 = vmul.f32 %v634, %v869
        %v910 = vmul.f32 %v639, %v865
        %v911 = vmul.f32 %v639, %v869
        %v912 = vmul.f32 %v644, %v865
        %v913 = vmul.f32 %v644, %v869
        %v914 = vmul.f32 %v649, %v865
        %v915 = vmul.f32 %v649, %v869
        %v916 = vmul.f32 %v654, %v865
        %v917 = vmul.f32 %v654, %v869
        %v918 = vmul.f32 %v659, %v865
        %v919 = vmul.f32 %v659, %v869
        %v920 = vmul.f32 %v664, %v865
        %v921 = vmul.f32 %v664, %v869
        %v922 = vmul.f32 %v669, %v865
        %v923 = vmul.f32 %v669, %v869
        %v924 = vmul.f32 %v674, %v865
        %v925 = vmul.f32 %v674, %v869
        %v926 = vmul.f32 %v679, %v865
        %v927 = vmul.f32 %v679, %v869
        %v928 = vmul.f32 %v684, %v865
        %v929 = vmul.f32 %v684, %v869
        %v930 = vmul.f32 %v689, %v865
        %v931 = vmul.f32 %v689, %v869
        %v932 = vmul.f32 %v694, %v865
        %v933 = vmul.f32 %v694, %v869
        %v934 = vmul.f32 %v699, %v865
        %v935 = vmul.f32 %v699, %v869
        %v936 = vmul.f32 %v704, %v865
        %v937 = vmul.f32 %v704, %v869
        %v938 = vmul.f32 %v709, %v865
        %v939 = vmul.f32 %v709, %v869
        %v940 = vmul.f32 %v714, %v865
        %v941 = vmul.f32 %v714, %v869
        %v942 = vmul.f32 %v719, %v865
        %v943 = vmul.f32 %v719, %v869
        %v944 = vmul.f32 %v724, %v865
        %v945 = vmul.f32 %v724, %v869
        %v946 = vmul.f32 %v729, %v865
        %v947 = vmul.f32 %v729, %v869
        %v948 = vmul.f32 %v734, %v865
        %v949 = vmul.f32 %v734, %v869
        %v950 = vmul.f32 %v739, %v865
        %v951 = vmul.f32 %v739, %v869
        %v952 = vmul.f32 %v744, %v865
        %v953 = vmul.f32 %v744, %v869
        %v954 = vmul.f32 %v749, %v865
        %v955 = vmul.f32 %v749, %v869
        %v956 = vmul.f32 %v754, %v865
        %v957 = vmul.f32 %v754, %v869
        %v958 = vmul.f32 %v759, %v865
        %v959 = vmul.f32 %v759, %v869
        %v960 = vmul.f32 %v764, %v865
        %v961 = vmul.f32 %v764, %v869
        %v962 = vmul.f32 %v769, %v865
        %v963 = vmul.f32 %v769, %v869
        %v964 = vmul.f32 %v774, %v865
        %v965 = vmul.f32 %v774, %v869
        %v966 = vmul.f32 %v779, %v865
        %v967 = vmul.f32 %v779, %v869
        %v968 = vmul.f32 %v784, %v865
        %v969 = vmul.f32 %v784, %v869
        %v970 = vmul.f32 %v789, %v865
        %v971 = vmul.f32 %v789, %v869
        %v972 = vmul.f32 %v794, %v865
        %v973 = vmul.f32 %v794, %v869
        %v974 = vmul.f32 %v799, %v865
        %v975 = vmul.f32 %v799, %v869
        %v976 = vmul.f32 %v804, %v865
        %v977 = vmul.f32 %v804, %v869
        %v978 = vmul.f32 %v809, %v865
        %v979 = vmul.f32 %v809, %v869
        %v980 = vmul.f32 %v814, %v865
        %v981 = vmul.f32 %v814, %v869
        %v982 = vmul.f32 %v819, %v865
        %v983 = vmul.f32 %v819, %v869
        %v984 = vmul.f32 %v824, %v865
        %v985 = vmul.f32 %v824, %v869
        %v986 = vmul.f32 %v829, %v865
        %v987 = vmul.f32 %v829, %v869
        %v988 = vmul.f32 %v834, %v865
        %v989 = vmul.f32 %v834, %v869
        %v990 = vmul.f32 %v839, %v865
        %v991 = vmul.f32 %v839, %v869
        %v992 = vmul.f32 %v844, %v865
        %v993 = vmul.f32 %v844, %v869
        %v994 = vmul.f32 %v849, %v865
        %v995 = vmul.f32 %v849, %v869
        %v996 = vmul.f32 %v854, %v865
        %v997 = vmul.f32 %v854, %v869
        %v998 = vmul.f32 %v859, %v865
        %v999 = vmul.f32 %v859, %v869
        %s1000 = scalar_lea.vmem %s1, 1
        %v1001 = vld [vmem:[%s1000] ss:$4 sm:$0x3]
        %1002 = vset.pattern.permute.xlu0 1
        %1003 = vperm.xlu0 %1002, %v476
        %v1004 = vpop.permute.xlu0 %1003
        %1006 = vset.pattern.permute.xlu0 1
        %1007 = vperm.xlu0 %1006, %v477
        %v1008 = vpop.permute.xlu0 %1007
        %1010 = vset.pattern.permute.xlu0 1
        %1011 = vperm.xlu0 %1010, %v478
        %v1012 = vpop.permute.xlu0 %1011
        %1014 = vset.pattern.permute.xlu0 1
        %1015 = vperm.xlu0 %1014, %v479
        %v1016 = vpop.permute.xlu0 %1015
        %1018 = vset.pattern.permute.xlu0 1
        %1019 = vperm.xlu0 %1018, %v480
        %v1020 = vpop.permute.xlu0 %1019
        %1022 = vset.pattern.permute.xlu0 1
        %1023 = vperm.xlu0 %1022, %v481
        %v1024 = vpop.permute.xlu0 %1023
        %1026 = vset.pattern.permute.xlu0 1
        %1027 = vperm.xlu0 %1026, %v482
        %v1028 = vpop.permute.xlu0 %1027
        %1030 = vset.pattern.permute.xlu0 1
        %1031 = vperm.xlu0 %1030, %v483
        %v1032 = vpop.permute.xlu0 %1031
        %1034 = vset.pattern.permute.xlu0 1
        %1035 = vperm.xlu0 %1034, %v484
        %v1036 = vpop.permute.xlu0 %1035
        %1038 = vset.pattern.permute.xlu0 1
        %1039 = vperm.xlu0 %1038, %v485
        %v1040 = vpop.permute.xlu0 %1039
        %1042 = vset.pattern.permute.xlu0 1
        %1043 = vperm.xlu0 %1042, %v486
        %v1044 = vpop.permute.xlu0 %1043
        %1046 = vset.pattern.permute.xlu0 1
        %1047 = vperm.xlu0 %1046, %v487
        %v1048 = vpop.permute.xlu0 %1047
        %1050 = vset.pattern.permute.xlu0 1
        %1051 = vperm.xlu0 %1050, %v488
        %v1052 = vpop.permute.xlu0 %1051
        %1054 = vset.pattern.permute.xlu0 1
        %1055 = vperm.xlu0 %1054, %v489
        %v1056 = vpop.permute.xlu0 %1055
        %1058 = vset.pattern.permute.xlu0 1
        %1059 = vperm.xlu0 %1058, %v490
        %v1060 = vpop.permute.xlu0 %1059
        %1062 = vset.pattern.permute.xlu0 1
        %1063 = vperm.xlu0 %1062, %v491
        %v1064 = vpop.permute.xlu0 %1063
        %1066 = vset.pattern.permute.xlu0 1
        %1067 = vperm.xlu0 %1066, %v492
        %v1068 = vpop.permute.xlu0 %1067
        %1070 = vset.pattern.permute.xlu0 1
        %1071 = vperm.xlu0 %1070, %v493
        %v1072 = vpop.permute.xlu0 %1071
        %1074 = vset.pattern.permute.xlu0 1
        %1075 = vperm.xlu0 %1074, %v494
        %v1076 = vpop.permute.xlu0 %1075
        %1078 = vset.pattern.permute.xlu0 1
        %1079 = vperm.xlu0 %1078, %v495
        %v1080 = vpop.permute.xlu0 %1079
        %1082 = vset.pattern.permute.xlu0 1
        %1083 = vperm.xlu0 %1082, %v496
        %v1084 = vpop.permute.xlu0 %1083
        %1086 = vset.pattern.permute.xlu0 1
        %1087 = vperm.xlu0 %1086, %v497
        %v1088 = vpop.permute.xlu0 %1087
        %1090 = vset.pattern.permute.xlu0 1
        %1091 = vperm.xlu0 %1090, %v498
        %v1092 = vpop.permute.xlu0 %1091
        %1094 = vset.pattern.permute.xlu0 1
        %1095 = vperm.xlu0 %1094, %v499
        %v1096 = vpop.permute.xlu0 %1095
        %1098 = vset.pattern.permute.xlu0 1
        %1099 = vperm.xlu0 %1098, %v500
        %v1100 = vpop.permute.xlu0 %1099
        %1102 = vset.pattern.permute.xlu0 1
        %1103 = vperm.xlu0 %1102, %v501
        %v1104 = vpop.permute.xlu0 %1103
        %1106 = vset.pattern.permute.xlu0 1
        %1107 = vperm.xlu0 %1106, %v502
        %v1108 = vpop.permute.xlu0 %1107
        %1110 = vset.pattern.permute.xlu0 1
        %1111 = vperm.xlu0 %1110, %v503
        %v1112 = vpop.permute.xlu0 %1111
        %1114 = vset.pattern.permute.xlu0 1
        %1115 = vperm.xlu0 %1114, %v504
        %v1116 = vpop.permute.xlu0 %1115
        %1118 = vset.pattern.permute.xlu0 1
        %1119 = vperm.xlu0 %1118, %v505
        %v1120 = vpop.permute.xlu0 %1119
        %1122 = vset.pattern.permute.xlu0 1
        %1123 = vperm.xlu0 %1122, %v506
        %v1124 = vpop.permute.xlu0 %1123
        %1126 = vset.pattern.permute.xlu0 1
        %1127 = vperm.xlu0 %1126, %v507
        %v1128 = vpop.permute.xlu0 %1127
        %1130 = vset.pattern.permute.xlu0 1
        %1131 = vperm.xlu0 %1130, %v508
        %v1132 = vpop.permute.xlu0 %1131
        %1134 = vset.pattern.permute.xlu0 1
        %1135 = vperm.xlu0 %1134, %v509
        %v1136 = vpop.permute.xlu0 %1135
        %1138 = vset.pattern.permute.xlu0 1
        %1139 = vperm.xlu0 %1138, %v510
        %v1140 = vpop.permute.xlu0 %1139
        %1142 = vset.pattern.permute.xlu0 1
        %1143 = vperm.xlu0 %1142, %v511
        %v1144 = vpop.permute.xlu0 %1143
        %1146 = vset.pattern.permute.xlu0 1
        %1147 = vperm.xlu0 %1146, %v512
        %v1148 = vpop.permute.xlu0 %1147
        %1150 = vset.pattern.permute.xlu0 1
        %1151 = vperm.xlu0 %1150, %v513
        %v1152 = vpop.permute.xlu0 %1151
        %1154 = vset.pattern.permute.xlu0 1
        %1155 = vperm.xlu0 %1154, %v514
        %v1156 = vpop.permute.xlu0 %1155
        %1158 = vset.pattern.permute.xlu0 1
        %1159 = vperm.xlu0 %1158, %v515
        %v1160 = vpop.permute.xlu0 %1159
        %1162 = vset.pattern.permute.xlu0 1
        %1163 = vperm.xlu0 %1162, %v516
        %v1164 = vpop.permute.xlu0 %1163
        %1166 = vset.pattern.permute.xlu0 1
        %1167 = vperm.xlu0 %1166, %v517
        %v1168 = vpop.permute.xlu0 %1167
        %1170 = vset.pattern.permute.xlu0 1
        %1171 = vperm.xlu0 %1170, %v518
        %v1172 = vpop.permute.xlu0 %1171
        %1174 = vset.pattern.permute.xlu0 1
        %1175 = vperm.xlu0 %1174, %v519
        %v1176 = vpop.permute.xlu0 %1175
        %1178 = vset.pattern.permute.xlu0 1
        %1179 = vperm.xlu0 %1178, %v520
        %v1180 = vpop.permute.xlu0 %1179
        %1182 = vset.pattern.permute.xlu0 1
        %1183 = vperm.xlu0 %1182, %v521
        %v1184 = vpop.permute.xlu0 %1183
        %1186 = vset.pattern.permute.xlu0 1
        %1187 = vperm.xlu0 %1186, %v522
        %v1188 = vpop.permute.xlu0 %1187
        %1190 = vset.pattern.permute.xlu0 1
        %1191 = vperm.xlu0 %1190, %v523
        %v1192 = vpop.permute.xlu0 %1191
        %1194 = vset.pattern.permute.xlu0 1
        %1195 = vperm.xlu0 %1194, %v524
        %v1196 = vpop.permute.xlu0 %1195
        %1198 = vset.pattern.permute.xlu0 1
        %1199 = vperm.xlu0 %1198, %v525
        %v1200 = vpop.permute.xlu0 %1199
        %1202 = vset.pattern.permute.xlu0 1
        %1203 = vperm.xlu0 %1202, %v526
        %v1204 = vpop.permute.xlu0 %1203
        %1206 = vset.pattern.permute.xlu0 1
        %1207 = vperm.xlu0 %1206, %v527
        %v1208 = vpop.permute.xlu0 %1207
        %1210 = vset.pattern.permute.xlu0 1
        %1211 = vperm.xlu0 %1210, %v528
        %v1212 = vpop.permute.xlu0 %1211
        %1214 = vset.pattern.permute.xlu0 1
        %1215 = vperm.xlu0 %1214, %v529
        %v1216 = vpop.permute.xlu0 %1215
        %1218 = vset.pattern.permute.xlu0 1
        %1219 = vperm.xlu0 %1218, %v530
        %v1220 = vpop.permute.xlu0 %1219
        %1222 = vset.pattern.permute.xlu0 1
        %1223 = vperm.xlu0 %1222, %v531
        %v1224 = vpop.permute.xlu0 %1223
        %1226 = vset.pattern.permute.xlu0 1
        %1227 = vperm.xlu0 %1226, %v532
        %v1228 = vpop.permute.xlu0 %1227
        %1230 = vset.pattern.permute.xlu0 1
        %1231 = vperm.xlu0 %1230, %v533
        %v1232 = vpop.permute.xlu0 %1231
        %1234 = vset.pattern.permute.xlu0 1
        %1235 = vperm.xlu0 %1234, %v534
        %v1236 = vpop.permute.xlu0 %1235
        %1238 = vset.pattern.permute.xlu0 1
        %1239 = vperm.xlu0 %1238, %v535
        %v1240 = vpop.permute.xlu0 %1239
        %1242 = vset.pattern.permute.xlu0 1
        %1243 = vperm.xlu0 %1242, %v536
        %v1244 = vpop.permute.xlu0 %1243
        %1246 = vset.pattern.permute.xlu0 1
        %1247 = vperm.xlu0 %1246, %v537
        %v1248 = vpop.permute.xlu0 %1247
        %1250 = vset.pattern.permute.xlu0 1
        %1251 = vperm.xlu0 %1250, %v538
        %v1252 = vpop.permute.xlu0 %1251
        %1254 = vset.pattern.permute.xlu0 1
        %1255 = vperm.xlu0 %1254, %v539
        %v1256 = vpop.permute.xlu0 %1255
        %v1259 = vlaneseq
        %v1260 = vshrl.u32 %v1259, 7
        %v1261 = vsub.s32 0, %v1260
        %v1262 = vrot.slane %v1001, %v1261
        %v1263 = vlaneseq
        %v1264 = vshrl.u32 %v1263, 7
        %v1265 = vsub.s32 1, %v1264
        %v1266 = vrot.slane %v1001, %v1265
        %v1269 = vmul.f32 %v1004, %v1262
        %v1270 = vmul.f32 %v1004, %v1266
        %v1271 = vmul.f32 %v1008, %v1262
        %v1272 = vmul.f32 %v1008, %v1266
        %v1273 = vmul.f32 %v1012, %v1262
        %v1274 = vmul.f32 %v1012, %v1266
        %v1275 = vmul.f32 %v1016, %v1262
        %v1276 = vmul.f32 %v1016, %v1266
        %v1277 = vmul.f32 %v1020, %v1262
        %v1278 = vmul.f32 %v1020, %v1266
        %v1279 = vmul.f32 %v1024, %v1262
        %v1280 = vmul.f32 %v1024, %v1266
        %v1281 = vmul.f32 %v1028, %v1262
        %v1282 = vmul.f32 %v1028, %v1266
        %v1283 = vmul.f32 %v1032, %v1262
        %v1284 = vmul.f32 %v1032, %v1266
        %v1285 = vmul.f32 %v1036, %v1262
        %v1286 = vmul.f32 %v1036, %v1266
        %v1287 = vmul.f32 %v1040, %v1262
        %v1288 = vmul.f32 %v1040, %v1266
        %v1289 = vmul.f32 %v1044, %v1262
        %v1290 = vmul.f32 %v1044, %v1266
        %v1291 = vmul.f32 %v1048, %v1262
        %v1292 = vmul.f32 %v1048, %v1266
        %v1293 = vmul.f32 %v1052, %v1262
        %v1294 = vmul.f32 %v1052, %v1266
        %v1295 = vmul.f32 %v1056, %v1262
        %v1296 = vmul.f32 %v1056, %v1266
        %v1297 = vmul.f32 %v1060, %v1262
        %v1298 = vmul.f32 %v1060, %v1266
        %v1299 = vmul.f32 %v1064, %v1262
        %v1300 = vmul.f32 %v1064, %v1266
        %v1301 = vmul.f32 %v1068, %v1262
        %v1302 = vmul.f32 %v1068, %v1266
        %v1303 = vmul.f32 %v1072, %v1262
        %v1304 = vmul.f32 %v1072, %v1266
        %v1305 = vmul.f32 %v1076, %v1262
        %v1306 = vmul.f32 %v1076, %v1266
        %v1307 = vmul.f32 %v1080, %v1262
        %v1308 = vmul.f32 %v1080, %v1266
        %v1309 = vmul.f32 %v1084, %v1262
        %v1310 = vmul.f32 %v1084, %v1266
        %v1311 = vmul.f32 %v1088, %v1262
        %v1312 = vmul.f32 %v1088, %v1266
        %v1313 = vmul.f32 %v1092, %v1262
        %v1314 = vmul.f32 %v1092, %v1266
        %v1315 = vmul.f32 %v1096, %v1262
        %v1316 = vmul.f32 %v1096, %v1266
        %v1317 = vmul.f32 %v1100, %v1262
        %v1318 = vmul.f32 %v1100, %v1266
        %v1319 = vmul.f32 %v1104, %v1262
        %v1320 = vmul.f32 %v1104, %v1266
        %v1321 = vmul.f32 %v1108, %v1262
        %v1322 = vmul.f32 %v1108, %v1266
        %v1323 = vmul.f32 %v1112, %v1262
        %v1324 = vmul.f32 %v1112, %v1266
        %v1325 = vmul.f32 %v1116, %v1262
        %v1326 = vmul.f32 %v1116, %v1266
        %v1327 = vmul.f32 %v1120, %v1262
        %v1328 = vmul.f32 %v1120, %v1266
        %v1329 = vmul.f32 %v1124, %v1262
        %v1330 = vmul.f32 %v1124, %v1266
        %v1331 = vmul.f32 %v1128, %v1262
        %v1332 = vmul.f32 %v1128, %v1266
        %v1333 = vmul.f32 %v1132, %v1262
        %v1334 = vmul.f32 %v1132, %v1266
        %v1335 = vmul.f32 %v1136, %v1262
        %v1336 = vmul.f32 %v1136, %v1266
        %v1337 = vmul.f32 %v1140, %v1262
        %v1338 = vmul.f32 %v1140, %v1266
        %v1339 = vmul.f32 %v1144, %v1262
        %v1340 = vmul.f32 %v1144, %v1266
        %v1341 = vmul.f32 %v1148, %v1262
        %v1342 = vmul.f32 %v1148, %v1266
        %v1343 = vmul.f32 %v1152, %v1262
        %v1344 = vmul.f32 %v1152, %v1266
        %v1345 = vmul.f32 %v1156, %v1262
        %v1346 = vmul.f32 %v1156, %v1266
        %v1347 = vmul.f32 %v1160, %v1262
        %v1348 = vmul.f32 %v1160, %v1266
        %v1349 = vmul.f32 %v1164, %v1262
        %v1350 = vmul.f32 %v1164, %v1266
        %v1351 = vmul.f32 %v1168, %v1262
        %v1352 = vmul.f32 %v1168, %v1266
        %v1353 = vmul.f32 %v1172, %v1262
        %v1354 = vmul.f32 %v1172, %v1266
        %v1355 = vmul.f32 %v1176, %v1262
        %v1356 = vmul.f32 %v1176, %v1266
        %v1357 = vmul.f32 %v1180, %v1262
        %v1358 = vmul.f32 %v1180, %v1266
        %v1359 = vmul.f32 %v1184, %v1262
        %v1360 = vmul.f32 %v1184, %v1266
        %v1361 = vmul.f32 %v1188, %v1262
        %v1362 = vmul.f32 %v1188, %v1266
        %v1363 = vmul.f32 %v1192, %v1262
        %v1364 = vmul.f32 %v1192, %v1266
        %v1365 = vmul.f32 %v1196, %v1262
        %v1366 = vmul.f32 %v1196, %v1266
        %v1367 = vmul.f32 %v1200, %v1262
        %v1368 = vmul.f32 %v1200, %v1266
        %v1369 = vmul.f32 %v1204, %v1262
        %v1370 = vmul.f32 %v1204, %v1266
        %v1371 = vmul.f32 %v1208, %v1262
        %v1372 = vmul.f32 %v1208, %v1266
        %v1373 = vmul.f32 %v1212, %v1262
        %v1374 = vmul.f32 %v1212, %v1266
        %v1375 = vmul.f32 %v1216, %v1262
        %v1376 = vmul.f32 %v1216, %v1266
        %v1377 = vmul.f32 %v1220, %v1262
        %v1378 = vmul.f32 %v1220, %v1266
        %v1379 = vmul.f32 %v1224, %v1262
        %v1380 = vmul.f32 %v1224, %v1266
        %v1381 = vmul.f32 %v1228, %v1262
        %v1382 = vmul.f32 %v1228, %v1266
        %v1383 = vmul.f32 %v1232, %v1262
        %v1384 = vmul.f32 %v1232, %v1266
        %v1385 = vmul.f32 %v1236, %v1262
        %v1386 = vmul.f32 %v1236, %v1266
        %v1387 = vmul.f32 %v1240, %v1262
        %v1388 = vmul.f32 %v1240, %v1266
        %v1389 = vmul.f32 %v1244, %v1262
        %v1390 = vmul.f32 %v1244, %v1266
        %v1391 = vmul.f32 %v1248, %v1262
        %v1392 = vmul.f32 %v1248, %v1266
        %v1393 = vmul.f32 %v1252, %v1262
        %v1394 = vmul.f32 %v1252, %v1266
        %v1395 = vmul.f32 %v1256, %v1262
        %v1396 = vmul.f32 %v1256, %v1266
        %v1397 = vadd.f32 %v872, %v1269
        %v1398 = vadd.f32 %v873, %v1270
        %v1399 = vadd.f32 %v874, %v1271
        %v1400 = vadd.f32 %v875, %v1272
        %v1401 = vadd.f32 %v876, %v1273
        %v1402 = vadd.f32 %v877, %v1274
        %v1403 = vadd.f32 %v878, %v1275
        %v1404 = vadd.f32 %v879, %v1276
        %v1405 = vadd.f32 %v880, %v1277
        %v1406 = vadd.f32 %v881, %v1278
        %v1407 = vadd.f32 %v882, %v1279
        %v1408 = vadd.f32 %v883, %v1280
        %v1409 = vadd.f32 %v884, %v1281
        %v1410 = vadd.f32 %v885, %v1282
        %v1411 = vadd.f32 %v886, %v1283
        %v1412 = vadd.f32 %v887, %v1284
        %v1413 = vadd.f32 %v888, %v1285
        %v1414 = vadd.f32 %v889, %v1286
        %v1415 = vadd.f32 %v890, %v1287
        %v1416 = vadd.f32 %v891, %v1288
        %v1417 = vadd.f32 %v892, %v1289
        %v1418 = vadd.f32 %v893, %v1290
        %v1419 = vadd.f32 %v894, %v1291
        %v1420 = vadd.f32 %v895, %v1292
        %v1421 = vadd.f32 %v896, %v1293
        %v1422 = vadd.f32 %v897, %v1294
        %v1423 = vadd.f32 %v898, %v1295
        %v1424 = vadd.f32 %v899, %v1296
        %v1425 = vadd.f32 %v900, %v1297
        %v1426 = vadd.f32 %v901, %v1298
        %v1427 = vadd.f32 %v902, %v1299
        %v1428 = vadd.f32 %v903, %v1300
        %v1429 = vadd.f32 %v904, %v1301
        %v1430 = vadd.f32 %v905, %v1302
        %v1431 = vadd.f32 %v906, %v1303
        %v1432 = vadd.f32 %v907, %v1304
        %v1433 = vadd.f32 %v908, %v1305
        %v1434 = vadd.f32 %v909, %v1306
        %v1435 = vadd.f32 %v910, %v1307
        %v1436 = vadd.f32 %v911, %v1308
        %v1437 = vadd.f32 %v912, %v1309
        %v1438 = vadd.f32 %v913, %v1310
        %v1439 = vadd.f32 %v914, %v1311
        %v1440 = vadd.f32 %v915, %v1312
        %v1441 = vadd.f32 %v916, %v1313
        %v1442 = vadd.f32 %v917, %v1314
        %v1443 = vadd.f32 %v918, %v1315
        %v1444 = vadd.f32 %v919, %v1316
        %v1445 = vadd.f32 %v920, %v1317
        %v1446 = vadd.f32 %v921, %v1318
        %v1447 = vadd.f32 %v922, %v1319
        %v1448 = vadd.f32 %v923, %v1320
        %v1449 = vadd.f32 %v924, %v1321
        %v1450 = vadd.f32 %v925, %v1322
        %v1451 = vadd.f32 %v926, %v1323
        %v1452 = vadd.f32 %v927, %v1324
        %v1453 = vadd.f32 %v928, %v1325
        %v1454 = vadd.f32 %v929, %v1326
        %v1455 = vadd.f32 %v930, %v1327
        %v1456 = vadd.f32 %v931, %v1328
        %v1457 = vadd.f32 %v932, %v1329
        %v1458 = vadd.f32 %v933, %v1330
        %v1459 = vadd.f32 %v934, %v1331
        %v1460 = vadd.f32 %v935, %v1332
        %v1461 = vadd.f32 %v936, %v1333
        %v1462 = vadd.f32 %v937, %v1334
        %v1463 = vadd.f32 %v938, %v1335
        %v1464 = vadd.f32 %v939, %v1336
        %v1465 = vadd.f32 %v940, %v1337
        %v1466 = vadd.f32 %v941, %v1338
        %v1467 = vadd.f32 %v942, %v1339
        %v1468 = vadd.f32 %v943, %v1340
        %v1469 = vadd.f32 %v944, %v1341
        %v1470 = vadd.f32 %v945, %v1342
        %v1471 = vadd.f32 %v946, %v1343
        %v1472 = vadd.f32 %v947, %v1344
        %v1473 = vadd.f32 %v948, %v1345
        %v1474 = vadd.f32 %v949, %v1346
        %v1475 = vadd.f32 %v950, %v1347
        %v1476 = vadd.f32 %v951, %v1348
        %v1477 = vadd.f32 %v952, %v1349
        %v1478 = vadd.f32 %v953, %v1350
        %v1479 = vadd.f32 %v954, %v1351
        %v1480 = vadd.f32 %v955, %v1352
        %v1481 = vadd.f32 %v956, %v1353
        %v1482 = vadd.f32 %v957, %v1354
        %v1483 = vadd.f32 %v958, %v1355
        %v1484 = vadd.f32 %v959, %v1356
        %v1485 = vadd.f32 %v960, %v1357
        %v1486 = vadd.f32 %v961, %v1358
        %v1487 = vadd.f32 %v962, %v1359
        %v1488 = vadd.f32 %v963, %v1360
        %v1489 = vadd.f32 %v964, %v1361
        %v1490 = vadd.f32 %v965, %v1362
        %v1491 = vadd.f32 %v966, %v1363
        %v1492 = vadd.f32 %v967, %v1364
        %v1493 = vadd.f32 %v968, %v1365
        %v1494 = vadd.f32 %v969, %v1366
        %v1495 = vadd.f32 %v970, %v1367
        %v1496 = vadd.f32 %v971, %v1368
        %v1497 = vadd.f32 %v972, %v1369
        %v1498 = vadd.f32 %v973, %v1370
        %v1499 = vadd.f32 %v974, %v1371
        %v1500 = vadd.f32 %v975, %v1372
        %v1501 = vadd.f32 %v976, %v1373
        %v1502 = vadd.f32 %v977, %v1374
        %v1503 = vadd.f32 %v978, %v1375
        %v1504 = vadd.f32 %v979, %v1376
        %v1505 = vadd.f32 %v980, %v1377
        %v1506 = vadd.f32 %v981, %v1378
        %v1507 = vadd.f32 %v982, %v1379
        %v1508 = vadd.f32 %v983, %v1380
        %v1509 = vadd.f32 %v984, %v1381
        %v1510 = vadd.f32 %v985, %v1382
        %v1511 = vadd.f32 %v986, %v1383
        %v1512 = vadd.f32 %v987, %v1384
        %v1513 = vadd.f32 %v988, %v1385
        %v1514 = vadd.f32 %v989, %v1386
        %v1515 = vadd.f32 %v990, %v1387
        %v1516 = vadd.f32 %v991, %v1388
        %v1517 = vadd.f32 %v992, %v1389
        %v1518 = vadd.f32 %v993, %v1390
        %v1519 = vadd.f32 %v994, %v1391
        %v1520 = vadd.f32 %v995, %v1392
        %v1521 = vadd.f32 %v996, %v1393
        %v1522 = vadd.f32 %v997, %v1394
        %v1523 = vadd.f32 %v998, %v1395
        %v1524 = vadd.f32 %v999, %v1396
        %s1525 = scalar_lea.vmem %s1, 2
        %v1526 = vld [vmem:[%s1525] ss:$4 sm:$0x3]
        %1527 = vset.pattern.permute.xlu0 2
        %1528 = vperm.xlu0 %1527, %v476
        %v1529 = vpop.permute.xlu0 %1528
        %1531 = vset.pattern.permute.xlu0 2
        %1532 = vperm.xlu0 %1531, %v477
        %v1533 = vpop.permute.xlu0 %1532
        %1535 = vset.pattern.permute.xlu0 2
        %1536 = vperm.xlu0 %1535, %v478
        %v1537 = vpop.permute.xlu0 %1536
        %1539 = vset.pattern.permute.xlu0 2
        %1540 = vperm.xlu0 %1539, %v479
        %v1541 = vpop.permute.xlu0 %1540
        %1543 = vset.pattern.permute.xlu0 2
        %1544 = vperm.xlu0 %1543, %v480
        %v1545 = vpop.permute.xlu0 %1544
        %1547 = vset.pattern.permute.xlu0 2
        %1548 = vperm.xlu0 %1547, %v481
        %v1549 = vpop.permute.xlu0 %1548
        %1551 = vset.pattern.permute.xlu0 2
        %1552 = vperm.xlu0 %1551, %v482
        %v1553 = vpop.permute.xlu0 %1552
        %1555 = vset.pattern.permute.xlu0 2
        %1556 = vperm.xlu0 %1555, %v483
        %v1557 = vpop.permute.xlu0 %1556
        %1559 = vset.pattern.permute.xlu0 2
        %1560 = vperm.xlu0 %1559, %v484
        %v1561 = vpop.permute.xlu0 %1560
        %1563 = vset.pattern.permute.xlu0 2
        %1564 = vperm.xlu0 %1563, %v485
        %v1565 = vpop.permute.xlu0 %1564
        %1567 = vset.pattern.permute.xlu0 2
        %1568 = vperm.xlu0 %1567, %v486
        %v1569 = vpop.permute.xlu0 %1568
        %1571 = vset.pattern.permute.xlu0 2
        %1572 = vperm.xlu0 %1571, %v487
        %v1573 = vpop.permute.xlu0 %1572
        %1575 = vset.pattern.permute.xlu0 2
        %1576 = vperm.xlu0 %1575, %v488
        %v1577 = vpop.permute.xlu0 %1576
        %1579 = vset.pattern.permute.xlu0 2
        %1580 = vperm.xlu0 %1579, %v489
        %v1581 = vpop.permute.xlu0 %1580
        %1583 = vset.pattern.permute.xlu0 2
        %1584 = vperm.xlu0 %1583, %v490
        %v1585 = vpop.permute.xlu0 %1584
        %1587 = vset.pattern.permute.xlu0 2
        %1588 = vperm.xlu0 %1587, %v491
        %v1589 = vpop.permute.xlu0 %1588
        %1591 = vset.pattern.permute.xlu0 2
        %1592 = vperm.xlu0 %1591, %v492
        %v1593 = vpop.permute.xlu0 %1592
        %1595 = vset.pattern.permute.xlu0 2
        %1596 = vperm.xlu0 %1595, %v493
        %v1597 = vpop.permute.xlu0 %1596
        %1599 = vset.pattern.permute.xlu0 2
        %1600 = vperm.xlu0 %1599, %v494
        %v1601 = vpop.permute.xlu0 %1600
        %1603 = vset.pattern.permute.xlu0 2
        %1604 = vperm.xlu0 %1603, %v495
        %v1605 = vpop.permute.xlu0 %1604
        %1607 = vset.pattern.permute.xlu0 2
        %1608 = vperm.xlu0 %1607, %v496
        %v1609 = vpop.permute.xlu0 %1608
        %1611 = vset.pattern.permute.xlu0 2
        %1612 = vperm.xlu0 %1611, %v497
        %v1613 = vpop.permute.xlu0 %1612
        %1615 = vset.pattern.permute.xlu0 2
        %1616 = vperm.xlu0 %1615, %v498
        %v1617 = vpop.permute.xlu0 %1616
        %1619 = vset.pattern.permute.xlu0 2
        %1620 = vperm.xlu0 %1619, %v499
        %v1621 = vpop.permute.xlu0 %1620
        %1623 = vset.pattern.permute.xlu0 2
        %1624 = vperm.xlu0 %1623, %v500
        %v1625 = vpop.permute.xlu0 %1624
        %1627 = vset.pattern.permute.xlu0 2
        %1628 = vperm.xlu0 %1627, %v501
        %v1629 = vpop.permute.xlu0 %1628
        %1631 = vset.pattern.permute.xlu0 2
        %1632 = vperm.xlu0 %1631, %v502
        %v1633 = vpop.permute.xlu0 %1632
        %1635 = vset.pattern.permute.xlu0 2
        %1636 = vperm.xlu0 %1635, %v503
        %v1637 = vpop.permute.xlu0 %1636
        %1639 = vset.pattern.permute.xlu0 2
        %1640 = vperm.xlu0 %1639, %v504
        %v1641 = vpop.permute.xlu0 %1640
        %1643 = vset.pattern.permute.xlu0 2
        %1644 = vperm.xlu0 %1643, %v505
        %v1645 = vpop.permute.xlu0 %1644
        %1647 = vset.pattern.permute.xlu0 2
        %1648 = vperm.xlu0 %1647, %v506
        %v1649 = vpop.permute.xlu0 %1648
        %1651 = vset.pattern.permute.xlu0 2
        %1652 = vperm.xlu0 %1651, %v507
        %v1653 = vpop.permute.xlu0 %1652
        %1655 = vset.pattern.permute.xlu0 2
        %1656 = vperm.xlu0 %1655, %v508
        %v1657 = vpop.permute.xlu0 %1656
        %1659 = vset.pattern.permute.xlu0 2
        %1660 = vperm.xlu0 %1659, %v509
        %v1661 = vpop.permute.xlu0 %1660
        %1663 = vset.pattern.permute.xlu0 2
        %1664 = vperm.xlu0 %1663, %v510
        %v1665 = vpop.permute.xlu0 %1664
        %1667 = vset.pattern.permute.xlu0 2
        %1668 = vperm.xlu0 %1667, %v511
        %v1669 = vpop.permute.xlu0 %1668
        %1671 = vset.pattern.permute.xlu0 2
        %1672 = vperm.xlu0 %1671, %v512
        %v1673 = vpop.permute.xlu0 %1672
        %1675 = vset.pattern.permute.xlu0 2
        %1676 = vperm.xlu0 %1675, %v513
        %v1677 = vpop.permute.xlu0 %1676
        %1679 = vset.pattern.permute.xlu0 2
        %1680 = vperm.xlu0 %1679, %v514
        %v1681 = vpop.permute.xlu0 %1680
        %1683 = vset.pattern.permute.xlu0 2
        %1684 = vperm.xlu0 %1683, %v515
        %v1685 = vpop.permute.xlu0 %1684
        %1687 = vset.pattern.permute.xlu0 2
        %1688 = vperm.xlu0 %1687, %v516
        %v1689 = vpop.permute.xlu0 %1688
        %1691 = vset.pattern.permute.xlu0 2
        %1692 = vperm.xlu0 %1691, %v517
        %v1693 = vpop.permute.xlu0 %1692
        %1695 = vset.pattern.permute.xlu0 2
        %1696 = vperm.xlu0 %1695, %v518
        %v1697 = vpop.permute.xlu0 %1696
        %1699 = vset.pattern.permute.xlu0 2
        %1700 = vperm.xlu0 %1699, %v519
        %v1701 = vpop.permute.xlu0 %1700
        %1703 = vset.pattern.permute.xlu0 2
        %1704 = vperm.xlu0 %1703, %v520
        %v1705 = vpop.permute.xlu0 %1704
        %1707 = vset.pattern.permute.xlu0 2
        %1708 = vperm.xlu0 %1707, %v521
        %v1709 = vpop.permute.xlu0 %1708
        %1711 = vset.pattern.permute.xlu0 2
        %1712 = vperm.xlu0 %1711, %v522
        %v1713 = vpop.permute.xlu0 %1712
        %1715 = vset.pattern.permute.xlu0 2
        %1716 = vperm.xlu0 %1715, %v523
        %v1717 = vpop.permute.xlu0 %1716
        %1719 = vset.pattern.permute.xlu0 2
        %1720 = vperm.xlu0 %1719, %v524
        %v1721 = vpop.permute.xlu0 %1720
        %1723 = vset.pattern.permute.xlu0 2
        %1724 = vperm.xlu0 %1723, %v525
        %v1725 = vpop.permute.xlu0 %1724
        %1727 = vset.pattern.permute.xlu0 2
        %1728 = vperm.xlu0 %1727, %v526
        %v1729 = vpop.permute.xlu0 %1728
        %1731 = vset.pattern.permute.xlu0 2
        %1732 = vperm.xlu0 %1731, %v527
        %v1733 = vpop.permute.xlu0 %1732
        %1735 = vset.pattern.permute.xlu0 2
        %1736 = vperm.xlu0 %1735, %v528
        %v1737 = vpop.permute.xlu0 %1736
        %1739 = vset.pattern.permute.xlu0 2
        %1740 = vperm.xlu0 %1739, %v529
        %v1741 = vpop.permute.xlu0 %1740
        %1743 = vset.pattern.permute.xlu0 2
        %1744 = vperm.xlu0 %1743, %v530
        %v1745 = vpop.permute.xlu0 %1744
        %1747 = vset.pattern.permute.xlu0 2
        %1748 = vperm.xlu0 %1747, %v531
        %v1749 = vpop.permute.xlu0 %1748
        %1751 = vset.pattern.permute.xlu0 2
        %1752 = vperm.xlu0 %1751, %v532
        %v1753 = vpop.permute.xlu0 %1752
        %1755 = vset.pattern.permute.xlu0 2
        %1756 = vperm.xlu0 %1755, %v533
        %v1757 = vpop.permute.xlu0 %1756
        %1759 = vset.pattern.permute.xlu0 2
        %1760 = vperm.xlu0 %1759, %v534
        %v1761 = vpop.permute.xlu0 %1760
        %1763 = vset.pattern.permute.xlu0 2
        %1764 = vperm.xlu0 %1763, %v535
        %v1765 = vpop.permute.xlu0 %1764
        %1767 = vset.pattern.permute.xlu0 2
        %1768 = vperm.xlu0 %1767, %v536
        %v1769 = vpop.permute.xlu0 %1768
        %1771 = vset.pattern.permute.xlu0 2
        %1772 = vperm.xlu0 %1771, %v537
        %v1773 = vpop.permute.xlu0 %1772
        %1775 = vset.pattern.permute.xlu0 2
        %1776 = vperm.xlu0 %1775, %v538
        %v1777 = vpop.permute.xlu0 %1776
        %1779 = vset.pattern.permute.xlu0 2
        %1780 = vperm.xlu0 %1779, %v539
        %v1781 = vpop.permute.xlu0 %1780
        %v1784 = vlaneseq
        %v1785 = vshrl.u32 %v1784, 7
        %v1786 = vsub.s32 0, %v1785
        %v1787 = vrot.slane %v1526, %v1786
        %v1788 = vlaneseq
        %v1789 = vshrl.u32 %v1788, 7
        %v1790 = vsub.s32 1, %v1789
        %v1791 = vrot.slane %v1526, %v1790
        %v1794 = vmul.f32 %v1529, %v1787
        %v1795 = vmul.f32 %v1529, %v1791
        %v1796 = vmul.f32 %v1533, %v1787
        %v1797 = vmul.f32 %v1533, %v1791
        %v1798 = vmul.f32 %v1537, %v1787
        %v1799 = vmul.f32 %v1537, %v1791
        %v1800 = vmul.f32 %v1541, %v1787
        %v1801 = vmul.f32 %v1541, %v1791
        %v1802 = vmul.f32 %v1545, %v1787
        %v1803 = vmul.f32 %v1545, %v1791
        %v1804 = vmul.f32 %v1549, %v1787
        %v1805 = vmul.f32 %v1549, %v1791
        %v1806 = vmul.f32 %v1553, %v1787
        %v1807 = vmul.f32 %v1553, %v1791
        %v1808 = vmul.f32 %v1557, %v1787
        %v1809 = vmul.f32 %v1557, %v1791
        %v1810 = vmul.f32 %v1561, %v1787
        %v1811 = vmul.f32 %v1561, %v1791
        %v1812 = vmul.f32 %v1565, %v1787
        %v1813 = vmul.f32 %v1565, %v1791
        %v1814 = vmul.f32 %v1569, %v1787
        %v1815 = vmul.f32 %v1569, %v1791
        %v1816 = vmul.f32 %v1573, %v1787
        %v1817 = vmul.f32 %v1573, %v1791
        %v1818 = vmul.f32 %v1577, %v1787
        %v1819 = vmul.f32 %v1577, %v1791
        %v1820 = vmul.f32 %v1581, %v1787
        %v1821 = vmul.f32 %v1581, %v1791
        %v1822 = vmul.f32 %v1585, %v1787
        %v1823 = vmul.f32 %v1585, %v1791
        %v1824 = vmul.f32 %v1589, %v1787
        %v1825 = vmul.f32 %v1589, %v1791
        %v1826 = vmul.f32 %v1593, %v1787
        %v1827 = vmul.f32 %v1593, %v1791
        %v1828 = vmul.f32 %v1597, %v1787
        %v1829 = vmul.f32 %v1597, %v1791
        %v1830 = vmul.f32 %v1601, %v1787
        %v1831 = vmul.f32 %v1601, %v1791
        %v1832 = vmul.f32 %v1605, %v1787
        %v1833 = vmul.f32 %v1605, %v1791
        %v1834 = vmul.f32 %v1609, %v1787
        %v1835 = vmul.f32 %v1609, %v1791
        %v1836 = vmul.f32 %v1613, %v1787
        %v1837 = vmul.f32 %v1613, %v1791
        %v1838 = vmul.f32 %v1617, %v1787
        %v1839 = vmul.f32 %v1617, %v1791
        %v1840 = vmul.f32 %v1621, %v1787
        %v1841 = vmul.f32 %v1621, %v1791
        %v1842 = vmul.f32 %v1625, %v1787
        %v1843 = vmul.f32 %v1625, %v1791
        %v1844 = vmul.f32 %v1629, %v1787
        %v1845 = vmul.f32 %v1629, %v1791
        %v1846 = vmul.f32 %v1633, %v1787
        %v1847 = vmul.f32 %v1633, %v1791
        %v1848 = vmul.f32 %v1637, %v1787
        %v1849 = vmul.f32 %v1637, %v1791
        %v1850 = vmul.f32 %v1641, %v1787
        %v1851 = vmul.f32 %v1641, %v1791
        %v1852 = vmul.f32 %v1645, %v1787
        %v1853 = vmul.f32 %v1645, %v1791
        %v1854 = vmul.f32 %v1649, %v1787
        %v1855 = vmul.f32 %v1649, %v1791
        %v1856 = vmul.f32 %v1653, %v1787
        %v1857 = vmul.f32 %v1653, %v1791
        %v1858 = vmul.f32 %v1657, %v1787
        %v1859 = vmul.f32 %v1657, %v1791
        %v1860 = vmul.f32 %v1661, %v1787
        %v1861 = vmul.f32 %v1661, %v1791
        %v1862 = vmul.f32 %v1665, %v1787
        %v1863 = vmul.f32 %v1665, %v1791
        %v1864 = vmul.f32 %v1669, %v1787
        %v1865 = vmul.f32 %v1669, %v1791
        %v1866 = vmul.f32 %v1673, %v1787
        %v1867 = vmul.f32 %v1673, %v1791
        %v1868 = vmul.f32 %v1677, %v1787
        %v1869 = vmul.f32 %v1677, %v1791
        %v1870 = vmul.f32 %v1681, %v1787
        %v1871 = vmul.f32 %v1681, %v1791
        %v1872 = vmul.f32 %v1685, %v1787
        %v1873 = vmul.f32 %v1685, %v1791
        %v1874 = vmul.f32 %v1689, %v1787
        %v1875 = vmul.f32 %v1689, %v1791
        %v1876 = vmul.f32 %v1693, %v1787
        %v1877 = vmul.f32 %v1693, %v1791
        %v1878 = vmul.f32 %v1697, %v1787
        %v1879 = vmul.f32 %v1697, %v1791
        %v1880 = vmul.f32 %v1701, %v1787
        %v1881 = vmul.f32 %v1701, %v1791
        %v1882 = vmul.f32 %v1705, %v1787
        %v1883 = vmul.f32 %v1705, %v1791
        %v1884 = vmul.f32 %v1709, %v1787
        %v1885 = vmul.f32 %v1709, %v1791
        %v1886 = vmul.f32 %v1713, %v1787
        %v1887 = vmul.f32 %v1713, %v1791
        %v1888 = vmul.f32 %v1717, %v1787
        %v1889 = vmul.f32 %v1717, %v1791
        %v1890 = vmul.f32 %v1721, %v1787
        %v1891 = vmul.f32 %v1721, %v1791
        %v1892 = vmul.f32 %v1725, %v1787
        %v1893 = vmul.f32 %v1725, %v1791
        %v1894 = vmul.f32 %v1729, %v1787
        %v1895 = vmul.f32 %v1729, %v1791
        %v1896 = vmul.f32 %v1733, %v1787
        %v1897 = vmul.f32 %v1733, %v1791
        %v1898 = vmul.f32 %v1737, %v1787
        %v1899 = vmul.f32 %v1737, %v1791
        %v1900 = vmul.f32 %v1741, %v1787
        %v1901 = vmul.f32 %v1741, %v1791
        %v1902 = vmul.f32 %v1745, %v1787
        %v1903 = vmul.f32 %v1745, %v1791
        %v1904 = vmul.f32 %v1749, %v1787
        %v1905 = vmul.f32 %v1749, %v1791
        %v1906 = vmul.f32 %v1753, %v1787
        %v1907 = vmul.f32 %v1753, %v1791
        %v1908 = vmul.f32 %v1757, %v1787
        %v1909 = vmul.f32 %v1757, %v1791
        %v1910 = vmul.f32 %v1761, %v1787
        %v1911 = vmul.f32 %v1761, %v1791
        %v1912 = vmul.f32 %v1765, %v1787
        %v1913 = vmul.f32 %v1765, %v1791
        %v1914 = vmul.f32 %v1769, %v1787
        %v1915 = vmul.f32 %v1769, %v1791
        %v1916 = vmul.f32 %v1773, %v1787
        %v1917 = vmul.f32 %v1773, %v1791
        %v1918 = vmul.f32 %v1777, %v1787
        %v1919 = vmul.f32 %v1777, %v1791
        %v1920 = vmul.f32 %v1781, %v1787
        %v1921 = vmul.f32 %v1781, %v1791
        %v1922 = vadd.f32 %v1397, %v1794
        %v1923 = vadd.f32 %v1398, %v1795
        %v1924 = vadd.f32 %v1399, %v1796
        %v1925 = vadd.f32 %v1400, %v1797
        %v1926 = vadd.f32 %v1401, %v1798
        %v1927 = vadd.f32 %v1402, %v1799
        %v1928 = vadd.f32 %v1403, %v1800
        %v1929 = vadd.f32 %v1404, %v1801
        %v1930 = vadd.f32 %v1405, %v1802
        %v1931 = vadd.f32 %v1406, %v1803
        %v1932 = vadd.f32 %v1407, %v1804
        %v1933 = vadd.f32 %v1408, %v1805
        %v1934 = vadd.f32 %v1409, %v1806
        %v1935 = vadd.f32 %v1410, %v1807
        %v1936 = vadd.f32 %v1411, %v1808
        %v1937 = vadd.f32 %v1412, %v1809
        %v1938 = vadd.f32 %v1413, %v1810
        %v1939 = vadd.f32 %v1414, %v1811
        %v1940 = vadd.f32 %v1415, %v1812
        %v1941 = vadd.f32 %v1416, %v1813
        %v1942 = vadd.f32 %v1417, %v1814
        %v1943 = vadd.f32 %v1418, %v1815
        %v1944 = vadd.f32 %v1419, %v1816
        %v1945 = vadd.f32 %v1420, %v1817
        %v1946 = vadd.f32 %v1421, %v1818
        %v1947 = vadd.f32 %v1422, %v1819
        %v1948 = vadd.f32 %v1423, %v1820
        %v1949 = vadd.f32 %v1424, %v1821
        %v1950 = vadd.f32 %v1425, %v1822
        %v1951 = vadd.f32 %v1426, %v1823
        %v1952 = vadd.f32 %v1427, %v1824
        %v1953 = vadd.f32 %v1428, %v1825
        %v1954 = vadd.f32 %v1429, %v1826
        %v1955 = vadd.f32 %v1430, %v1827
        %v1956 = vadd.f32 %v1431, %v1828
        %v1957 = vadd.f32 %v1432, %v1829
        %v1958 = vadd.f32 %v1433, %v1830
        %v1959 = vadd.f32 %v1434, %v1831
        %v1960 = vadd.f32 %v1435, %v1832
        %v1961 = vadd.f32 %v1436, %v1833
        %v1962 = vadd.f32 %v1437, %v1834
        %v1963 = vadd.f32 %v1438, %v1835
        %v1964 = vadd.f32 %v1439, %v1836
        %v1965 = vadd.f32 %v1440, %v1837
        %v1966 = vadd.f32 %v1441, %v1838
        %v1967 = vadd.f32 %v1442, %v1839
        %v1968 = vadd.f32 %v1443, %v1840
        %v1969 = vadd.f32 %v1444, %v1841
        %v1970 = vadd.f32 %v1445, %v1842
        %v1971 = vadd.f32 %v1446, %v1843
        %v1972 = vadd.f32 %v1447, %v1844
        %v1973 = vadd.f32 %v1448, %v1845
        %v1974 = vadd.f32 %v1449, %v1846
        %v1975 = vadd.f32 %v1450, %v1847
        %v1976 = vadd.f32 %v1451, %v1848
        %v1977 = vadd.f32 %v1452, %v1849
        %v1978 = vadd.f32 %v1453, %v1850
        %v1979 = vadd.f32 %v1454, %v1851
        %v1980 = vadd.f32 %v1455, %v1852
        %v1981 = vadd.f32 %v1456, %v1853
        %v1982 = vadd.f32 %v1457, %v1854
        %v1983 = vadd.f32 %v1458, %v1855
        %v1984 = vadd.f32 %v1459, %v1856
        %v1985 = vadd.f32 %v1460, %v1857
        %v1986 = vadd.f32 %v1461, %v1858
        %v1987 = vadd.f32 %v1462, %v1859
        %v1988 = vadd.f32 %v1463, %v1860
        %v1989 = vadd.f32 %v1464, %v1861
        %v1990 = vadd.f32 %v1465, %v1862
        %v1991 = vadd.f32 %v1466, %v1863
        %v1992 = vadd.f32 %v1467, %v1864
        %v1993 = vadd.f32 %v1468, %v1865
        %v1994 = vadd.f32 %v1469, %v1866
        %v1995 = vadd.f32 %v1470, %v1867
        %v1996 = vadd.f32 %v1471, %v1868
        %v1997 = vadd.f32 %v1472, %v1869
        %v1998 = vadd.f32 %v1473, %v1870
        %v1999 = vadd.f32 %v1474, %v1871
        %v2000 = vadd.f32 %v1475, %v1872
        %v2001 = vadd.f32 %v1476, %v1873
        %v2002 = vadd.f32 %v1477, %v1874
        %v2003 = vadd.f32 %v1478, %v1875
        %v2004 = vadd.f32 %v1479, %v1876
        %v2005 = vadd.f32 %v1480, %v1877
        %v2006 = vadd.f32 %v1481, %v1878
        %v2007 = vadd.f32 %v1482, %v1879
        %v2008 = vadd.f32 %v1483, %v1880
        %v2009 = vadd.f32 %v1484, %v1881
        %v2010 = vadd.f32 %v1485, %v1882
        %v2011 = vadd.f32 %v1486, %v1883
        %v2012 = vadd.f32 %v1487, %v1884
        %v2013 = vadd.f32 %v1488, %v1885
        %v2014 = vadd.f32 %v1489, %v1886
        %v2015 = vadd.f32 %v1490, %v1887
        %v2016 = vadd.f32 %v1491, %v1888
        %v2017 = vadd.f32 %v1492, %v1889
        %v2018 = vadd.f32 %v1493, %v1890
        %v2019 = vadd.f32 %v1494, %v1891
        %v2020 = vadd.f32 %v1495, %v1892
        %v2021 = vadd.f32 %v1496, %v1893
        %v2022 = vadd.f32 %v1497, %v1894
        %v2023 = vadd.f32 %v1498, %v1895
        %v2024 = vadd.f32 %v1499, %v1896
        %v2025 = vadd.f32 %v1500, %v1897
        %v2026 = vadd.f32 %v1501, %v1898
        %v2027 = vadd.f32 %v1502, %v1899
        %v2028 = vadd.f32 %v1503, %v1900
        %v2029 = vadd.f32 %v1504, %v1901
        %v2030 = vadd.f32 %v1505, %v1902
        %v2031 = vadd.f32 %v1506, %v1903
        %v2032 = vadd.f32 %v1507, %v1904
        %v2033 = vadd.f32 %v1508, %v1905
        %v2034 = vadd.f32 %v1509, %v1906
        %v2035 = vadd.f32 %v1510, %v1907
        %v2036 = vadd.f32 %v1511, %v1908
        %v2037 = vadd.f32 %v1512, %v1909
        %v2038 = vadd.f32 %v1513, %v1910
        %v2039 = vadd.f32 %v1514, %v1911
        %v2040 = vadd.f32 %v1515, %v1912
        %v2041 = vadd.f32 %v1516, %v1913
        %v2042 = vadd.f32 %v1517, %v1914
        %v2043 = vadd.f32 %v1518, %v1915
        %v2044 = vadd.f32 %v1519, %v1916
        %v2045 = vadd.f32 %v1520, %v1917
        %v2046 = vadd.f32 %v1521, %v1918
        %v2047 = vadd.f32 %v1522, %v1919
        %v2048 = vadd.f32 %v1523, %v1920
        %v2049 = vadd.f32 %v1524, %v1921
        %v2050 = vld [vmem:[%s2] sm:$0x3]
        %v2052 = vlaneseq
        %v2053 = vshrl.u32 %v2052, 7
        %v2054 = vsub.s32 0, %v2053
        %v2055 = vrot.slane %v2050, %v2054
        %v2056 = vlaneseq
        %v2057 = vshrl.u32 %v2056, 7
        %v2058 = vsub.s32 1, %v2057
        %v2059 = vrot.slane %v2050, %v2058
        %v2062 = vadd.f32 %v1922, %v2055
        %v2063 = vadd.f32 %v1923, %v2059
        %v2064 = vadd.f32 %v1924, %v2055
        %v2065 = vadd.f32 %v1925, %v2059
        %v2066 = vadd.f32 %v1926, %v2055
        %v2067 = vadd.f32 %v1927, %v2059
        %v2068 = vadd.f32 %v1928, %v2055
        %v2069 = vadd.f32 %v1929, %v2059
        %v2070 = vadd.f32 %v1930, %v2055
        %v2071 = vadd.f32 %v1931, %v2059
        %v2072 = vadd.f32 %v1932, %v2055
        %v2073 = vadd.f32 %v1933, %v2059
        %v2074 = vadd.f32 %v1934, %v2055
        %v2075 = vadd.f32 %v1935, %v2059
        %v2076 = vadd.f32 %v1936, %v2055
        %v2077 = vadd.f32 %v1937, %v2059
        %v2078 = vadd.f32 %v1938, %v2055
        %v2079 = vadd.f32 %v1939, %v2059
        %v2080 = vadd.f32 %v1940, %v2055
        %v2081 = vadd.f32 %v1941, %v2059
        %v2082 = vadd.f32 %v1942, %v2055
        %v2083 = vadd.f32 %v1943, %v2059
        %v2084 = vadd.f32 %v1944, %v2055
        %v2085 = vadd.f32 %v1945, %v2059
        %v2086 = vadd.f32 %v1946, %v2055
        %v2087 = vadd.f32 %v1947, %v2059
        %v2088 = vadd.f32 %v1948, %v2055
        %v2089 = vadd.f32 %v1949, %v2059
        %v2090 = vadd.f32 %v1950, %v2055
        %v2091 = vadd.f32 %v1951, %v2059
        %v2092 = vadd.f32 %v1952, %v2055
        %v2093 = vadd.f32 %v1953, %v2059
        %v2094 = vadd.f32 %v1954, %v2055
        %v2095 = vadd.f32 %v1955, %v2059
        %v2096 = vadd.f32 %v1956, %v2055
        %v2097 = vadd.f32 %v1957, %v2059
        %v2098 = vadd.f32 %v1958, %v2055
        %v2099 = vadd.f32 %v1959, %v2059
        %v2100 = vadd.f32 %v1960, %v2055
        %v2101 = vadd.f32 %v1961, %v2059
        %v2102 = vadd.f32 %v1962, %v2055
        %v2103 = vadd.f32 %v1963, %v2059
        %v2104 = vadd.f32 %v1964, %v2055
        %v2105 = vadd.f32 %v1965, %v2059
        %v2106 = vadd.f32 %v1966, %v2055
        %v2107 = vadd.f32 %v1967, %v2059
        %v2108 = vadd.f32 %v1968, %v2055
        %v2109 = vadd.f32 %v1969, %v2059
        %v2110 = vadd.f32 %v1970, %v2055
        %v2111 = vadd.f32 %v1971, %v2059
        %v2112 = vadd.f32 %v1972, %v2055
        %v2113 = vadd.f32 %v1973, %v2059
        %v2114 = vadd.f32 %v1974, %v2055
        %v2115 = vadd.f32 %v1975, %v2059
        %v2116 = vadd.f32 %v1976, %v2055
        %v2117 = vadd.f32 %v1977, %v2059
        %v2118 = vadd.f32 %v1978, %v2055
        %v2119 = vadd.f32 %v1979, %v2059
        %v2120 = vadd.f32 %v1980, %v2055
        %v2121 = vadd.f32 %v1981, %v2059
        %v2122 = vadd.f32 %v1982, %v2055
        %v2123 = vadd.f32 %v1983, %v2059
        %v2124 = vadd.f32 %v1984, %v2055
        %v2125 = vadd.f32 %v1985, %v2059
        %v2126 = vadd.f32 %v1986, %v2055
        %v2127 = vadd.f32 %v1987, %v2059
        %v2128 = vadd.f32 %v1988, %v2055
        %v2129 = vadd.f32 %v1989, %v2059
        %v2130 = vadd.f32 %v1990, %v2055
        %v2131 = vadd.f32 %v1991, %v2059
        %v2132 = vadd.f32 %v1992, %v2055
        %v2133 = vadd.f32 %v1993, %v2059
        %v2134 = vadd.f32 %v1994, %v2055
        %v2135 = vadd.f32 %v1995, %v2059
        %v2136 = vadd.f32 %v1996, %v2055
        %v2137 = vadd.f32 %v1997, %v2059
        %v2138 = vadd.f32 %v1998, %v2055
        %v2139 = vadd.f32 %v1999, %v2059
        %v2140 = vadd.f32 %v2000, %v2055
        %v2141 = vadd.f32 %v2001, %v2059
        %v2142 = vadd.f32 %v2002, %v2055
        %v2143 = vadd.f32 %v2003, %v2059
        %v2144 = vadd.f32 %v2004, %v2055
        %v2145 = vadd.f32 %v2005, %v2059
        %v2146 = vadd.f32 %v2006, %v2055
        %v2147 = vadd.f32 %v2007, %v2059
        %v2148 = vadd.f32 %v2008, %v2055
        %v2149 = vadd.f32 %v2009, %v2059
        %v2150 = vadd.f32 %v2010, %v2055
        %v2151 = vadd.f32 %v2011, %v2059
        %v2152 = vadd.f32 %v2012, %v2055
        %v2153 = vadd.f32 %v2013, %v2059
        %v2154 = vadd.f32 %v2014, %v2055
        %v2155 = vadd.f32 %v2015, %v2059
        %v2156 = vadd.f32 %v2016, %v2055
        %v2157 = vadd.f32 %v2017, %v2059
        %v2158 = vadd.f32 %v2018, %v2055
        %v2159 = vadd.f32 %v2019, %v2059
        %v2160 = vadd.f32 %v2020, %v2055
        %v2161 = vadd.f32 %v2021, %v2059
        %v2162 = vadd.f32 %v2022, %v2055
        %v2163 = vadd.f32 %v2023, %v2059
        %v2164 = vadd.f32 %v2024, %v2055
        %v2165 = vadd.f32 %v2025, %v2059
        %v2166 = vadd.f32 %v2026, %v2055
        %v2167 = vadd.f32 %v2027, %v2059
        %v2168 = vadd.f32 %v2028, %v2055
        %v2169 = vadd.f32 %v2029, %v2059
        %v2170 = vadd.f32 %v2030, %v2055
        %v2171 = vadd.f32 %v2031, %v2059
        %v2172 = vadd.f32 %v2032, %v2055
        %v2173 = vadd.f32 %v2033, %v2059
        %v2174 = vadd.f32 %v2034, %v2055
        %v2175 = vadd.f32 %v2035, %v2059
        %v2176 = vadd.f32 %v2036, %v2055
        %v2177 = vadd.f32 %v2037, %v2059
        %v2178 = vadd.f32 %v2038, %v2055
        %v2179 = vadd.f32 %v2039, %v2059
        %v2180 = vadd.f32 %v2040, %v2055
        %v2181 = vadd.f32 %v2041, %v2059
        %v2182 = vadd.f32 %v2042, %v2055
        %v2183 = vadd.f32 %v2043, %v2059
        %v2184 = vadd.f32 %v2044, %v2055
        %v2185 = vadd.f32 %v2045, %v2059
        %v2186 = vadd.f32 %v2046, %v2055
        %v2187 = vadd.f32 %v2047, %v2059
        %v2188 = vadd.f32 %v2048, %v2055
        %v2189 = vadd.f32 %v2049, %v2059
        %v2190 = vmax.f32 %v2062, 0.0
        %v2191 = vmax.f32 %v2063, 0.0
        %v2192 = vmax.f32 %v2064, 0.0
        %v2193 = vmax.f32 %v2065, 0.0
        %v2194 = vmax.f32 %v2066, 0.0
        %v2195 = vmax.f32 %v2067, 0.0
        %v2196 = vmax.f32 %v2068, 0.0
        %v2197 = vmax.f32 %v2069, 0.0
        %v2198 = vmax.f32 %v2070, 0.0
        %v2199 = vmax.f32 %v2071, 0.0
        %v2200 = vmax.f32 %v2072, 0.0
        %v2201 = vmax.f32 %v2073, 0.0
        %v2202 = vmax.f32 %v2074, 0.0
        %v2203 = vmax.f32 %v2075, 0.0
        %v2204 = vmax.f32 %v2076, 0.0
        %v2205 = vmax.f32 %v2077, 0.0
        %v2206 = vmax.f32 %v2078, 0.0
        %v2207 = vmax.f32 %v2079, 0.0
        %v2208 = vmax.f32 %v2080, 0.0
        %v2209 = vmax.f32 %v2081, 0.0
        %v2210 = vmax.f32 %v2082, 0.0
        %v2211 = vmax.f32 %v2083, 0.0
        %v2212 = vmax.f32 %v2084, 0.0
        %v2213 = vmax.f32 %v2085, 0.0
        %v2214 = vmax.f32 %v2086, 0.0
        %v2215 = vmax.f32 %v2087, 0.0
        %v2216 = vmax.f32 %v2088, 0.0
        %v2217 = vmax.f32 %v2089, 0.0
        %v2218 = vmax.f32 %v2090, 0.0
        %v2219 = vmax.f32 %v2091, 0.0
        %v2220 = vmax.f32 %v2092, 0.0
        %v2221 = vmax.f32 %v2093, 0.0
        %v2222 = vmax.f32 %v2094, 0.0
        %v2223 = vmax.f32 %v2095, 0.0
        %v2224 = vmax.f32 %v2096, 0.0
        %v2225 = vmax.f32 %v2097, 0.0
        %v2226 = vmax.f32 %v2098, 0.0
        %v2227 = vmax.f32 %v2099, 0.0
        %v2228 = vmax.f32 %v2100, 0.0
        %v2229 = vmax.f32 %v2101, 0.0
        %v2230 = vmax.f32 %v2102, 0.0
        %v2231 = vmax.f32 %v2103, 0.0
        %v2232 = vmax.f32 %v2104, 0.0
        %v2233 = vmax.f32 %v2105, 0.0
        %v2234 = vmax.f32 %v2106, 0.0
        %v2235 = vmax.f32 %v2107, 0.0
        %v2236 = vmax.f32 %v2108, 0.0
        %v2237 = vmax.f32 %v2109, 0.0
        %v2238 = vmax.f32 %v2110, 0.0
        %v2239 = vmax.f32 %v2111, 0.0
        %v2240 = vmax.f32 %v2112, 0.0
        %v2241 = vmax.f32 %v2113, 0.0
        %v2242 = vmax.f32 %v2114, 0.0
        %v2243 = vmax.f32 %v2115, 0.0
        %v2244 = vmax.f32 %v2116, 0.0
        %v2245 = vmax.f32 %v2117, 0.0
        %v2246 = vmax.f32 %v2118, 0.0
        %v2247 = vmax.f32 %v2119, 0.0
        %v2248 = vmax.f32 %v2120, 0.0
        %v2249 = vmax.f32 %v2121, 0.0
        %v2250 = vmax.f32 %v2122, 0.0
        %v2251 = vmax.f32 %v2123, 0.0
        %v2252 = vmax.f32 %v2124, 0.0
        %v2253 = vmax.f32 %v2125, 0.0
        %v2254 = vmax.f32 %v2126, 0.0
        %v2255 = vmax.f32 %v2127, 0.0
        %v2256 = vmax.f32 %v2128, 0.0
        %v2257 = vmax.f32 %v2129, 0.0
        %v2258 = vmax.f32 %v2130, 0.0
        %v2259 = vmax.f32 %v2131, 0.0
        %v2260 = vmax.f32 %v2132, 0.0
        %v2261 = vmax.f32 %v2133, 0.0
        %v2262 = vmax.f32 %v2134, 0.0
        %v2263 = vmax.f32 %v2135, 0.0
        %v2264 = vmax.f32 %v2136, 0.0
        %v2265 = vmax.f32 %v2137, 0.0
        %v2266 = vmax.f32 %v2138, 0.0
        %v2267 = vmax.f32 %v2139, 0.0
        %v2268 = vmax.f32 %v2140, 0.0
        %v2269 = vmax.f32 %v2141, 0.0
        %v2270 = vmax.f32 %v2142, 0.0
        %v2271 = vmax.f32 %v2143, 0.0
        %v2272 = vmax.f32 %v2144, 0.0
        %v2273 = vmax.f32 %v2145, 0.0
        %v2274 = vmax.f32 %v2146, 0.0
        %v2275 = vmax.f32 %v2147, 0.0
        %v2276 = vmax.f32 %v2148, 0.0
        %v2277 = vmax.f32 %v2149, 0.0
        %v2278 = vmax.f32 %v2150, 0.0
        %v2279 = vmax.f32 %v2151, 0.0
        %v2280 = vmax.f32 %v2152, 0.0
        %v2281 = vmax.f32 %v2153, 0.0
        %v2282 = vmax.f32 %v2154, 0.0
        %v2283 = vmax.f32 %v2155, 0.0
        %v2284 = vmax.f32 %v2156, 0.0
        %v2285 = vmax.f32 %v2157, 0.0
        %v2286 = vmax.f32 %v2158, 0.0
        %v2287 = vmax.f32 %v2159, 0.0
        %v2288 = vmax.f32 %v2160, 0.0
        %v2289 = vmax.f32 %v2161, 0.0
        %v2290 = vmax.f32 %v2162, 0.0
        %v2291 = vmax.f32 %v2163, 0.0
        %v2292 = vmax.f32 %v2164, 0.0
        %v2293 = vmax.f32 %v2165, 0.0
        %v2294 = vmax.f32 %v2166, 0.0
        %v2295 = vmax.f32 %v2167, 0.0
        %v2296 = vmax.f32 %v2168, 0.0
        %v2297 = vmax.f32 %v2169, 0.0
        %v2298 = vmax.f32 %v2170, 0.0
        %v2299 = vmax.f32 %v2171, 0.0
        %v2300 = vmax.f32 %v2172, 0.0
        %v2301 = vmax.f32 %v2173, 0.0
        %v2302 = vmax.f32 %v2174, 0.0
        %v2303 = vmax.f32 %v2175, 0.0
        %v2304 = vmax.f32 %v2176, 0.0
        %v2305 = vmax.f32 %v2177, 0.0
        %v2306 = vmax.f32 %v2178, 0.0
        %v2307 = vmax.f32 %v2179, 0.0
        %v2308 = vmax.f32 %v2180, 0.0
        %v2309 = vmax.f32 %v2181, 0.0
        %v2310 = vmax.f32 %v2182, 0.0
        %v2311 = vmax.f32 %v2183, 0.0
        %v2312 = vmax.f32 %v2184, 0.0
        %v2313 = vmax.f32 %v2185, 0.0
        %v2314 = vmax.f32 %v2186, 0.0
        %v2315 = vmax.f32 %v2187, 0.0
        %v2316 = vmax.f32 %v2188, 0.0
        %v2317 = vmax.f32 %v2189, 0.0
        %v2318 = vld [vmem:[%s3] sm:$0xff]
        %v2319 = vld [vmem:[%s3 + $0x8] sm:$0xff]
        %v2320 = vld [vmem:[%s3 + $0x10] sm:$0xff]
        %v2321 = vld [vmem:[%s3 + $0x18] sm:$0xff]
        %v2322 = vld [vmem:[%s3 + $0x20] sm:$0xff]
        %v2323 = vld [vmem:[%s3 + $0x28] sm:$0xff]
        %v2324 = vld [vmem:[%s3 + $0x30] sm:$0xff]
        %v2325 = vld [vmem:[%s3 + $0x38] sm:$0xff]
        %v2326 = vld [vmem:[%s3 + $0x40] sm:$0xff]
        %v2327 = vld [vmem:[%s3 + $0x48] sm:$0xff]
        %v2328 = vld [vmem:[%s3 + $0x50] sm:$0xff]
        %v2329 = vld [vmem:[%s3 + $0x58] sm:$0xff]
        %v2330 = vld [vmem:[%s3 + $0x60] sm:$0xff]
        %v2331 = vld [vmem:[%s3 + $0x68] sm:$0xff]
        %v2332 = vld [vmem:[%s3 + $0x70] sm:$0xff]
        %v2333 = vld [vmem:[%s3 + $0x78] sm:$0xff]
        %v2334 = vld [vmem:[%s3 + $0x80] sm:$0xff]
        %v2335 = vld [vmem:[%s3 + $0x88] sm:$0xff]
        %v2336 = vld [vmem:[%s3 + $0x90] sm:$0xff]
        %v2337 = vld [vmem:[%s3 + $0x98] sm:$0xff]
        %v2338 = vld [vmem:[%s3 + $0xa0] sm:$0xff]
        %v2339 = vld [vmem:[%s3 + $0xa8] sm:$0xff]
        %v2340 = vld [vmem:[%s3 + $0xb0] sm:$0xff]
        %v2341 = vld [vmem:[%s3 + $0xb8] sm:$0xff]
        %v2342 = vld [vmem:[%s3 + $0xc0] sm:$0xff]
        %v2343 = vld [vmem:[%s3 + $0xc8] sm:$0xff]
        %v2344 = vld [vmem:[%s3 + $0xd0] sm:$0xff]
        %v2345 = vld [vmem:[%s3 + $0xd8] sm:$0xff]
        %v2346 = vld [vmem:[%s3 + $0xe0] sm:$0xff]
        %v2347 = vld [vmem:[%s3 + $0xe8] sm:$0xff]
        %v2348 = vld [vmem:[%s3 + $0xf0] sm:$0xff]
        %v2349 = vld [vmem:[%s3 + $0xf8] sm:$0xff]
        %v2350 = vld [vmem:[%s3 + $0x100] sm:$0xff]
        %v2351 = vld [vmem:[%s3 + $0x108] sm:$0xff]
        %v2352 = vld [vmem:[%s3 + $0x110] sm:$0xff]
        %v2353 = vld [vmem:[%s3 + $0x118] sm:$0xff]
        %v2354 = vld [vmem:[%s3 + $0x120] sm:$0xff]
        %v2355 = vld [vmem:[%s3 + $0x128] sm:$0xff]
        %v2356 = vld [vmem:[%s3 + $0x130] sm:$0xff]
        %v2357 = vld [vmem:[%s3 + $0x138] sm:$0xff]
        %v2358 = vld [vmem:[%s3 + $0x140] sm:$0xff]
        %v2359 = vld [vmem:[%s3 + $0x148] sm:$0xff]
        %v2360 = vld [vmem:[%s3 + $0x150] sm:$0xff]
        %v2361 = vld [vmem:[%s3 + $0x158] sm:$0xff]
        %v2362 = vld [vmem:[%s3 + $0x160] sm:$0xff]
        %v2363 = vld [vmem:[%s3 + $0x168] sm:$0xff]
        %v2364 = vld [vmem:[%s3 + $0x170] sm:$0xff]
        %v2365 = vld [vmem:[%s3 + $0x178] sm:$0xff]
        %v2366 = vld [vmem:[%s3 + $0x180] sm:$0xff]
        %v2367 = vld [vmem:[%s3 + $0x188] sm:$0xff]
        %v2368 = vld [vmem:[%s3 + $0x190] sm:$0xff]
        %v2369 = vld [vmem:[%s3 + $0x198] sm:$0xff]
        %v2370 = vld [vmem:[%s3 + $0x1a0] sm:$0xff]
        %v2371 = vld [vmem:[%s3 + $0x1a8] sm:$0xff]
        %v2372 = vld [vmem:[%s3 + $0x1b0] sm:$0xff]
        %v2373 = vld [vmem:[%s3 + $0x1b8] sm:$0xff]
        %v2374 = vld [vmem:[%s3 + $0x1c0] sm:$0xff]
        %v2375 = vld [vmem:[%s3 + $0x1c8] sm:$0xff]
        %v2376 = vld [vmem:[%s3 + $0x1d0] sm:$0xff]
        %v2377 = vld [vmem:[%s3 + $0x1d8] sm:$0xff]
        %v2378 = vld [vmem:[%s3 + $0x1e0] sm:$0xff]
        %v2379 = vld [vmem:[%s3 + $0x1e8] sm:$0xff]
        %v2380 = vld [vmem:[%s3 + $0x1f0] sm:$0xff]
        %v2381 = vld [vmem:[%s3 + $0x1f8] sm:$0xff]
        %v2382 = vld [vmem:[%s4] sm:$0x3]
        %v2384 = vlaneseq
        %v2385 = vshrl.u32 %v2384, 7
        %v2386 = vsub.s32 0, %v2385
        %v2387 = vrot.slane %v2382, %v2386
        %v2388 = vlaneseq
        %v2389 = vshrl.u32 %v2388, 7
        %v2390 = vsub.s32 1, %v2389
        %v2391 = vrot.slane %v2382, %v2390
        %2394 = vmatprep.subr.mxu0 %v2319
        %2395 = vmatpush1.msra.mxu0 %v2318
        %2396 = vmatprep.subr.mxu0 %v2321
        %2397 = vmatpush1.msra.mxu0 %v2320
        %2398 = vmatprep.subr.mxu0 %v2323
        %2399 = vmatpush1.msra.mxu0 %v2322
        %2400 = vmatprep.subr.mxu0 %v2325
        %2401 = vmatpush1.msra.mxu0 %v2324
        %2402 = vmatprep.subr.mxu0 %v2327
        %2403 = vmatpush1.msra.mxu0 %v2326
        %2404 = vmatprep.subr.mxu0 %v2329
        %2405 = vmatpush1.msra.mxu0 %v2328
        %2406 = vmatprep.subr.mxu0 %v2331
        %2407 = vmatpush1.msra.mxu0 %v2330
        %2408 = vmatprep.subr.mxu0 %v2333
        %2409 = vmatpush1.msra.mxu0 %v2332
        %2410 = vmatprep.subr.mxu0 %v2335
        %2411 = vmatpush1.msra.mxu0 %v2334
        %2412 = vmatprep.subr.mxu0 %v2337
        %2413 = vmatpush1.msra.mxu0 %v2336
        %2414 = vmatprep.subr.mxu0 %v2339
        %2415 = vmatpush1.msra.mxu0 %v2338
        %2416 = vmatprep.subr.mxu0 %v2341
        %2417 = vmatpush1.msra.mxu0 %v2340
        %2418 = vmatprep.subr.mxu0 %v2343
        %2419 = vmatpush1.msra.mxu0 %v2342
        %2420 = vmatprep.subr.mxu0 %v2345
        %2421 = vmatpush1.msra.mxu0 %v2344
        %2422 = vmatprep.subr.mxu0 %v2347
        %2423 = vmatpush1.msra.mxu0 %v2346
        %2424 = vmatprep.subr.mxu0 %v2349
        %2425 = vmatpush1.msra.mxu0 %v2348
        %2426 = vmatprep.subr.mxu0 %v2351
        %2427 = vmatpush1.msra.mxu0 %v2350
        %2428 = vmatprep.subr.mxu0 %v2353
        %2429 = vmatpush1.msra.mxu0 %v2352
        %2430 = vmatprep.subr.mxu0 %v2355
        %2431 = vmatpush1.msra.mxu0 %v2354
        %2432 = vmatprep.subr.mxu0 %v2357
        %2433 = vmatpush1.msra.mxu0 %v2356
        %2434 = vmatprep.subr.mxu0 %v2359
        %2435 = vmatpush1.msra.mxu0 %v2358
        %2436 = vmatprep.subr.mxu0 %v2361
        %2437 = vmatpush1.msra.mxu0 %v2360
        %2438 = vmatprep.subr.mxu0 %v2363
        %2439 = vmatpush1.msra.mxu0 %v2362
        %2440 = vmatprep.subr.mxu0 %v2365
        %2441 = vmatpush1.msra.mxu0 %v2364
        %2442 = vmatprep.subr.mxu0 %v2367
        %2443 = vmatpush1.msra.mxu0 %v2366
        %2444 = vmatprep.subr.mxu0 %v2369
        %2445 = vmatpush1.msra.mxu0 %v2368
        %2446 = vmatprep.subr.mxu0 %v2371
        %2447 = vmatpush1.msra.mxu0 %v2370
        %2448 = vmatprep.subr.mxu0 %v2373
        %2449 = vmatpush1.msra.mxu0 %v2372
        %2450 = vmatprep.subr.mxu0 %v2375
        %2451 = vmatpush1.msra.mxu0 %v2374
        %2452 = vmatprep.subr.mxu0 %v2377
        %2453 = vmatpush1.msra.mxu0 %v2376
        %2454 = vmatprep.subr.mxu0 %v2379
        %2455 = vmatpush1.msra.mxu0 %v2378
        %2456 = vmatprep.subr.mxu0 %v2381
        %2457 = vmatpush1.msra.mxu0 %v2380
        %2458 = vmatprep.mubr.f32.mxu0 %v2191
        %2459 = vmatmul.mubr.f32.gmra.mrb[0].mxu0 %v2190
        %v2460 = vpop.f32.mrb[0].mxu0
        %v2461 = vadd.f32 %v2387, %v2460
        %v2462 = vpop.f32.mrb[0].mxu0
        %v2463 = vadd.f32 %v2391, %v2462
        %2464 = vmatprep.mubr.f32.mxu0 %v2193
        %2465 = vmatmul.mubr.f32.gmra.mrb[0].mxu0 %v2192
        %v2466 = vpop.f32.mrb[0].mxu0
        %v2467 = vadd.f32 %v2387, %v2466
        %v2468 = vpop.f32.mrb[0].mxu0
        %v2469 = vadd.f32 %v2391, %v2468
        %2470 = vmatprep.mubr.f32.mxu0 %v2195
        %2471 = vmatmul.mubr.f32.gmra.mrb[0].mxu0 %v2194
        %v2472 = vpop.f32.mrb[0].mxu0
        %v2473 = vadd.f32 %v2387, %v2472
        %v2474 = vpop.f32.mrb[0].mxu0
        %v2475 = vadd.f32 %v2391, %v2474
        %2476 = vmatprep.mubr.f32.mxu0 %v2197
        %2477 = vmatmul.mubr.f32.gmra.mrb[0].mxu0 %v2196
        %v2478 = vpop.f32.mrb[0].mxu0
        %v2479 = vadd.f32 %v2387, %v2478
        %v2480 = vpop.f32.mrb[0].mxu0
        %v2481 = vadd.f32 %v2391, %v2480
        %2482 = vmatprep.mubr.f32.mxu0 %v2199
        %2483 = vmatmul.mubr.f32.gmra.mrb[0].mxu0 %v2198
        %v2484 = vpop.f32.mrb[0].mxu0
        %v2485 = vadd.f32 %v2387, %v2484
        %v2486 = vpop.f32.mrb[0].mxu0
        %v2487 = vadd.f32 %v2391, %v2486
        %2488 = vmatprep.mubr.f32.mxu0 %v2201
        %2489 = vmatmul.mubr.f32.gmra.mrb[0].mxu0 %v2200
        %v2490 = vpop.f32.mrb[0].mxu0
        %v2491 = vadd.f32 %v2387, %v2490
        %v2492 = vpop.f32.mrb[0].mxu0
        %v2493 = vadd.f32 %v2391, %v2492
        %2494 = vmatprep.mubr.f32.mxu0 %v2203
        %2495 = vmatmul.mubr.f32.gmra.mrb[0].mxu0 %v2202
        %v2496 = vpop.f32.mrb[0].mxu0
        %v2497 = vadd.f32 %v2387, %v2496
        %v2498 = vpop.f32.mrb[0].mxu0
        %v2499 = vadd.f32 %v2391, %v2498
        %2500 = vmatprep.mubr.f32.mxu0 %v2205
        %2501 = vmatmul.mubr.f32.gmra.mrb[0].mxu0 %v2204
        %v2502 = vpop.f32.mrb[0].mxu0
        %v2503 = vadd.f32 %v2387, %v2502
        %v2504 = vpop.f32.mrb[0].mxu0
        %v2505 = vadd.f32 %v2391, %v2504
        %2506 = vmatprep.mubr.f32.mxu0 %v2207
        %2507 = vmatmul.mubr.f32.gmra.mrb[0].mxu0 %v2206
        %v2508 = vpop.f32.mrb[0].mxu0
        %v2509 = vadd.f32 %v2387, %v2508
        %v2510 = vpop.f32.mrb[0].mxu0
        %v2511 = vadd.f32 %v2391, %v2510
        %2512 = vmatprep.mubr.f32.mxu0 %v2209
        %2513 = vmatmul.mubr.f32.gmra.mrb[0].mxu0 %v2208
        %v2514 = vpop.f32.mrb[0].mxu0
        %v2515 = vadd.f32 %v2387, %v2514
        %v2516 = vpop.f32.mrb[0].mxu0
        %v2517 = vadd.f32 %v2391, %v2516
        %2518 = vmatprep.mubr.f32.mxu0 %v2211
        %2519 = vmatmul.mubr.f32.gmra.mrb[0].mxu0 %v2210
        %v2520 = vpop.f32.mrb[0].mxu0
        %v2521 = vadd.f32 %v2387, %v2520
        %v2522 = vpop.f32.mrb[0].mxu0
        %v2523 = vadd.f32 %v2391, %v2522
        %2524 = vmatprep.mubr.f32.mxu0 %v2213
        %2525 = vmatmul.mubr.f32.gmra.mrb[0].mxu0 %v2212
        %v2526 = vpop.f32.mrb[0].mxu0
        %v2527 = vadd.f32 %v2387, %v2526
        %v2528 = vpop.f32.mrb[0].mxu0
        %v2529 = vadd.f32 %v2391, %v2528
        %2530 = vmatprep.mubr.f32.mxu0 %v2215
        %2531 = vmatmul.mubr.f32.gmra.mrb[0].mxu0 %v2214
        %v2532 = vpop.f32.mrb[0].mxu0
        %v2533 = vadd.f32 %v2387, %v2532
        %v2534 = vpop.f32.mrb[0].mxu0
        %v2535 = vadd.f32 %v2391, %v2534
        %2536 = vmatprep.mubr.f32.mxu0 %v2217
        %2537 = vmatmul.mubr.f32.gmra.mrb[0].mxu0 %v2216
        %v2538 = vpop.f32.mrb[0].mxu0
        %v2539 = vadd.f32 %v2387, %v2538
        %v2540 = vpop.f32.mrb[0].mxu0
        %v2541 = vadd.f32 %v2391, %v2540
        %2542 = vmatprep.mubr.f32.mxu0 %v2219
        %2543 = vmatmul.mubr.f32.gmra.mrb[0].mxu0 %v2218
        %v2544 = vpop.f32.mrb[0].mxu0
        %v2545 = vadd.f32 %v2387, %v2544
        %v2546 = vpop.f32.mrb[0].mxu0
        %v2547 = vadd.f32 %v2391, %v2546
        %2548 = vmatprep.mubr.f32.mxu0 %v2221
        %2549 = vmatmul.mubr.f32.gmra.mrb[0].mxu0 %v2220
        %v2550 = vpop.f32.mrb[0].mxu0
        %v2551 = vadd.f32 %v2387, %v2550
        %v2552 = vpop.f32.mrb[0].mxu0
        %v2553 = vadd.f32 %v2391, %v2552
        %2554 = vmatprep.mubr.f32.mxu0 %v2223
        %2555 = vmatmul.mubr.f32.gmra.mrb[0].mxu0 %v2222
        %v2556 = vpop.f32.mrb[0].mxu0
        %v2557 = vadd.f32 %v2387, %v2556
        %v2558 = vpop.f32.mrb[0].mxu0
        %v2559 = vadd.f32 %v2391, %v2558
        %2560 = vmatprep.mubr.f32.mxu0 %v2225
        %2561 = vmatmul.mubr.f32.gmra.mrb[0].mxu0 %v2224
        %v2562 = vpop.f32.mrb[0].mxu0
        %v2563 = vadd.f32 %v2387, %v2562
        %v2564 = vpop.f32.mrb[0].mxu0
        %v2565 = vadd.f32 %v2391, %v2564
        %2566 = vmatprep.mubr.f32.mxu0 %v2227
        %2567 = vmatmul.mubr.f32.gmra.mrb[0].mxu0 %v2226
        %v2568 = vpop.f32.mrb[0].mxu0
        %v2569 = vadd.f32 %v2387, %v2568
        %v2570 = vpop.f32.mrb[0].mxu0
        %v2571 = vadd.f32 %v2391, %v2570
        %2572 = vmatprep.mubr.f32.mxu0 %v2229
        %2573 = vmatmul.mubr.f32.gmra.mrb[0].mxu0 %v2228
        %v2574 = vpop.f32.mrb[0].mxu0
        %v2575 = vadd.f32 %v2387, %v2574
        %v2576 = vpop.f32.mrb[0].mxu0
        %v2577 = vadd.f32 %v2391, %v2576
        %2578 = vmatprep.mubr.f32.mxu0 %v2231
        %2579 = vmatmul.mubr.f32.gmra.mrb[0].mxu0 %v2230
        %v2580 = vpop.f32.mrb[0].mxu0
        %v2581 = vadd.f32 %v2387, %v2580
        %v2582 = vpop.f32.mrb[0].mxu0
        %v2583 = vadd.f32 %v2391, %v2582
        %2584 = vmatprep.mubr.f32.mxu0 %v2233
        %2585 = vmatmul.mubr.f32.gmra.mrb[0].mxu0 %v2232
        %v2586 = vpop.f32.mrb[0].mxu0
        %v2587 = vadd.f32 %v2387, %v2586
        %v2588 = vpop.f32.mrb[0].mxu0
        %v2589 = vadd.f32 %v2391, %v2588
        %2590 = vmatprep.mubr.f32.mxu0 %v2235
        %2591 = vmatmul.mubr.f32.gmra.mrb[0].mxu0 %v2234
        %v2592 = vpop.f32.mrb[0].mxu0
        %v2593 = vadd.f32 %v2387, %v2592
        %v2594 = vpop.f32.mrb[0].mxu0
        %v2595 = vadd.f32 %v2391, %v2594
        %2596 = vmatprep.mubr.f32.mxu0 %v2237
        %2597 = vmatmul.mubr.f32.gmra.mrb[0].mxu0 %v2236
        %v2598 = vpop.f32.mrb[0].mxu0
        %v2599 = vadd.f32 %v2387, %v2598
        %v2600 = vpop.f32.mrb[0].mxu0
        %v2601 = vadd.f32 %v2391, %v2600
        %2602 = vmatprep.mubr.f32.mxu0 %v2239
        %2603 = vmatmul.mubr.f32.gmra.mrb[0].mxu0 %v2238
        %v2604 = vpop.f32.mrb[0].mxu0
        %v2605 = vadd.f32 %v2387, %v2604
        %v2606 = vpop.f32.mrb[0].mxu0
        %v2607 = vadd.f32 %v2391, %v2606
        %2608 = vmatprep.mubr.f32.mxu0 %v2241
        %2609 = vmatmul.mubr.f32.gmra.mrb[0].mxu0 %v2240
        %v2610 = vpop.f32.mrb[0].mxu0
        %v2611 = vadd.f32 %v2387, %v2610
        %v2612 = vpop.f32.mrb[0].mxu0
        %v2613 = vadd.f32 %v2391, %v2612
        %2614 = vmatprep.mubr.f32.mxu0 %v2243
        %2615 = vmatmul.mubr.f32.gmra.mrb[0].mxu0 %v2242
        %v2616 = vpop.f32.mrb[0].mxu0
        %v2617 = vadd.f32 %v2387, %v2616
        %v2618 = vpop.f32.mrb[0].mxu0
        %v2619 = vadd.f32 %v2391, %v2618
        %2620 = vmatprep.mubr.f32.mxu0 %v2245
        %2621 = vmatmul.mubr.f32.gmra.mrb[0].mxu0 %v2244
        %v2622 = vpop.f32.mrb[0].mxu0
        %v2623 = vadd.f32 %v2387, %v2622
        %v2624 = vpop.f32.mrb[0].mxu0
        %v2625 = vadd.f32 %v2391, %v2624
        %2626 = vmatprep.mubr.f32.mxu0 %v2247
        %2627 = vmatmul.mubr.f32.gmra.mrb[0].mxu0 %v2246
        %v2628 = vpop.f32.mrb[0].mxu0
        %v2629 = vadd.f32 %v2387, %v2628
        %v2630 = vpop.f32.mrb[0].mxu0
        %v2631 = vadd.f32 %v2391, %v2630
        %2632 = vmatprep.mubr.f32.mxu0 %v2249
        %2633 = vmatmul.mubr.f32.gmra.mrb[0].mxu0 %v2248
        %v2634 = vpop.f32.mrb[0].mxu0
        %v2635 = vadd.f32 %v2387, %v2634
        %v2636 = vpop.f32.mrb[0].mxu0
        %v2637 = vadd.f32 %v2391, %v2636
        %2638 = vmatprep.mubr.f32.mxu0 %v2251
        %2639 = vmatmul.mubr.f32.gmra.mrb[0].mxu0 %v2250
        %v2640 = vpop.f32.mrb[0].mxu0
        %v2641 = vadd.f32 %v2387, %v2640
        %v2642 = vpop.f32.mrb[0].mxu0
        %v2643 = vadd.f32 %v2391, %v2642
        %2644 = vmatprep.mubr.f32.mxu0 %v2253
        %2645 = vmatmul.mubr.f32.gmra.mrb[0].mxu0 %v2252
        %v2646 = vpop.f32.mrb[0].mxu0
        %v2647 = vadd.f32 %v2387, %v2646
        %v2648 = vpop.f32.mrb[0].mxu0
        %v2649 = vadd.f32 %v2391, %v2648
        %2650 = vmatprep.mubr.f32.mxu0 %v2255
        %2651 = vmatmul.mubr.f32.gmra.mrb[0].mxu0 %v2254
        %v2652 = vpop.f32.mrb[0].mxu0
        %v2653 = vadd.f32 %v2387, %v2652
        %v2654 = vpop.f32.mrb[0].mxu0
        %v2655 = vadd.f32 %v2391, %v2654
        %2656 = vmatprep.mubr.f32.mxu0 %v2257
        %2657 = vmatmul.mubr.f32.gmra.mrb[0].mxu0 %v2256
        %v2658 = vpop.f32.mrb[0].mxu0
        %v2659 = vadd.f32 %v2387, %v2658
        %v2660 = vpop.f32.mrb[0].mxu0
        %v2661 = vadd.f32 %v2391, %v2660
        %2662 = vmatprep.mubr.f32.mxu0 %v2259
        %2663 = vmatmul.mubr.f32.gmra.mrb[0].mxu0 %v2258
        %v2664 = vpop.f32.mrb[0].mxu0
        %v2665 = vadd.f32 %v2387, %v2664
        %v2666 = vpop.f32.mrb[0].mxu0
        %v2667 = vadd.f32 %v2391, %v2666
        %2668 = vmatprep.mubr.f32.mxu0 %v2261
        %2669 = vmatmul.mubr.f32.gmra.mrb[0].mxu0 %v2260
        %v2670 = vpop.f32.mrb[0].mxu0
        %v2671 = vadd.f32 %v2387, %v2670
        %v2672 = vpop.f32.mrb[0].mxu0
        %v2673 = vadd.f32 %v2391, %v2672
        %2674 = vmatprep.mubr.f32.mxu0 %v2263
        %2675 = vmatmul.mubr.f32.gmra.mrb[0].mxu0 %v2262
        %v2676 = vpop.f32.mrb[0].mxu0
        %v2677 = vadd.f32 %v2387, %v2676
        %v2678 = vpop.f32.mrb[0].mxu0
        %v2679 = vadd.f32 %v2391, %v2678
        %2680 = vmatprep.mubr.f32.mxu0 %v2265
        %2681 = vmatmul.mubr.f32.gmra.mrb[0].mxu0 %v2264
        %v2682 = vpop.f32.mrb[0].mxu0
        %v2683 = vadd.f32 %v2387, %v2682
        %v2684 = vpop.f32.mrb[0].mxu0
        %v2685 = vadd.f32 %v2391, %v2684
        %2686 = vmatprep.mubr.f32.mxu0 %v2267
        %2687 = vmatmul.mubr.f32.gmra.mrb[0].mxu0 %v2266
        %v2688 = vpop.f32.mrb[0].mxu0
        %v2689 = vadd.f32 %v2387, %v2688
        %v2690 = vpop.f32.mrb[0].mxu0
        %v2691 = vadd.f32 %v2391, %v2690
        %2692 = vmatprep.mubr.f32.mxu0 %v2269
        %2693 = vmatmul.mubr.f32.gmra.mrb[0].mxu0 %v2268
        %v2694 = vpop.f32.mrb[0].mxu0
        %v2695 = vadd.f32 %v2387, %v2694
        %v2696 = vpop.f32.mrb[0].mxu0
        %v2697 = vadd.f32 %v2391, %v2696
        %2698 = vmatprep.mubr.f32.mxu0 %v2271
        %2699 = vmatmul.mubr.f32.gmra.mrb[0].mxu0 %v2270
        %v2700 = vpop.f32.mrb[0].mxu0
        %v2701 = vadd.f32 %v2387, %v2700
        %v2702 = vpop.f32.mrb[0].mxu0
        %v2703 = vadd.f32 %v2391, %v2702
        %2704 = vmatprep.mubr.f32.mxu0 %v2273
        %2705 = vmatmul.mubr.f32.gmra.mrb[0].mxu0 %v2272
        %v2706 = vpop.f32.mrb[0].mxu0
        %v2707 = vadd.f32 %v2387, %v2706
        %v2708 = vpop.f32.mrb[0].mxu0
        %v2709 = vadd.f32 %v2391, %v2708
        %2710 = vmatprep.mubr.f32.mxu0 %v2275
        %2711 = vmatmul.mubr.f32.gmra.mrb[0].mxu0 %v2274
        %v2712 = vpop.f32.mrb[0].mxu0
        %v2713 = vadd.f32 %v2387, %v2712
        %v2714 = vpop.f32.mrb[0].mxu0
        %v2715 = vadd.f32 %v2391, %v2714
        %2716 = vmatprep.mubr.f32.mxu0 %v2277
        %2717 = vmatmul.mubr.f32.gmra.mrb[0].mxu0 %v2276
        %v2718 = vpop.f32.mrb[0].mxu0
        %v2719 = vadd.f32 %v2387, %v2718
        %v2720 = vpop.f32.mrb[0].mxu0
        %v2721 = vadd.f32 %v2391, %v2720
        %2722 = vmatprep.mubr.f32.mxu0 %v2279
        %2723 = vmatmul.mubr.f32.gmra.mrb[0].mxu0 %v2278
        %v2724 = vpop.f32.mrb[0].mxu0
        %v2725 = vadd.f32 %v2387, %v2724
        %v2726 = vpop.f32.mrb[0].mxu0
        %v2727 = vadd.f32 %v2391, %v2726
        %2728 = vmatprep.mubr.f32.mxu0 %v2281
        %2729 = vmatmul.mubr.f32.gmra.mrb[0].mxu0 %v2280
        %v2730 = vpop.f32.mrb[0].mxu0
        %v2731 = vadd.f32 %v2387, %v2730
        %v2732 = vpop.f32.mrb[0].mxu0
        %v2733 = vadd.f32 %v2391, %v2732
        %2734 = vmatprep.mubr.f32.mxu0 %v2283
        %2735 = vmatmul.mubr.f32.gmra.mrb[0].mxu0 %v2282
        %v2736 = vpop.f32.mrb[0].mxu0
        %v2737 = vadd.f32 %v2387, %v2736
        %v2738 = vpop.f32.mrb[0].mxu0
        %v2739 = vadd.f32 %v2391, %v2738
        %2740 = vmatprep.mubr.f32.mxu0 %v2285
        %2741 = vmatmul.mubr.f32.gmra.mrb[0].mxu0 %v2284
        %v2742 = vpop.f32.mrb[0].mxu0
        %v2743 = vadd.f32 %v2387, %v2742
        %v2744 = vpop.f32.mrb[0].mxu0
        %v2745 = vadd.f32 %v2391, %v2744
        %2746 = vmatprep.mubr.f32.mxu0 %v2287
        %2747 = vmatmul.mubr.f32.gmra.mrb[0].mxu0 %v2286
        %v2748 = vpop.f32.mrb[0].mxu0
        %v2749 = vadd.f32 %v2387, %v2748
        %v2750 = vpop.f32.mrb[0].mxu0
        %v2751 = vadd.f32 %v2391, %v2750
        %2752 = vmatprep.mubr.f32.mxu0 %v2289
        %2753 = vmatmul.mubr.f32.gmra.mrb[0].mxu0 %v2288
        %v2754 = vpop.f32.mrb[0].mxu0
        %v2755 = vadd.f32 %v2387, %v2754
        %v2756 = vpop.f32.mrb[0].mxu0
        %v2757 = vadd.f32 %v2391, %v2756
        %2758 = vmatprep.mubr.f32.mxu0 %v2291
        %2759 = vmatmul.mubr.f32.gmra.mrb[0].mxu0 %v2290
        %v2760 = vpop.f32.mrb[0].mxu0
        %v2761 = vadd.f32 %v2387, %v2760
        %v2762 = vpop.f32.mrb[0].mxu0
        %v2763 = vadd.f32 %v2391, %v2762
        %2764 = vmatprep.mubr.f32.mxu0 %v2293
        %2765 = vmatmul.mubr.f32.gmra.mrb[0].mxu0 %v2292
        %v2766 = vpop.f32.mrb[0].mxu0
        %v2767 = vadd.f32 %v2387, %v2766
        %v2768 = vpop.f32.mrb[0].mxu0
        %v2769 = vadd.f32 %v2391, %v2768
        %2770 = vmatprep.mubr.f32.mxu0 %v2295
        %2771 = vmatmul.mubr.f32.gmra.mrb[0].mxu0 %v2294
        %v2772 = vpop.f32.mrb[0].mxu0
        %v2773 = vadd.f32 %v2387, %v2772
        %v2774 = vpop.f32.mrb[0].mxu0
        %v2775 = vadd.f32 %v2391, %v2774
        %2776 = vmatprep.mubr.f32.mxu0 %v2297
        %2777 = vmatmul.mubr.f32.gmra.mrb[0].mxu0 %v2296
        %v2778 = vpop.f32.mrb[0].mxu0
        %v2779 = vadd.f32 %v2387, %v2778
        %v2780 = vpop.f32.mrb[0].mxu0
        %v2781 = vadd.f32 %v2391, %v2780
        %2782 = vmatprep.mubr.f32.mxu0 %v2299
        %2783 = vmatmul.mubr.f32.gmra.mrb[0].mxu0 %v2298
        %v2784 = vpop.f32.mrb[0].mxu0
        %v2785 = vadd.f32 %v2387, %v2784
        %v2786 = vpop.f32.mrb[0].mxu0
        %v2787 = vadd.f32 %v2391, %v2786
        %2788 = vmatprep.mubr.f32.mxu0 %v2301
        %2789 = vmatmul.mubr.f32.gmra.mrb[0].mxu0 %v2300
        %v2790 = vpop.f32.mrb[0].mxu0
        %v2791 = vadd.f32 %v2387, %v2790
        %v2792 = vpop.f32.mrb[0].mxu0
        %v2793 = vadd.f32 %v2391, %v2792
        %2794 = vmatprep.mubr.f32.mxu0 %v2303
        %2795 = vmatmul.mubr.f32.gmra.mrb[0].mxu0 %v2302
        %v2796 = vpop.f32.mrb[0].mxu0
        %v2797 = vadd.f32 %v2387, %v2796
        %v2798 = vpop.f32.mrb[0].mxu0
        %v2799 = vadd.f32 %v2391, %v2798
        %2800 = vmatprep.mubr.f32.mxu0 %v2305
        %2801 = vmatmul.mubr.f32.gmra.mrb[0].mxu0 %v2304
        %v2802 = vpop.f32.mrb[0].mxu0
        %v2803 = vadd.f32 %v2387, %v2802
        %v2804 = vpop.f32.mrb[0].mxu0
        %v2805 = vadd.f32 %v2391, %v2804
        %2806 = vmatprep.mubr.f32.mxu0 %v2307
        %2807 = vmatmul.mubr.f32.gmra.mrb[0].mxu0 %v2306
        %v2808 = vpop.f32.mrb[0].mxu0
        %v2809 = vadd.f32 %v2387, %v2808
        %v2810 = vpop.f32.mrb[0].mxu0
        %v2811 = vadd.f32 %v2391, %v2810
        %2812 = vmatprep.mubr.f32.mxu0 %v2309
        %2813 = vmatmul.mubr.f32.gmra.mrb[0].mxu0 %v2308
        %v2814 = vpop.f32.mrb[0].mxu0
        %v2815 = vadd.f32 %v2387, %v2814
        %v2816 = vpop.f32.mrb[0].mxu0
        %v2817 = vadd.f32 %v2391, %v2816
        %2818 = vmatprep.mubr.f32.mxu0 %v2311
        %2819 = vmatmul.mubr.f32.gmra.mrb[0].mxu0 %v2310
        %v2820 = vpop.f32.mrb[0].mxu0
        %v2821 = vadd.f32 %v2387, %v2820
        %v2822 = vpop.f32.mrb[0].mxu0
        %v2823 = vadd.f32 %v2391, %v2822
        %2824 = vmatprep.mubr.f32.mxu0 %v2313
        %2825 = vmatmul.mubr.f32.gmra.mrb[0].mxu0 %v2312
        %v2826 = vpop.f32.mrb[0].mxu0
        %v2827 = vadd.f32 %v2387, %v2826
        %v2828 = vpop.f32.mrb[0].mxu0
        %v2829 = vadd.f32 %v2391, %v2828
        %2830 = vmatprep.mubr.f32.mxu0 %v2315
        %2831 = vmatmul.mubr.f32.gmra.mrb[0].mxu0 %v2314
        %v2832 = vpop.f32.mrb[0].mxu0
        %v2833 = vadd.f32 %v2387, %v2832
        %v2834 = vpop.f32.mrb[0].mxu0
        %v2835 = vadd.f32 %v2391, %v2834
        %2836 = vmatprep.mubr.f32.mxu0 %v2317
        %2837 = vmatmul.mubr.f32.gmra.mrb[0].mxu0 %v2316
        %v2838 = vpop.f32.mrb[0].mxu0
        %v2839 = vadd.f32 %v2387, %v2838
        %v2840 = vpop.f32.mrb[0].mxu0
        %v2841 = vadd.f32 %v2391, %v2840
        %2842 = vdwg.mxu0
        %v2843 = vmax.f32 %v2461, 0.0
        %v2844 = vmax.f32 %v2463, 0.0
        %v2845 = vmax.f32 %v2467, 0.0
        %v2846 = vmax.f32 %v2469, 0.0
        %v2847 = vmax.f32 %v2473, 0.0
        %v2848 = vmax.f32 %v2475, 0.0
        %v2849 = vmax.f32 %v2479, 0.0
        %v2850 = vmax.f32 %v2481, 0.0
        %v2851 = vmax.f32 %v2485, 0.0
        %v2852 = vmax.f32 %v2487, 0.0
        %v2853 = vmax.f32 %v2491, 0.0
        %v2854 = vmax.f32 %v2493, 0.0
        %v2855 = vmax.f32 %v2497, 0.0
        %v2856 = vmax.f32 %v2499, 0.0
        %v2857 = vmax.f32 %v2503, 0.0
        %v2858 = vmax.f32 %v2505, 0.0
        %v2859 = vmax.f32 %v2509, 0.0
        %v2860 = vmax.f32 %v2511, 0.0
        %v2861 = vmax.f32 %v2515, 0.0
        %v2862 = vmax.f32 %v2517, 0.0
        %v2863 = vmax.f32 %v2521, 0.0
        %v2864 = vmax.f32 %v2523, 0.0
        %v2865 = vmax.f32 %v2527, 0.0
        %v2866 = vmax.f32 %v2529, 0.0
        %v2867 = vmax.f32 %v2533, 0.0
        %v2868 = vmax.f32 %v2535, 0.0
        %v2869 = vmax.f32 %v2539, 0.0
        %v2870 = vmax.f32 %v2541, 0.0
        %v2871 = vmax.f32 %v2545, 0.0
        %v2872 = vmax.f32 %v2547, 0.0
        %v2873 = vmax.f32 %v2551, 0.0
        %v2874 = vmax.f32 %v2553, 0.0
        %v2875 = vmax.f32 %v2557, 0.0
        %v2876 = vmax.f32 %v2559, 0.0
        %v2877 = vmax.f32 %v2563, 0.0
        %v2878 = vmax.f32 %v2565, 0.0
        %v2879 = vmax.f32 %v2569, 0.0
        %v2880 = vmax.f32 %v2571, 0.0
        %v2881 = vmax.f32 %v2575, 0.0
        %v2882 = vmax.f32 %v2577, 0.0
        %v2883 = vmax.f32 %v2581, 0.0
        %v2884 = vmax.f32 %v2583, 0.0
        %v2885 = vmax.f32 %v2587, 0.0
        %v2886 = vmax.f32 %v2589, 0.0
        %v2887 = vmax.f32 %v2593, 0.0
        %v2888 = vmax.f32 %v2595, 0.0
        %v2889 = vmax.f32 %v2599, 0.0
        %v2890 = vmax.f32 %v2601, 0.0
        %v2891 = vmax.f32 %v2605, 0.0
        %v2892 = vmax.f32 %v2607, 0.0
        %v2893 = vmax.f32 %v2611, 0.0
        %v2894 = vmax.f32 %v2613, 0.0
        %v2895 = vmax.f32 %v2617, 0.0
        %v2896 = vmax.f32 %v2619, 0.0
        %v2897 = vmax.f32 %v2623, 0.0
        %v2898 = vmax.f32 %v2625, 0.0
        %v2899 = vmax.f32 %v2629, 0.0
        %v2900 = vmax.f32 %v2631, 0.0
        %v2901 = vmax.f32 %v2635, 0.0
        %v2902 = vmax.f32 %v2637, 0.0
        %v2903 = vmax.f32 %v2641, 0.0
        %v2904 = vmax.f32 %v2643, 0.0
        %v2905 = vmax.f32 %v2647, 0.0
        %v2906 = vmax.f32 %v2649, 0.0
        %v2907 = vmax.f32 %v2653, 0.0
        %v2908 = vmax.f32 %v2655, 0.0
        %v2909 = vmax.f32 %v2659, 0.0
        %v2910 = vmax.f32 %v2661, 0.0
        %v2911 = vmax.f32 %v2665, 0.0
        %v2912 = vmax.f32 %v2667, 0.0
        %v2913 = vmax.f32 %v2671, 0.0
        %v2914 = vmax.f32 %v2673, 0.0
        %v2915 = vmax.f32 %v2677, 0.0
        %v2916 = vmax.f32 %v2679, 0.0
        %v2917 = vmax.f32 %v2683, 0.0
        %v2918 = vmax.f32 %v2685, 0.0
        %v2919 = vmax.f32 %v2689, 0.0
        %v2920 = vmax.f32 %v2691, 0.0
        %v2921 = vmax.f32 %v2695, 0.0
        %v2922 = vmax.f32 %v2697, 0.0
        %v2923 = vmax.f32 %v2701, 0.0
        %v2924 = vmax.f32 %v2703, 0.0
        %v2925 = vmax.f32 %v2707, 0.0
        %v2926 = vmax.f32 %v2709, 0.0
        %v2927 = vmax.f32 %v2713, 0.0
        %v2928 = vmax.f32 %v2715, 0.0
        %v2929 = vmax.f32 %v2719, 0.0
        %v2930 = vmax.f32 %v2721, 0.0
        %v2931 = vmax.f32 %v2725, 0.0
        %v2932 = vmax.f32 %v2727, 0.0
        %v2933 = vmax.f32 %v2731, 0.0
        %v2934 = vmax.f32 %v2733, 0.0
        %v2935 = vmax.f32 %v2737, 0.0
        %v2936 = vmax.f32 %v2739, 0.0
        %v2937 = vmax.f32 %v2743, 0.0
        %v2938 = vmax.f32 %v2745, 0.0
        %v2939 = vmax.f32 %v2749, 0.0
        %v2940 = vmax.f32 %v2751, 0.0
        %v2941 = vmax.f32 %v2755, 0.0
        %v2942 = vmax.f32 %v2757, 0.0
        %v2943 = vmax.f32 %v2761, 0.0
        %v2944 = vmax.f32 %v2763, 0.0
        %v2945 = vmax.f32 %v2767, 0.0
        %v2946 = vmax.f32 %v2769, 0.0
        %v2947 = vmax.f32 %v2773, 0.0
        %v2948 = vmax.f32 %v2775, 0.0
        %v2949 = vmax.f32 %v2779, 0.0
        %v2950 = vmax.f32 %v2781, 0.0
        %v2951 = vmax.f32 %v2785, 0.0
        %v2952 = vmax.f32 %v2787, 0.0
        %v2953 = vmax.f32 %v2791, 0.0
        %v2954 = vmax.f32 %v2793, 0.0
        %v2955 = vmax.f32 %v2797, 0.0
        %v2956 = vmax.f32 %v2799, 0.0
        %v2957 = vmax.f32 %v2803, 0.0
        %v2958 = vmax.f32 %v2805, 0.0
        %v2959 = vmax.f32 %v2809, 0.0
        %v2960 = vmax.f32 %v2811, 0.0
        %v2961 = vmax.f32 %v2815, 0.0
        %v2962 = vmax.f32 %v2817, 0.0
        %v2963 = vmax.f32 %v2821, 0.0
        %v2964 = vmax.f32 %v2823, 0.0
        %v2965 = vmax.f32 %v2827, 0.0
        %v2966 = vmax.f32 %v2829, 0.0
        %v2967 = vmax.f32 %v2833, 0.0
        %v2968 = vmax.f32 %v2835, 0.0
        %v2969 = vmax.f32 %v2839, 0.0
        %v2970 = vmax.f32 %v2841, 0.0
        %v2971 = vld [vmem:[%s5] sm:$0xff]
        %v2972 = vld [vmem:[%s5 + $0x8] sm:$0xff]
        %v2973 = vld [vmem:[%s5 + $0x10] sm:$0xff]
        %v2974 = vld [vmem:[%s5 + $0x18] sm:$0xff]
        %v2975 = vld [vmem:[%s5 + $0x20] sm:$0xff]
        %v2976 = vld [vmem:[%s5 + $0x28] sm:$0xff]
        %v2977 = vld [vmem:[%s5 + $0x30] sm:$0xff]
        %v2978 = vld [vmem:[%s5 + $0x38] sm:$0xff]
        %v2979 = vld [vmem:[%s5 + $0x40] sm:$0xff]
        %v2980 = vld [vmem:[%s5 + $0x48] sm:$0xff]
        %v2981 = vld [vmem:[%s5 + $0x50] sm:$0xff]
        %v2982 = vld [vmem:[%s5 + $0x58] sm:$0xff]
        %v2983 = vld [vmem:[%s5 + $0x60] sm:$0xff]
        %v2984 = vld [vmem:[%s5 + $0x68] sm:$0xff]
        %v2985 = vld [vmem:[%s5 + $0x70] sm:$0xff]
        %v2986 = vld [vmem:[%s5 + $0x78] sm:$0xff]
        %v2987 = vld [vmem:[%s5 + $0x80] sm:$0xff]
        %v2988 = vld [vmem:[%s5 + $0x88] sm:$0xff]
        %v2989 = vld [vmem:[%s5 + $0x90] sm:$0xff]
        %v2990 = vld [vmem:[%s5 + $0x98] sm:$0xff]
        %v2991 = vld [vmem:[%s5 + $0xa0] sm:$0xff]
        %v2992 = vld [vmem:[%s5 + $0xa8] sm:$0xff]
        %v2993 = vld [vmem:[%s5 + $0xb0] sm:$0xff]
        %v2994 = vld [vmem:[%s5 + $0xb8] sm:$0xff]
        %v2995 = vld [vmem:[%s5 + $0xc0] sm:$0xff]
        %v2996 = vld [vmem:[%s5 + $0xc8] sm:$0xff]
        %v2997 = vld [vmem:[%s5 + $0xd0] sm:$0xff]
        %v2998 = vld [vmem:[%s5 + $0xd8] sm:$0xff]
        %v2999 = vld [vmem:[%s5 + $0xe0] sm:$0xff]
        %v3000 = vld [vmem:[%s5 + $0xe8] sm:$0xff]
        %v3001 = vld [vmem:[%s5 + $0xf0] sm:$0xff]
        %v3002 = vld [vmem:[%s5 + $0xf8] sm:$0xff]
        %v3003 = vld [vmem:[%s5 + $0x100] sm:$0xff]
        %v3004 = vld [vmem:[%s5 + $0x108] sm:$0xff]
        %v3005 = vld [vmem:[%s5 + $0x110] sm:$0xff]
        %v3006 = vld [vmem:[%s5 + $0x118] sm:$0xff]
        %v3007 = vld [vmem:[%s5 + $0x120] sm:$0xff]
        %v3008 = vld [vmem:[%s5 + $0x128] sm:$0xff]
        %v3009 = vld [vmem:[%s5 + $0x130] sm:$0xff]
        %v3010 = vld [vmem:[%s5 + $0x138] sm:$0xff]
        %v3011 = vld [vmem:[%s5 + $0x140] sm:$0xff]
        %v3012 = vld [vmem:[%s5 + $0x148] sm:$0xff]
        %v3013 = vld [vmem:[%s5 + $0x150] sm:$0xff]
        %v3014 = vld [vmem:[%s5 + $0x158] sm:$0xff]
        %v3015 = vld [vmem:[%s5 + $0x160] sm:$0xff]
        %v3016 = vld [vmem:[%s5 + $0x168] sm:$0xff]
        %v3017 = vld [vmem:[%s5 + $0x170] sm:$0xff]
        %v3018 = vld [vmem:[%s5 + $0x178] sm:$0xff]
        %v3019 = vld [vmem:[%s5 + $0x180] sm:$0xff]
        %v3020 = vld [vmem:[%s5 + $0x188] sm:$0xff]
        %v3021 = vld [vmem:[%s5 + $0x190] sm:$0xff]
        %v3022 = vld [vmem:[%s5 + $0x198] sm:$0xff]
        %v3023 = vld [vmem:[%s5 + $0x1a0] sm:$0xff]
        %v3024 = vld [vmem:[%s5 + $0x1a8] sm:$0xff]
        %v3025 = vld [vmem:[%s5 + $0x1b0] sm:$0xff]
        %v3026 = vld [vmem:[%s5 + $0x1b8] sm:$0xff]
        %v3027 = vld [vmem:[%s5 + $0x1c0] sm:$0xff]
        %v3028 = vld [vmem:[%s5 + $0x1c8] sm:$0xff]
        %v3029 = vld [vmem:[%s5 + $0x1d0] sm:$0xff]
        %v3030 = vld [vmem:[%s5 + $0x1d8] sm:$0xff]
        %v3031 = vld [vmem:[%s5 + $0x1e0] sm:$0xff]
        %v3032 = vld [vmem:[%s5 + $0x1e8] sm:$0xff]
        %v3033 = vld [vmem:[%s5 + $0x1f0] sm:$0xff]
        %v3034 = vld [vmem:[%s5 + $0x1f8] sm:$0xff]
        %v3035 = vld [vmem:[%s6] sm:$0x3]
        %v3037 = vlaneseq
        %v3038 = vshrl.u32 %v3037, 7
        %v3039 = vsub.s32 0, %v3038
        %v3040 = vrot.slane %v3035, %v3039
        %v3041 = vlaneseq
        %v3042 = vshrl.u32 %v3041, 7
        %v3043 = vsub.s32 1, %v3042
        %v3044 = vrot.slane %v3035, %v3043
        %3047 = vmatprep.subr.mxu0 %v2972
        %3048 = vmatpush1.msra.mxu0 %v2971
        %3049 = vmatprep.subr.mxu0 %v2974
        %3050 = vmatpush1.msra.mxu0 %v2973
        %3051 = vmatprep.subr.mxu0 %v2976
        %3052 = vmatpush1.msra.mxu0 %v2975
        %3053 = vmatprep.subr.mxu0 %v2978
        %3054 = vmatpush1.msra.mxu0 %v2977
        %3055 = vmatprep.subr.mxu0 %v2980
        %3056 = vmatpush1.msra.mxu0 %v2979
        %3057 = vmatprep.subr.mxu0 %v2982
        %3058 = vmatpush1.msra.mxu0 %v2981
        %3059 = vmatprep.subr.mxu0 %v2984
        %3060 = vmatpush1.msra.mxu0 %v2983
        %3061 = vmatprep.subr.mxu0 %v2986
        %3062 = vmatpush1.msra.mxu0 %v2985
        %3063 = vmatprep.subr.mxu0 %v2988
        %3064 = vmatpush1.msra.mxu0 %v2987
        %3065 = vmatprep.subr.mxu0 %v2990
        %3066 = vmatpush1.msra.mxu0 %v2989
        %3067 = vmatprep.subr.mxu0 %v2992
        %3068 = vmatpush1.msra.mxu0 %v2991
        %3069 = vmatprep.subr.mxu0 %v2994
        %3070 = vmatpush1.msra.mxu0 %v2993
        %3071 = vmatprep.subr.mxu0 %v2996
        %3072 = vmatpush1.msra.mxu0 %v2995
        %3073 = vmatprep.subr.mxu0 %v2998
        %3074 = vmatpush1.msra.mxu0 %v2997
        %3075 = vmatprep.subr.mxu0 %v3000
        %3076 = vmatpush1.msra.mxu0 %v2999
        %3077 = vmatprep.subr.mxu0 %v3002
        %3078 = vmatpush1.msra.mxu0 %v3001
        %3079 = vmatprep.subr.mxu0 %v3004
        %3080 = vmatpush1.msra.mxu0 %v3003
        %3081 = vmatprep.subr.mxu0 %v3006
        %3082 = vmatpush1.msra.mxu0 %v3005
        %3083 = vmatprep.subr.mxu0 %v3008
        %3084 = vmatpush1.msra.mxu0 %v3007
        %3085 = vmatprep.subr.mxu0 %v3010
        %3086 = vmatpush1.msra.mxu0 %v3009
        %3087 = vmatprep.subr.mxu0 %v3012
        %3088 = vmatpush1.msra.mxu0 %v3011
        %3089 = vmatprep.subr.mxu0 %v3014
        %3090 = vmatpush1.msra.mxu0 %v3013
        %3091 = vmatprep.subr.mxu0 %v3016
        %3092 = vmatpush1.msra.mxu0 %v3015
        %3093 = vmatprep.subr.mxu0 %v3018
        %3094 = vmatpush1.msra.mxu0 %v3017
        %3095 = vmatprep.subr.mxu0 %v3020
        %3096 = vmatpush1.msra.mxu0 %v3019
        %3097 = vmatprep.subr.mxu0 %v3022
        %3098 = vmatpush1.msra.mxu0 %v3021
        %3099 = vmatprep.subr.mxu0 %v3024
        %3100 = vmatpush1.msra.mxu0 %v3023
        %3101 = vmatprep.subr.mxu0 %v3026
        %3102 = vmatpush1.msra.mxu0 %v3025
        %3103 = vmatprep.subr.mxu0 %v3028
        %3104 = vmatpush1.msra.mxu0 %v3027
        %3105 = vmatprep.subr.mxu0 %v3030
        %3106 = vmatpush1.msra.mxu0 %v3029
        %3107 = vmatprep.subr.mxu0 %v3032
        %3108 = vmatpush1.msra.mxu0 %v3031
        %3109 = vmatprep.subr.mxu0 %v3034
        %3110 = vmatpush1.msra.mxu0 %v3033
        %3111 = vmatprep.mubr.f32.mxu0 %v2844
        %3112 = vmatmul.mubr.f32.gmra.mrb[0].mxu0 %v2843
        %v3113 = vpop.f32.mrb[0].mxu0
        %v3114 = vadd.f32 %v3040, %v3113
        %v3115 = vpop.f32.mrb[0].mxu0
        %v3116 = vadd.f32 %v3044, %v3115
        %3117 = vmatprep.mubr.f32.mxu0 %v2846
        %3118 = vmatmul.mubr.f32.gmra.mrb[0].mxu0 %v2845
        %v3119 = vpop.f32.mrb[0].mxu0
        %v3120 = vadd.f32 %v3040, %v3119
        %v3121 = vpop.f32.mrb[0].mxu0
        %v3122 = vadd.f32 %v3044, %v3121
        %3123 = vmatprep.mubr.f32.mxu0 %v2848
        %3124 = vmatmul.mubr.f32.gmra.mrb[0].mxu0 %v2847
        %v3125 = vpop.f32.mrb[0].mxu0
        %v3126 = vadd.f32 %v3040, %v3125
        %v3127 = vpop.f32.mrb[0].mxu0
        %v3128 = vadd.f32 %v3044, %v3127
        %3129 = vmatprep.mubr.f32.mxu0 %v2850
        %3130 = vmatmul.mubr.f32.gmra.mrb[0].mxu0 %v2849
        %v3131 = vpop.f32.mrb[0].mxu0
        %v3132 = vadd.f32 %v3040, %v3131
        %v3133 = vpop.f32.mrb[0].mxu0
        %v3134 = vadd.f32 %v3044, %v3133
        %3135 = vmatprep.mubr.f32.mxu0 %v2852
        %3136 = vmatmul.mubr.f32.gmra.mrb[0].mxu0 %v2851
        %v3137 = vpop.f32.mrb[0].mxu0
        %v3138 = vadd.f32 %v3040, %v3137
        %v3139 = vpop.f32.mrb[0].mxu0
        %v3140 = vadd.f32 %v3044, %v3139
        %3141 = vmatprep.mubr.f32.mxu0 %v2854
        %3142 = vmatmul.mubr.f32.gmra.mrb[0].mxu0 %v2853
        %v3143 = vpop.f32.mrb[0].mxu0
        %v3144 = vadd.f32 %v3040, %v3143
        %v3145 = vpop.f32.mrb[0].mxu0
        %v3146 = vadd.f32 %v3044, %v3145
        %3147 = vmatprep.mubr.f32.mxu0 %v2856
        %3148 = vmatmul.mubr.f32.gmra.mrb[0].mxu0 %v2855
        %v3149 = vpop.f32.mrb[0].mxu0
        %v3150 = vadd.f32 %v3040, %v3149
        %v3151 = vpop.f32.mrb[0].mxu0
        %v3152 = vadd.f32 %v3044, %v3151
        %3153 = vmatprep.mubr.f32.mxu0 %v2858
        %3154 = vmatmul.mubr.f32.gmra.mrb[0].mxu0 %v2857
        %v3155 = vpop.f32.mrb[0].mxu0
        %v3156 = vadd.f32 %v3040, %v3155
        %v3157 = vpop.f32.mrb[0].mxu0
        %v3158 = vadd.f32 %v3044, %v3157
        %3159 = vmatprep.mubr.f32.mxu0 %v2860
        %3160 = vmatmul.mubr.f32.gmra.mrb[0].mxu0 %v2859
        %v3161 = vpop.f32.mrb[0].mxu0
        %v3162 = vadd.f32 %v3040, %v3161
        %v3163 = vpop.f32.mrb[0].mxu0
        %v3164 = vadd.f32 %v3044, %v3163
        %3165 = vmatprep.mubr.f32.mxu0 %v2862
        %3166 = vmatmul.mubr.f32.gmra.mrb[0].mxu0 %v2861
        %v3167 = vpop.f32.mrb[0].mxu0
        %v3168 = vadd.f32 %v3040, %v3167
        %v3169 = vpop.f32.mrb[0].mxu0
        %v3170 = vadd.f32 %v3044, %v3169
        %3171 = vmatprep.mubr.f32.mxu0 %v2864
        %3172 = vmatmul.mubr.f32.gmra.mrb[0].mxu0 %v2863
        %v3173 = vpop.f32.mrb[0].mxu0
        %v3174 = vadd.f32 %v3040, %v3173
        %v3175 = vpop.f32.mrb[0].mxu0
        %v3176 = vadd.f32 %v3044, %v3175
        %3177 = vmatprep.mubr.f32.mxu0 %v2866
        %3178 = vmatmul.mubr.f32.gmra.mrb[0].mxu0 %v2865
        %v3179 = vpop.f32.mrb[0].mxu0
        %v3180 = vadd.f32 %v3040, %v3179
        %v3181 = vpop.f32.mrb[0].mxu0
        %v3182 = vadd.f32 %v3044, %v3181
        %3183 = vmatprep.mubr.f32.mxu0 %v2868
        %3184 = vmatmul.mubr.f32.gmra.mrb[0].mxu0 %v2867
        %v3185 = vpop.f32.mrb[0].mxu0
        %v3186 = vadd.f32 %v3040, %v3185
        %v3187 = vpop.f32.mrb[0].mxu0
        %v3188 = vadd.f32 %v3044, %v3187
        %3189 = vmatprep.mubr.f32.mxu0 %v2870
        %3190 = vmatmul.mubr.f32.gmra.mrb[0].mxu0 %v2869
        %v3191 = vpop.f32.mrb[0].mxu0
        %v3192 = vadd.f32 %v3040, %v3191
        %v3193 = vpop.f32.mrb[0].mxu0
        %v3194 = vadd.f32 %v3044, %v3193
        %3195 = vmatprep.mubr.f32.mxu0 %v2872
        %3196 = vmatmul.mubr.f32.gmra.mrb[0].mxu0 %v2871
        %v3197 = vpop.f32.mrb[0].mxu0
        %v3198 = vadd.f32 %v3040, %v3197
        %v3199 = vpop.f32.mrb[0].mxu0
        %v3200 = vadd.f32 %v3044, %v3199
        %3201 = vmatprep.mubr.f32.mxu0 %v2874
        %3202 = vmatmul.mubr.f32.gmra.mrb[0].mxu0 %v2873
        %v3203 = vpop.f32.mrb[0].mxu0
        %v3204 = vadd.f32 %v3040, %v3203
        %v3205 = vpop.f32.mrb[0].mxu0
        %v3206 = vadd.f32 %v3044, %v3205
        %3207 = vmatprep.mubr.f32.mxu0 %v2876
        %3208 = vmatmul.mubr.f32.gmra.mrb[0].mxu0 %v2875
        %v3209 = vpop.f32.mrb[0].mxu0
        %v3210 = vadd.f32 %v3040, %v3209
        %v3211 = vpop.f32.mrb[0].mxu0
        %v3212 = vadd.f32 %v3044, %v3211
        %3213 = vmatprep.mubr.f32.mxu0 %v2878
        %3214 = vmatmul.mubr.f32.gmra.mrb[0].mxu0 %v2877
        %v3215 = vpop.f32.mrb[0].mxu0
        %v3216 = vadd.f32 %v3040, %v3215
        %v3217 = vpop.f32.mrb[0].mxu0
        %v3218 = vadd.f32 %v3044, %v3217
        %3219 = vmatprep.mubr.f32.mxu0 %v2880
        %3220 = vmatmul.mubr.f32.gmra.mrb[0].mxu0 %v2879
        %v3221 = vpop.f32.mrb[0].mxu0
        %v3222 = vadd.f32 %v3040, %v3221
        %v3223 = vpop.f32.mrb[0].mxu0
        %v3224 = vadd.f32 %v3044, %v3223
        %3225 = vmatprep.mubr.f32.mxu0 %v2882
        %3226 = vmatmul.mubr.f32.gmra.mrb[0].mxu0 %v2881
        %v3227 = vpop.f32.mrb[0].mxu0
        %v3228 = vadd.f32 %v3040, %v3227
        %v3229 = vpop.f32.mrb[0].mxu0
        %v3230 = vadd.f32 %v3044, %v3229
        %3231 = vmatprep.mubr.f32.mxu0 %v2884
        %3232 = vmatmul.mubr.f32.gmra.mrb[0].mxu0 %v2883
        %v3233 = vpop.f32.mrb[0].mxu0
        %v3234 = vadd.f32 %v3040, %v3233
        %v3235 = vpop.f32.mrb[0].mxu0
        %v3236 = vadd.f32 %v3044, %v3235
        %3237 = vmatprep.mubr.f32.mxu0 %v2886
        %3238 = vmatmul.mubr.f32.gmra.mrb[0].mxu0 %v2885
        %v3239 = vpop.f32.mrb[0].mxu0
        %v3240 = vadd.f32 %v3040, %v3239
        %v3241 = vpop.f32.mrb[0].mxu0
        %v3242 = vadd.f32 %v3044, %v3241
        %3243 = vmatprep.mubr.f32.mxu0 %v2888
        %3244 = vmatmul.mubr.f32.gmra.mrb[0].mxu0 %v2887
        %v3245 = vpop.f32.mrb[0].mxu0
        %v3246 = vadd.f32 %v3040, %v3245
        %v3247 = vpop.f32.mrb[0].mxu0
        %v3248 = vadd.f32 %v3044, %v3247
        %3249 = vmatprep.mubr.f32.mxu0 %v2890
        %3250 = vmatmul.mubr.f32.gmra.mrb[0].mxu0 %v2889
        %v3251 = vpop.f32.mrb[0].mxu0
        %v3252 = vadd.f32 %v3040, %v3251
        %v3253 = vpop.f32.mrb[0].mxu0
        %v3254 = vadd.f32 %v3044, %v3253
        %3255 = vmatprep.mubr.f32.mxu0 %v2892
        %3256 = vmatmul.mubr.f32.gmra.mrb[0].mxu0 %v2891
        %v3257 = vpop.f32.mrb[0].mxu0
        %v3258 = vadd.f32 %v3040, %v3257
        %v3259 = vpop.f32.mrb[0].mxu0
        %v3260 = vadd.f32 %v3044, %v3259
        %3261 = vmatprep.mubr.f32.mxu0 %v2894
        %3262 = vmatmul.mubr.f32.gmra.mrb[0].mxu0 %v2893
        %v3263 = vpop.f32.mrb[0].mxu0
        %v3264 = vadd.f32 %v3040, %v3263
        %v3265 = vpop.f32.mrb[0].mxu0
        %v3266 = vadd.f32 %v3044, %v3265
        %3267 = vmatprep.mubr.f32.mxu0 %v2896
        %3268 = vmatmul.mubr.f32.gmra.mrb[0].mxu0 %v2895
        %v3269 = vpop.f32.mrb[0].mxu0
        %v3270 = vadd.f32 %v3040, %v3269
        %v3271 = vpop.f32.mrb[0].mxu0
        %v3272 = vadd.f32 %v3044, %v3271
        %3273 = vmatprep.mubr.f32.mxu0 %v2898
        %3274 = vmatmul.mubr.f32.gmra.mrb[0].mxu0 %v2897
        %v3275 = vpop.f32.mrb[0].mxu0
        %v3276 = vadd.f32 %v3040, %v3275
        %v3277 = vpop.f32.mrb[0].mxu0
        %v3278 = vadd.f32 %v3044, %v3277
        %3279 = vmatprep.mubr.f32.mxu0 %v2900
        %3280 = vmatmul.mubr.f32.gmra.mrb[0].mxu0 %v2899
        %v3281 = vpop.f32.mrb[0].mxu0
        %v3282 = vadd.f32 %v3040, %v3281
        %v3283 = vpop.f32.mrb[0].mxu0
        %v3284 = vadd.f32 %v3044, %v3283
        %3285 = vmatprep.mubr.f32.mxu0 %v2902
        %3286 = vmatmul.mubr.f32.gmra.mrb[0].mxu0 %v2901
        %v3287 = vpop.f32.mrb[0].mxu0
        %v3288 = vadd.f32 %v3040, %v3287
        %v3289 = vpop.f32.mrb[0].mxu0
        %v3290 = vadd.f32 %v3044, %v3289
        %3291 = vmatprep.mubr.f32.mxu0 %v2904
        %3292 = vmatmul.mubr.f32.gmra.mrb[0].mxu0 %v2903
        %v3293 = vpop.f32.mrb[0].mxu0
        %v3294 = vadd.f32 %v3040, %v3293
        %v3295 = vpop.f32.mrb[0].mxu0
        %v3296 = vadd.f32 %v3044, %v3295
        %3297 = vmatprep.mubr.f32.mxu0 %v2906
        %3298 = vmatmul.mubr.f32.gmra.mrb[0].mxu0 %v2905
        %v3299 = vpop.f32.mrb[0].mxu0
        %v3300 = vadd.f32 %v3040, %v3299
        %v3301 = vpop.f32.mrb[0].mxu0
        %v3302 = vadd.f32 %v3044, %v3301
        %3303 = vmatprep.mubr.f32.mxu0 %v2908
        %3304 = vmatmul.mubr.f32.gmra.mrb[0].mxu0 %v2907
        %v3305 = vpop.f32.mrb[0].mxu0
        %v3306 = vadd.f32 %v3040, %v3305
        %v3307 = vpop.f32.mrb[0].mxu0
        %v3308 = vadd.f32 %v3044, %v3307
        %3309 = vmatprep.mubr.f32.mxu0 %v2910
        %3310 = vmatmul.mubr.f32.gmra.mrb[0].mxu0 %v2909
        %v3311 = vpop.f32.mrb[0].mxu0
        %v3312 = vadd.f32 %v3040, %v3311
        %v3313 = vpop.f32.mrb[0].mxu0
        %v3314 = vadd.f32 %v3044, %v3313
        %3315 = vmatprep.mubr.f32.mxu0 %v2912
        %3316 = vmatmul.mubr.f32.gmra.mrb[0].mxu0 %v2911
        %v3317 = vpop.f32.mrb[0].mxu0
        %v3318 = vadd.f32 %v3040, %v3317
        %v3319 = vpop.f32.mrb[0].mxu0
        %v3320 = vadd.f32 %v3044, %v3319
        %3321 = vmatprep.mubr.f32.mxu0 %v2914
        %3322 = vmatmul.mubr.f32.gmra.mrb[0].mxu0 %v2913
        %v3323 = vpop.f32.mrb[0].mxu0
        %v3324 = vadd.f32 %v3040, %v3323
        %v3325 = vpop.f32.mrb[0].mxu0
        %v3326 = vadd.f32 %v3044, %v3325
        %3327 = vmatprep.mubr.f32.mxu0 %v2916
        %3328 = vmatmul.mubr.f32.gmra.mrb[0].mxu0 %v2915
        %v3329 = vpop.f32.mrb[0].mxu0
        %v3330 = vadd.f32 %v3040, %v3329
        %v3331 = vpop.f32.mrb[0].mxu0
        %v3332 = vadd.f32 %v3044, %v3331
        %3333 = vmatprep.mubr.f32.mxu0 %v2918
        %3334 = vmatmul.mubr.f32.gmra.mrb[0].mxu0 %v2917
        %v3335 = vpop.f32.mrb[0].mxu0
        %v3336 = vadd.f32 %v3040, %v3335
        %v3337 = vpop.f32.mrb[0].mxu0
        %v3338 = vadd.f32 %v3044, %v3337
        %3339 = vmatprep.mubr.f32.mxu0 %v2920
        %3340 = vmatmul.mubr.f32.gmra.mrb[0].mxu0 %v2919
        %v3341 = vpop.f32.mrb[0].mxu0
        %v3342 = vadd.f32 %v3040, %v3341
        %v3343 = vpop.f32.mrb[0].mxu0
        %v3344 = vadd.f32 %v3044, %v3343
        %3345 = vmatprep.mubr.f32.mxu0 %v2922
        %3346 = vmatmul.mubr.f32.gmra.mrb[0].mxu0 %v2921
        %v3347 = vpop.f32.mrb[0].mxu0
        %v3348 = vadd.f32 %v3040, %v3347
        %v3349 = vpop.f32.mrb[0].mxu0
        %v3350 = vadd.f32 %v3044, %v3349
        %3351 = vmatprep.mubr.f32.mxu0 %v2924
        %3352 = vmatmul.mubr.f32.gmra.mrb[0].mxu0 %v2923
        %v3353 = vpop.f32.mrb[0].mxu0
        %v3354 = vadd.f32 %v3040, %v3353
        %v3355 = vpop.f32.mrb[0].mxu0
        %v3356 = vadd.f32 %v3044, %v3355
        %3357 = vmatprep.mubr.f32.mxu0 %v2926
        %3358 = vmatmul.mubr.f32.gmra.mrb[0].mxu0 %v2925
        %v3359 = vpop.f32.mrb[0].mxu0
        %v3360 = vadd.f32 %v3040, %v3359
        %v3361 = vpop.f32.mrb[0].mxu0
        %v3362 = vadd.f32 %v3044, %v3361
        %3363 = vmatprep.mubr.f32.mxu0 %v2928
        %3364 = vmatmul.mubr.f32.gmra.mrb[0].mxu0 %v2927
        %v3365 = vpop.f32.mrb[0].mxu0
        %v3366 = vadd.f32 %v3040, %v3365
        %v3367 = vpop.f32.mrb[0].mxu0
        %v3368 = vadd.f32 %v3044, %v3367
        %3369 = vmatprep.mubr.f32.mxu0 %v2930
        %3370 = vmatmul.mubr.f32.gmra.mrb[0].mxu0 %v2929
        %v3371 = vpop.f32.mrb[0].mxu0
        %v3372 = vadd.f32 %v3040, %v3371
        %v3373 = vpop.f32.mrb[0].mxu0
        %v3374 = vadd.f32 %v3044, %v3373
        %3375 = vmatprep.mubr.f32.mxu0 %v2932
        %3376 = vmatmul.mubr.f32.gmra.mrb[0].mxu0 %v2931
        %v3377 = vpop.f32.mrb[0].mxu0
        %v3378 = vadd.f32 %v3040, %v3377
        %v3379 = vpop.f32.mrb[0].mxu0
        %v3380 = vadd.f32 %v3044, %v3379
        %3381 = vmatprep.mubr.f32.mxu0 %v2934
        %3382 = vmatmul.mubr.f32.gmra.mrb[0].mxu0 %v2933
        %v3383 = vpop.f32.mrb[0].mxu0
        %v3384 = vadd.f32 %v3040, %v3383
        %v3385 = vpop.f32.mrb[0].mxu0
        %v3386 = vadd.f32 %v3044, %v3385
        %3387 = vmatprep.mubr.f32.mxu0 %v2936
        %3388 = vmatmul.mubr.f32.gmra.mrb[0].mxu0 %v2935
        %v3389 = vpop.f32.mrb[0].mxu0
        %v3390 = vadd.f32 %v3040, %v3389
        %v3391 = vpop.f32.mrb[0].mxu0
        %v3392 = vadd.f32 %v3044, %v3391
        %3393 = vmatprep.mubr.f32.mxu0 %v2938
        %3394 = vmatmul.mubr.f32.gmra.mrb[0].mxu0 %v2937
        %v3395 = vpop.f32.mrb[0].mxu0
        %v3396 = vadd.f32 %v3040, %v3395
        %v3397 = vpop.f32.mrb[0].mxu0
        %v3398 = vadd.f32 %v3044, %v3397
        %3399 = vmatprep.mubr.f32.mxu0 %v2940
        %3400 = vmatmul.mubr.f32.gmra.mrb[0].mxu0 %v2939
        %v3401 = vpop.f32.mrb[0].mxu0
        %v3402 = vadd.f32 %v3040, %v3401
        %v3403 = vpop.f32.mrb[0].mxu0
        %v3404 = vadd.f32 %v3044, %v3403
        %3405 = vmatprep.mubr.f32.mxu0 %v2942
        %3406 = vmatmul.mubr.f32.gmra.mrb[0].mxu0 %v2941
        %v3407 = vpop.f32.mrb[0].mxu0
        %v3408 = vadd.f32 %v3040, %v3407
        %v3409 = vpop.f32.mrb[0].mxu0
        %v3410 = vadd.f32 %v3044, %v3409
        %3411 = vmatprep.mubr.f32.mxu0 %v2944
        %3412 = vmatmul.mubr.f32.gmra.mrb[0].mxu0 %v2943
        %v3413 = vpop.f32.mrb[0].mxu0
        %v3414 = vadd.f32 %v3040, %v3413
        %v3415 = vpop.f32.mrb[0].mxu0
        %v3416 = vadd.f32 %v3044, %v3415
        %3417 = vmatprep.mubr.f32.mxu0 %v2946
        %3418 = vmatmul.mubr.f32.gmra.mrb[0].mxu0 %v2945
        %v3419 = vpop.f32.mrb[0].mxu0
        %v3420 = vadd.f32 %v3040, %v3419
        %v3421 = vpop.f32.mrb[0].mxu0
        %v3422 = vadd.f32 %v3044, %v3421
        %3423 = vmatprep.mubr.f32.mxu0 %v2948
        %3424 = vmatmul.mubr.f32.gmra.mrb[0].mxu0 %v2947
        %v3425 = vpop.f32.mrb[0].mxu0
        %v3426 = vadd.f32 %v3040, %v3425
        %v3427 = vpop.f32.mrb[0].mxu0
        %v3428 = vadd.f32 %v3044, %v3427
        %3429 = vmatprep.mubr.f32.mxu0 %v2950
        %3430 = vmatmul.mubr.f32.gmra.mrb[0].mxu0 %v2949
        %v3431 = vpop.f32.mrb[0].mxu0
        %v3432 = vadd.f32 %v3040, %v3431
        %v3433 = vpop.f32.mrb[0].mxu0
        %v3434 = vadd.f32 %v3044, %v3433
        %3435 = vmatprep.mubr.f32.mxu0 %v2952
        %3436 = vmatmul.mubr.f32.gmra.mrb[0].mxu0 %v2951
        %v3437 = vpop.f32.mrb[0].mxu0
        %v3438 = vadd.f32 %v3040, %v3437
        %v3439 = vpop.f32.mrb[0].mxu0
        %v3440 = vadd.f32 %v3044, %v3439
        %3441 = vmatprep.mubr.f32.mxu0 %v2954
        %3442 = vmatmul.mubr.f32.gmra.mrb[0].mxu0 %v2953
        %v3443 = vpop.f32.mrb[0].mxu0
        %v3444 = vadd.f32 %v3040, %v3443
        %v3445 = vpop.f32.mrb[0].mxu0
        %v3446 = vadd.f32 %v3044, %v3445
        %3447 = vmatprep.mubr.f32.mxu0 %v2956
        %3448 = vmatmul.mubr.f32.gmra.mrb[0].mxu0 %v2955
        %v3449 = vpop.f32.mrb[0].mxu0
        %v3450 = vadd.f32 %v3040, %v3449
        %v3451 = vpop.f32.mrb[0].mxu0
        %v3452 = vadd.f32 %v3044, %v3451
        %3453 = vmatprep.mubr.f32.mxu0 %v2958
        %3454 = vmatmul.mubr.f32.gmra.mrb[0].mxu0 %v2957
        %v3455 = vpop.f32.mrb[0].mxu0
        %v3456 = vadd.f32 %v3040, %v3455
        %v3457 = vpop.f32.mrb[0].mxu0
        %v3458 = vadd.f32 %v3044, %v3457
        %3459 = vmatprep.mubr.f32.mxu0 %v2960
        %3460 = vmatmul.mubr.f32.gmra.mrb[0].mxu0 %v2959
        %v3461 = vpop.f32.mrb[0].mxu0
        %v3462 = vadd.f32 %v3040, %v3461
        %v3463 = vpop.f32.mrb[0].mxu0
        %v3464 = vadd.f32 %v3044, %v3463
        %3465 = vmatprep.mubr.f32.mxu0 %v2962
        %3466 = vmatmul.mubr.f32.gmra.mrb[0].mxu0 %v2961
        %v3467 = vpop.f32.mrb[0].mxu0
        %v3468 = vadd.f32 %v3040, %v3467
        %v3469 = vpop.f32.mrb[0].mxu0
        %v3470 = vadd.f32 %v3044, %v3469
        %3471 = vmatprep.mubr.f32.mxu0 %v2964
        %3472 = vmatmul.mubr.f32.gmra.mrb[0].mxu0 %v2963
        %v3473 = vpop.f32.mrb[0].mxu0
        %v3474 = vadd.f32 %v3040, %v3473
        %v3475 = vpop.f32.mrb[0].mxu0
        %v3476 = vadd.f32 %v3044, %v3475
        %3477 = vmatprep.mubr.f32.mxu0 %v2966
        %3478 = vmatmul.mubr.f32.gmra.mrb[0].mxu0 %v2965
        %v3479 = vpop.f32.mrb[0].mxu0
        %v3480 = vadd.f32 %v3040, %v3479
        %v3481 = vpop.f32.mrb[0].mxu0
        %v3482 = vadd.f32 %v3044, %v3481
        %3483 = vmatprep.mubr.f32.mxu0 %v2968
        %3484 = vmatmul.mubr.f32.gmra.mrb[0].mxu0 %v2967
        %v3485 = vpop.f32.mrb[0].mxu0
        %v3486 = vadd.f32 %v3040, %v3485
        %v3487 = vpop.f32.mrb[0].mxu0
        %v3488 = vadd.f32 %v3044, %v3487
        %3489 = vmatprep.mubr.f32.mxu0 %v2970
        %3490 = vmatmul.mubr.f32.gmra.mrb[0].mxu0 %v2969
        %v3491 = vpop.f32.mrb[0].mxu0
        %v3492 = vadd.f32 %v3040, %v3491
        %v3493 = vpop.f32.mrb[0].mxu0
        %v3494 = vadd.f32 %v3044, %v3493
        %3495 = vdwg.mxu0
        %v3496 = vmax.f32 %v3114, 0.0
        %v3497 = vmax.f32 %v3116, 0.0
        %v3498 = vmax.f32 %v3120, 0.0
        %v3499 = vmax.f32 %v3122, 0.0
        %v3500 = vmax.f32 %v3126, 0.0
        %v3501 = vmax.f32 %v3128, 0.0
        %v3502 = vmax.f32 %v3132, 0.0
        %v3503 = vmax.f32 %v3134, 0.0
        %v3504 = vmax.f32 %v3138, 0.0
        %v3505 = vmax.f32 %v3140, 0.0
        %v3506 = vmax.f32 %v3144, 0.0
        %v3507 = vmax.f32 %v3146, 0.0
        %v3508 = vmax.f32 %v3150, 0.0
        %v3509 = vmax.f32 %v3152, 0.0
        %v3510 = vmax.f32 %v3156, 0.0
        %v3511 = vmax.f32 %v3158, 0.0
        %v3512 = vmax.f32 %v3162, 0.0
        %v3513 = vmax.f32 %v3164, 0.0
        %v3514 = vmax.f32 %v3168, 0.0
        %v3515 = vmax.f32 %v3170, 0.0
        %v3516 = vmax.f32 %v3174, 0.0
        %v3517 = vmax.f32 %v3176, 0.0
        %v3518 = vmax.f32 %v3180, 0.0
        %v3519 = vmax.f32 %v3182, 0.0
        %v3520 = vmax.f32 %v3186, 0.0
        %v3521 = vmax.f32 %v3188, 0.0
        %v3522 = vmax.f32 %v3192, 0.0
        %v3523 = vmax.f32 %v3194, 0.0
        %v3524 = vmax.f32 %v3198, 0.0
        %v3525 = vmax.f32 %v3200, 0.0
        %v3526 = vmax.f32 %v3204, 0.0
        %v3527 = vmax.f32 %v3206, 0.0
        %v3528 = vmax.f32 %v3210, 0.0
        %v3529 = vmax.f32 %v3212, 0.0
        %v3530 = vmax.f32 %v3216, 0.0
        %v3531 = vmax.f32 %v3218, 0.0
        %v3532 = vmax.f32 %v3222, 0.0
        %v3533 = vmax.f32 %v3224, 0.0
        %v3534 = vmax.f32 %v3228, 0.0
        %v3535 = vmax.f32 %v3230, 0.0
        %v3536 = vmax.f32 %v3234, 0.0
        %v3537 = vmax.f32 %v3236, 0.0
        %v3538 = vmax.f32 %v3240, 0.0
        %v3539 = vmax.f32 %v3242, 0.0
        %v3540 = vmax.f32 %v3246, 0.0
        %v3541 = vmax.f32 %v3248, 0.0
        %v3542 = vmax.f32 %v3252, 0.0
        %v3543 = vmax.f32 %v3254, 0.0
        %v3544 = vmax.f32 %v3258, 0.0
        %v3545 = vmax.f32 %v3260, 0.0
        %v3546 = vmax.f32 %v3264, 0.0
        %v3547 = vmax.f32 %v3266, 0.0
        %v3548 = vmax.f32 %v3270, 0.0
        %v3549 = vmax.f32 %v3272, 0.0
        %v3550 = vmax.f32 %v3276, 0.0
        %v3551 = vmax.f32 %v3278, 0.0
        %v3552 = vmax.f32 %v3282, 0.0
        %v3553 = vmax.f32 %v3284, 0.0
        %v3554 = vmax.f32 %v3288, 0.0
        %v3555 = vmax.f32 %v3290, 0.0
        %v3556 = vmax.f32 %v3294, 0.0
        %v3557 = vmax.f32 %v3296, 0.0
        %v3558 = vmax.f32 %v3300, 0.0
        %v3559 = vmax.f32 %v3302, 0.0
        %v3560 = vmax.f32 %v3306, 0.0
        %v3561 = vmax.f32 %v3308, 0.0
        %v3562 = vmax.f32 %v3312, 0.0
        %v3563 = vmax.f32 %v3314, 0.0
        %v3564 = vmax.f32 %v3318, 0.0
        %v3565 = vmax.f32 %v3320, 0.0
        %v3566 = vmax.f32 %v3324, 0.0
        %v3567 = vmax.f32 %v3326, 0.0
        %v3568 = vmax.f32 %v3330, 0.0
        %v3569 = vmax.f32 %v3332, 0.0
        %v3570 = vmax.f32 %v3336, 0.0
        %v3571 = vmax.f32 %v3338, 0.0
        %v3572 = vmax.f32 %v3342, 0.0
        %v3573 = vmax.f32 %v3344, 0.0
        %v3574 = vmax.f32 %v3348, 0.0
        %v3575 = vmax.f32 %v3350, 0.0
        %v3576 = vmax.f32 %v3354, 0.0
        %v3577 = vmax.f32 %v3356, 0.0
        %v3578 = vmax.f32 %v3360, 0.0
        %v3579 = vmax.f32 %v3362, 0.0
        %v3580 = vmax.f32 %v3366, 0.0
        %v3581 = vmax.f32 %v3368, 0.0
        %v3582 = vmax.f32 %v3372, 0.0
        %v3583 = vmax.f32 %v3374, 0.0
        %v3584 = vmax.f32 %v3378, 0.0
        %v3585 = vmax.f32 %v3380, 0.0
        %v3586 = vmax.f32 %v3384, 0.0
        %v3587 = vmax.f32 %v3386, 0.0
        %v3588 = vmax.f32 %v3390, 0.0
        %v3589 = vmax.f32 %v3392, 0.0
        %v3590 = vmax.f32 %v3396, 0.0
        %v3591 = vmax.f32 %v3398, 0.0
        %v3592 = vmax.f32 %v3402, 0.0
        %v3593 = vmax.f32 %v3404, 0.0
        %v3594 = vmax.f32 %v3408, 0.0
        %v3595 = vmax.f32 %v3410, 0.0
        %v3596 = vmax.f32 %v3414, 0.0
        %v3597 = vmax.f32 %v3416, 0.0
        %v3598 = vmax.f32 %v3420, 0.0
        %v3599 = vmax.f32 %v3422, 0.0
        %v3600 = vmax.f32 %v3426, 0.0
        %v3601 = vmax.f32 %v3428, 0.0
        %v3602 = vmax.f32 %v3432, 0.0
        %v3603 = vmax.f32 %v3434, 0.0
        %v3604 = vmax.f32 %v3438, 0.0
        %v3605 = vmax.f32 %v3440, 0.0
        %v3606 = vmax.f32 %v3444, 0.0
        %v3607 = vmax.f32 %v3446, 0.0
        %v3608 = vmax.f32 %v3450, 0.0
        %v3609 = vmax.f32 %v3452, 0.0
        %v3610 = vmax.f32 %v3456, 0.0
        %v3611 = vmax.f32 %v3458, 0.0
        %v3612 = vmax.f32 %v3462, 0.0
        %v3613 = vmax.f32 %v3464, 0.0
        %v3614 = vmax.f32 %v3468, 0.0
        %v3615 = vmax.f32 %v3470, 0.0
        %v3616 = vmax.f32 %v3474, 0.0
        %v3617 = vmax.f32 %v3476, 0.0
        %v3618 = vmax.f32 %v3480, 0.0
        %v3619 = vmax.f32 %v3482, 0.0
        %v3620 = vmax.f32 %v3486, 0.0
        %v3621 = vmax.f32 %v3488, 0.0
        %v3622 = vmax.f32 %v3492, 0.0
        %v3623 = vmax.f32 %v3494, 0.0
        %v3624 = vld [vmem:[#allocation3] sm:$0xff]
        %v3625 = vld [vmem:[#allocation3 + $0x8] sm:$0xff]
        %v3626 = vld [vmem:[#allocation3 + $0x10] sm:$0xff]
        %v3627 = vld [vmem:[#allocation3 + $0x18] sm:$0xff]
        %v3628 = vld [vmem:[#allocation3 + $0x20] sm:$0xff]
        %v3629 = vld [vmem:[#allocation3 + $0x28] sm:$0xff]
        %v3630 = vld [vmem:[#allocation3 + $0x30] sm:$0xff]
        %v3631 = vld [vmem:[#allocation3 + $0x38] sm:$0xff]
        %v3632 = vld [vmem:[#allocation3 + $0x40] sm:$0xff]
        %v3633 = vld [vmem:[#allocation3 + $0x48] sm:$0xff]
        %v3634 = vld [vmem:[#allocation3 + $0x50] sm:$0xff]
        %v3635 = vld [vmem:[#allocation3 + $0x58] sm:$0xff]
        %v3636 = vld [vmem:[#allocation3 + $0x60] sm:$0xff]
        %v3637 = vld [vmem:[#allocation3 + $0x68] sm:$0xff]
        %v3638 = vld [vmem:[#allocation3 + $0x70] sm:$0xff]
        %v3639 = vld [vmem:[#allocation3 + $0x78] sm:$0xff]
        %v3640 = vld [vmem:[#allocation3 + $0x80] sm:$0xff]
        %v3641 = vld [vmem:[#allocation3 + $0x88] sm:$0xff]
        %v3642 = vld [vmem:[#allocation3 + $0x90] sm:$0xff]
        %v3643 = vld [vmem:[#allocation3 + $0x98] sm:$0xff]
        %v3644 = vld [vmem:[#allocation3 + $0xa0] sm:$0xff]
        %v3645 = vld [vmem:[#allocation3 + $0xa8] sm:$0xff]
        %v3646 = vld [vmem:[#allocation3 + $0xb0] sm:$0xff]
        %v3647 = vld [vmem:[#allocation3 + $0xb8] sm:$0xff]
        %v3648 = vld [vmem:[#allocation3 + $0xc0] sm:$0xff]
        %v3649 = vld [vmem:[#allocation3 + $0xc8] sm:$0xff]
        %v3650 = vld [vmem:[#allocation3 + $0xd0] sm:$0xff]
        %v3651 = vld [vmem:[#allocation3 + $0xd8] sm:$0xff]
        %v3652 = vld [vmem:[#allocation3 + $0xe0] sm:$0xff]
        %v3653 = vld [vmem:[#allocation3 + $0xe8] sm:$0xff]
        %v3654 = vld [vmem:[#allocation3 + $0xf0] sm:$0xff]
        %v3655 = vld [vmem:[#allocation3 + $0xf8] sm:$0xff]
        %v3656 = vld [vmem:[#allocation3 + $0x100] sm:$0xff]
        %v3657 = vld [vmem:[#allocation3 + $0x108] sm:$0xff]
        %v3658 = vld [vmem:[#allocation3 + $0x110] sm:$0xff]
        %v3659 = vld [vmem:[#allocation3 + $0x118] sm:$0xff]
        %v3660 = vld [vmem:[#allocation3 + $0x120] sm:$0xff]
        %v3661 = vld [vmem:[#allocation3 + $0x128] sm:$0xff]
        %v3662 = vld [vmem:[#allocation3 + $0x130] sm:$0xff]
        %v3663 = vld [vmem:[#allocation3 + $0x138] sm:$0xff]
        %v3664 = vld [vmem:[#allocation3 + $0x140] sm:$0xff]
        %v3665 = vld [vmem:[#allocation3 + $0x148] sm:$0xff]
        %v3666 = vld [vmem:[#allocation3 + $0x150] sm:$0xff]
        %v3667 = vld [vmem:[#allocation3 + $0x158] sm:$0xff]
        %v3668 = vld [vmem:[#allocation3 + $0x160] sm:$0xff]
        %v3669 = vld [vmem:[#allocation3 + $0x168] sm:$0xff]
        %v3670 = vld [vmem:[#allocation3 + $0x170] sm:$0xff]
        %v3671 = vld [vmem:[#allocation3 + $0x178] sm:$0xff]
        %v3672 = vld [vmem:[#allocation3 + $0x180] sm:$0xff]
        %v3673 = vld [vmem:[#allocation3 + $0x188] sm:$0xff]
        %v3674 = vld [vmem:[#allocation3 + $0x190] sm:$0xff]
        %v3675 = vld [vmem:[#allocation3 + $0x198] sm:$0xff]
        %v3676 = vld [vmem:[#allocation3 + $0x1a0] sm:$0xff]
        %v3677 = vld [vmem:[#allocation3 + $0x1a8] sm:$0xff]
        %v3678 = vld [vmem:[#allocation3 + $0x1b0] sm:$0xff]
        %v3679 = vld [vmem:[#allocation3 + $0x1b8] sm:$0xff]
        %v3680 = vld [vmem:[#allocation3 + $0x1c0] sm:$0xff]
        %v3681 = vld [vmem:[#allocation3 + $0x1c8] sm:$0xff]
        %v3682 = vld [vmem:[#allocation3 + $0x1d0] sm:$0xff]
        %v3683 = vld [vmem:[#allocation3 + $0x1d8] sm:$0xff]
        %v3684 = vld [vmem:[#allocation3 + $0x1e0] sm:$0xff]
        %v3685 = vld [vmem:[#allocation3 + $0x1e8] sm:$0xff]
        %v3686 = vld [vmem:[#allocation3 + $0x1f0] sm:$0xff]
        %v3687 = vld [vmem:[#allocation3 + $0x1f8] sm:$0xff]
        %v3688 = vld [vmem:[%s8] sm:$0x3]
        %v3690 = vlaneseq
        %v3691 = vshrl.u32 %v3690, 7
        %v3692 = vsub.s32 0, %v3691
        %v3693 = vrot.slane %v3688, %v3692
        %v3694 = vlaneseq
        %v3695 = vshrl.u32 %v3694, 7
        %v3696 = vsub.s32 1, %v3695
        %v3697 = vrot.slane %v3688, %v3696
        %3700 = vmatprep.subr.mxu0 %v3625
        %3701 = vmatpush1.msra.mxu0 %v3624
        %3702 = vmatprep.subr.mxu0 %v3627
        %3703 = vmatpush1.msra.mxu0 %v3626
        %3704 = vmatprep.subr.mxu0 %v3629
        %3705 = vmatpush1.msra.mxu0 %v3628
        %3706 = vmatprep.subr.mxu0 %v3631
        %3707 = vmatpush1.msra.mxu0 %v3630
        %3708 = vmatprep.subr.mxu0 %v3633
        %3709 = vmatpush1.msra.mxu0 %v3632
        %3710 = vmatprep.subr.mxu0 %v3635
        %3711 = vmatpush1.msra.mxu0 %v3634
        %3712 = vmatprep.subr.mxu0 %v3637
        %3713 = vmatpush1.msra.mxu0 %v3636
        %3714 = vmatprep.subr.mxu0 %v3639
        %3715 = vmatpush1.msra.mxu0 %v3638
        %3716 = vmatprep.subr.mxu0 %v3641
        %3717 = vmatpush1.msra.mxu0 %v3640
        %3718 = vmatprep.subr.mxu0 %v3643
        %3719 = vmatpush1.msra.mxu0 %v3642
        %3720 = vmatprep.subr.mxu0 %v3645
        %3721 = vmatpush1.msra.mxu0 %v3644
        %3722 = vmatprep.subr.mxu0 %v3647
        %3723 = vmatpush1.msra.mxu0 %v3646
        %3724 = vmatprep.subr.mxu0 %v3649
        %3725 = vmatpush1.msra.mxu0 %v3648
        %3726 = vmatprep.subr.mxu0 %v3651
        %3727 = vmatpush1.msra.mxu0 %v3650
        %3728 = vmatprep.subr.mxu0 %v3653
        %3729 = vmatpush1.msra.mxu0 %v3652
        %3730 = vmatprep.subr.mxu0 %v3655
        %3731 = vmatpush1.msra.mxu0 %v3654
        %3732 = vmatprep.subr.mxu0 %v3657
        %3733 = vmatpush1.msra.mxu0 %v3656
        %3734 = vmatprep.subr.mxu0 %v3659
        %3735 = vmatpush1.msra.mxu0 %v3658
        %3736 = vmatprep.subr.mxu0 %v3661
        %3737 = vmatpush1.msra.mxu0 %v3660
        %3738 = vmatprep.subr.mxu0 %v3663
        %3739 = vmatpush1.msra.mxu0 %v3662
        %3740 = vmatprep.subr.mxu0 %v3665
        %3741 = vmatpush1.msra.mxu0 %v3664
        %3742 = vmatprep.subr.mxu0 %v3667
        %3743 = vmatpush1.msra.mxu0 %v3666
        %3744 = vmatprep.subr.mxu0 %v3669
        %3745 = vmatpush1.msra.mxu0 %v3668
        %3746 = vmatprep.subr.mxu0 %v3671
        %3747 = vmatpush1.msra.mxu0 %v3670
        %3748 = vmatprep.subr.mxu0 %v3673
        %3749 = vmatpush1.msra.mxu0 %v3672
        %3750 = vmatprep.subr.mxu0 %v3675
        %3751 = vmatpush1.msra.mxu0 %v3674
        %3752 = vmatprep.subr.mxu0 %v3677
        %3753 = vmatpush1.msra.mxu0 %v3676
        %3754 = vmatprep.subr.mxu0 %v3679
        %3755 = vmatpush1.msra.mxu0 %v3678
        %3756 = vmatprep.subr.mxu0 %v3681
        %3757 = vmatpush1.msra.mxu0 %v3680
        %3758 = vmatprep.subr.mxu0 %v3683
        %3759 = vmatpush1.msra.mxu0 %v3682
        %3760 = vmatprep.subr.mxu0 %v3685
        %3761 = vmatpush1.msra.mxu0 %v3684
        %3762 = vmatprep.subr.mxu0 %v3687
        %3763 = vmatpush1.msra.mxu0 %v3686
        %3764 = vmatprep.mubr.f32.mxu0 %v3497
        %3765 = vmatmul.mubr.f32.gmra.mrb[0].mxu0 %v3496
        %v3766 = vpop.f32.mrb[0].mxu0
        %v3767 = vadd.f32 %v3693, %v3766
        %v3768 = vpop.f32.mrb[0].mxu0
        %v3769 = vadd.f32 %v3697, %v3768
        %3770 = vmatprep.mubr.f32.mxu0 %v3499
        %3771 = vmatmul.mubr.f32.gmra.mrb[0].mxu0 %v3498
        %v3772 = vpop.f32.mrb[0].mxu0
        %v3773 = vadd.f32 %v3693, %v3772
        %v3774 = vpop.f32.mrb[0].mxu0
        %v3775 = vadd.f32 %v3697, %v3774
        %3776 = vmatprep.mubr.f32.mxu0 %v3501
        %3777 = vmatmul.mubr.f32.gmra.mrb[0].mxu0 %v3500
        %v3778 = vpop.f32.mrb[0].mxu0
        %v3779 = vadd.f32 %v3693, %v3778
        %v3780 = vpop.f32.mrb[0].mxu0
        %v3781 = vadd.f32 %v3697, %v3780
        %3782 = vmatprep.mubr.f32.mxu0 %v3503
        %3783 = vmatmul.mubr.f32.gmra.mrb[0].mxu0 %v3502
        %v3784 = vpop.f32.mrb[0].mxu0
        %v3785 = vadd.f32 %v3693, %v3784
        %v3786 = vpop.f32.mrb[0].mxu0
        %v3787 = vadd.f32 %v3697, %v3786
        %3788 = vmatprep.mubr.f32.mxu0 %v3505
        %3789 = vmatmul.mubr.f32.gmra.mrb[0].mxu0 %v3504
        %v3790 = vpop.f32.mrb[0].mxu0
        %v3791 = vadd.f32 %v3693, %v3790
        %v3792 = vpop.f32.mrb[0].mxu0
        %v3793 = vadd.f32 %v3697, %v3792
        %3794 = vmatprep.mubr.f32.mxu0 %v3507
        %3795 = vmatmul.mubr.f32.gmra.mrb[0].mxu0 %v3506
        %v3796 = vpop.f32.mrb[0].mxu0
        %v3797 = vadd.f32 %v3693, %v3796
        %v3798 = vpop.f32.mrb[0].mxu0
        %v3799 = vadd.f32 %v3697, %v3798
        %3800 = vmatprep.mubr.f32.mxu0 %v3509
        %3801 = vmatmul.mubr.f32.gmra.mrb[0].mxu0 %v3508
        %v3802 = vpop.f32.mrb[0].mxu0
        %v3803 = vadd.f32 %v3693, %v3802
        %v3804 = vpop.f32.mrb[0].mxu0
        %v3805 = vadd.f32 %v3697, %v3804
        %3806 = vmatprep.mubr.f32.mxu0 %v3511
        %3807 = vmatmul.mubr.f32.gmra.mrb[0].mxu0 %v3510
        %v3808 = vpop.f32.mrb[0].mxu0
        %v3809 = vadd.f32 %v3693, %v3808
        %v3810 = vpop.f32.mrb[0].mxu0
        %v3811 = vadd.f32 %v3697, %v3810
        %3812 = vmatprep.mubr.f32.mxu0 %v3513
        %3813 = vmatmul.mubr.f32.gmra.mrb[0].mxu0 %v3512
        %v3814 = vpop.f32.mrb[0].mxu0
        %v3815 = vadd.f32 %v3693, %v3814
        %v3816 = vpop.f32.mrb[0].mxu0
        %v3817 = vadd.f32 %v3697, %v3816
        %3818 = vmatprep.mubr.f32.mxu0 %v3515
        %3819 = vmatmul.mubr.f32.gmra.mrb[0].mxu0 %v3514
        %v3820 = vpop.f32.mrb[0].mxu0
        %v3821 = vadd.f32 %v3693, %v3820
        %v3822 = vpop.f32.mrb[0].mxu0
        %v3823 = vadd.f32 %v3697, %v3822
        %3824 = vmatprep.mubr.f32.mxu0 %v3517
        %3825 = vmatmul.mubr.f32.gmra.mrb[0].mxu0 %v3516
        %v3826 = vpop.f32.mrb[0].mxu0
        %v3827 = vadd.f32 %v3693, %v3826
        %v3828 = vpop.f32.mrb[0].mxu0
        %v3829 = vadd.f32 %v3697, %v3828
        %3830 = vmatprep.mubr.f32.mxu0 %v3519
        %3831 = vmatmul.mubr.f32.gmra.mrb[0].mxu0 %v3518
        %v3832 = vpop.f32.mrb[0].mxu0
        %v3833 = vadd.f32 %v3693, %v3832
        %v3834 = vpop.f32.mrb[0].mxu0
        %v3835 = vadd.f32 %v3697, %v3834
        %3836 = vmatprep.mubr.f32.mxu0 %v3521
        %3837 = vmatmul.mubr.f32.gmra.mrb[0].mxu0 %v3520
        %v3838 = vpop.f32.mrb[0].mxu0
        %v3839 = vadd.f32 %v3693, %v3838
        %v3840 = vpop.f32.mrb[0].mxu0
        %v3841 = vadd.f32 %v3697, %v3840
        %3842 = vmatprep.mubr.f32.mxu0 %v3523
        %3843 = vmatmul.mubr.f32.gmra.mrb[0].mxu0 %v3522
        %v3844 = vpop.f32.mrb[0].mxu0
        %v3845 = vadd.f32 %v3693, %v3844
        %v3846 = vpop.f32.mrb[0].mxu0
        %v3847 = vadd.f32 %v3697, %v3846
        %3848 = vmatprep.mubr.f32.mxu0 %v3525
        %3849 = vmatmul.mubr.f32.gmra.mrb[0].mxu0 %v3524
        %v3850 = vpop.f32.mrb[0].mxu0
        %v3851 = vadd.f32 %v3693, %v3850
        %v3852 = vpop.f32.mrb[0].mxu0
        %v3853 = vadd.f32 %v3697, %v3852
        %3854 = vmatprep.mubr.f32.mxu0 %v3527
        %3855 = vmatmul.mubr.f32.gmra.mrb[0].mxu0 %v3526
        %v3856 = vpop.f32.mrb[0].mxu0
        %v3857 = vadd.f32 %v3693, %v3856
        %v3858 = vpop.f32.mrb[0].mxu0
        %v3859 = vadd.f32 %v3697, %v3858
        %3860 = vmatprep.mubr.f32.mxu0 %v3529
        %3861 = vmatmul.mubr.f32.gmra.mrb[0].mxu0 %v3528
        %v3862 = vpop.f32.mrb[0].mxu0
        %v3863 = vadd.f32 %v3693, %v3862
        %v3864 = vpop.f32.mrb[0].mxu0
        %v3865 = vadd.f32 %v3697, %v3864
        %3866 = vmatprep.mubr.f32.mxu0 %v3531
        %3867 = vmatmul.mubr.f32.gmra.mrb[0].mxu0 %v3530
        %v3868 = vpop.f32.mrb[0].mxu0
        %v3869 = vadd.f32 %v3693, %v3868
        %v3870 = vpop.f32.mrb[0].mxu0
        %v3871 = vadd.f32 %v3697, %v3870
        %3872 = vmatprep.mubr.f32.mxu0 %v3533
        %3873 = vmatmul.mubr.f32.gmra.mrb[0].mxu0 %v3532
        %v3874 = vpop.f32.mrb[0].mxu0
        %v3875 = vadd.f32 %v3693, %v3874
        %v3876 = vpop.f32.mrb[0].mxu0
        %v3877 = vadd.f32 %v3697, %v3876
        %3878 = vmatprep.mubr.f32.mxu0 %v3535
        %3879 = vmatmul.mubr.f32.gmra.mrb[0].mxu0 %v3534
        %v3880 = vpop.f32.mrb[0].mxu0
        %v3881 = vadd.f32 %v3693, %v3880
        %v3882 = vpop.f32.mrb[0].mxu0
        %v3883 = vadd.f32 %v3697, %v3882
        %3884 = vmatprep.mubr.f32.mxu0 %v3537
        %3885 = vmatmul.mubr.f32.gmra.mrb[0].mxu0 %v3536
        %v3886 = vpop.f32.mrb[0].mxu0
        %v3887 = vadd.f32 %v3693, %v3886
        %v3888 = vpop.f32.mrb[0].mxu0
        %v3889 = vadd.f32 %v3697, %v3888
        %3890 = vmatprep.mubr.f32.mxu0 %v3539
        %3891 = vmatmul.mubr.f32.gmra.mrb[0].mxu0 %v3538
        %v3892 = vpop.f32.mrb[0].mxu0
        %v3893 = vadd.f32 %v3693, %v3892
        %v3894 = vpop.f32.mrb[0].mxu0
        %v3895 = vadd.f32 %v3697, %v3894
        %3896 = vmatprep.mubr.f32.mxu0 %v3541
        %3897 = vmatmul.mubr.f32.gmra.mrb[0].mxu0 %v3540
        %v3898 = vpop.f32.mrb[0].mxu0
        %v3899 = vadd.f32 %v3693, %v3898
        %v3900 = vpop.f32.mrb[0].mxu0
        %v3901 = vadd.f32 %v3697, %v3900
        %3902 = vmatprep.mubr.f32.mxu0 %v3543
        %3903 = vmatmul.mubr.f32.gmra.mrb[0].mxu0 %v3542
        %v3904 = vpop.f32.mrb[0].mxu0
        %v3905 = vadd.f32 %v3693, %v3904
        %v3906 = vpop.f32.mrb[0].mxu0
        %v3907 = vadd.f32 %v3697, %v3906
        %3908 = vmatprep.mubr.f32.mxu0 %v3545
        %3909 = vmatmul.mubr.f32.gmra.mrb[0].mxu0 %v3544
        %v3910 = vpop.f32.mrb[0].mxu0
        %v3911 = vadd.f32 %v3693, %v3910
        %v3912 = vpop.f32.mrb[0].mxu0
        %v3913 = vadd.f32 %v3697, %v3912
        %3914 = vmatprep.mubr.f32.mxu0 %v3547
        %3915 = vmatmul.mubr.f32.gmra.mrb[0].mxu0 %v3546
        %v3916 = vpop.f32.mrb[0].mxu0
        %v3917 = vadd.f32 %v3693, %v3916
        %v3918 = vpop.f32.mrb[0].mxu0
        %v3919 = vadd.f32 %v3697, %v3918
        %3920 = vmatprep.mubr.f32.mxu0 %v3549
        %3921 = vmatmul.mubr.f32.gmra.mrb[0].mxu0 %v3548
        %v3922 = vpop.f32.mrb[0].mxu0
        %v3923 = vadd.f32 %v3693, %v3922
        %v3924 = vpop.f32.mrb[0].mxu0
        %v3925 = vadd.f32 %v3697, %v3924
        %3926 = vmatprep.mubr.f32.mxu0 %v3551
        %3927 = vmatmul.mubr.f32.gmra.mrb[0].mxu0 %v3550
        %v3928 = vpop.f32.mrb[0].mxu0
        %v3929 = vadd.f32 %v3693, %v3928
        %v3930 = vpop.f32.mrb[0].mxu0
        %v3931 = vadd.f32 %v3697, %v3930
        %3932 = vmatprep.mubr.f32.mxu0 %v3553
        %3933 = vmatmul.mubr.f32.gmra.mrb[0].mxu0 %v3552
        %v3934 = vpop.f32.mrb[0].mxu0
        %v3935 = vadd.f32 %v3693, %v3934
        %v3936 = vpop.f32.mrb[0].mxu0
        %v3937 = vadd.f32 %v3697, %v3936
        %3938 = vmatprep.mubr.f32.mxu0 %v3555
        %3939 = vmatmul.mubr.f32.gmra.mrb[0].mxu0 %v3554
        %v3940 = vpop.f32.mrb[0].mxu0
        %v3941 = vadd.f32 %v3693, %v3940
        %v3942 = vpop.f32.mrb[0].mxu0
        %v3943 = vadd.f32 %v3697, %v3942
        %3944 = vmatprep.mubr.f32.mxu0 %v3557
        %3945 = vmatmul.mubr.f32.gmra.mrb[0].mxu0 %v3556
        %v3946 = vpop.f32.mrb[0].mxu0
        %v3947 = vadd.f32 %v3693, %v3946
        %v3948 = vpop.f32.mrb[0].mxu0
        %v3949 = vadd.f32 %v3697, %v3948
        %3950 = vmatprep.mubr.f32.mxu0 %v3559
        %3951 = vmatmul.mubr.f32.gmra.mrb[0].mxu0 %v3558
        %v3952 = vpop.f32.mrb[0].mxu0
        %v3953 = vadd.f32 %v3693, %v3952
        %v3954 = vpop.f32.mrb[0].mxu0
        %v3955 = vadd.f32 %v3697, %v3954
        %3956 = vmatprep.mubr.f32.mxu0 %v3561
        %3957 = vmatmul.mubr.f32.gmra.mrb[0].mxu0 %v3560
        %v3958 = vpop.f32.mrb[0].mxu0
        %v3959 = vadd.f32 %v3693, %v3958
        %v3960 = vpop.f32.mrb[0].mxu0
        %v3961 = vadd.f32 %v3697, %v3960
        %3962 = vmatprep.mubr.f32.mxu0 %v3563
        %3963 = vmatmul.mubr.f32.gmra.mrb[0].mxu0 %v3562
        %v3964 = vpop.f32.mrb[0].mxu0
        %v3965 = vadd.f32 %v3693, %v3964
        %v3966 = vpop.f32.mrb[0].mxu0
        %v3967 = vadd.f32 %v3697, %v3966
        %3968 = vmatprep.mubr.f32.mxu0 %v3565
        %3969 = vmatmul.mubr.f32.gmra.mrb[0].mxu0 %v3564
        %v3970 = vpop.f32.mrb[0].mxu0
        %v3971 = vadd.f32 %v3693, %v3970
        %v3972 = vpop.f32.mrb[0].mxu0
        %v3973 = vadd.f32 %v3697, %v3972
        %3974 = vmatprep.mubr.f32.mxu0 %v3567
        %3975 = vmatmul.mubr.f32.gmra.mrb[0].mxu0 %v3566
        %v3976 = vpop.f32.mrb[0].mxu0
        %v3977 = vadd.f32 %v3693, %v3976
        %v3978 = vpop.f32.mrb[0].mxu0
        %v3979 = vadd.f32 %v3697, %v3978
        %3980 = vmatprep.mubr.f32.mxu0 %v3569
        %3981 = vmatmul.mubr.f32.gmra.mrb[0].mxu0 %v3568
        %v3982 = vpop.f32.mrb[0].mxu0
        %v3983 = vadd.f32 %v3693, %v3982
        %v3984 = vpop.f32.mrb[0].mxu0
        %v3985 = vadd.f32 %v3697, %v3984
        %3986 = vmatprep.mubr.f32.mxu0 %v3571
        %3987 = vmatmul.mubr.f32.gmra.mrb[0].mxu0 %v3570
        %v3988 = vpop.f32.mrb[0].mxu0
        %v3989 = vadd.f32 %v3693, %v3988
        %v3990 = vpop.f32.mrb[0].mxu0
        %v3991 = vadd.f32 %v3697, %v3990
        %3992 = vmatprep.mubr.f32.mxu0 %v3573
        %3993 = vmatmul.mubr.f32.gmra.mrb[0].mxu0 %v3572
        %v3994 = vpop.f32.mrb[0].mxu0
        %v3995 = vadd.f32 %v3693, %v3994
        %v3996 = vpop.f32.mrb[0].mxu0
        %v3997 = vadd.f32 %v3697, %v3996
        %3998 = vmatprep.mubr.f32.mxu0 %v3575
        %3999 = vmatmul.mubr.f32.gmra.mrb[0].mxu0 %v3574
        %v4000 = vpop.f32.mrb[0].mxu0
        %v4001 = vadd.f32 %v3693, %v4000
        %v4002 = vpop.f32.mrb[0].mxu0
        %v4003 = vadd.f32 %v3697, %v4002
        %4004 = vmatprep.mubr.f32.mxu0 %v3577
        %4005 = vmatmul.mubr.f32.gmra.mrb[0].mxu0 %v3576
        %v4006 = vpop.f32.mrb[0].mxu0
        %v4007 = vadd.f32 %v3693, %v4006
        %v4008 = vpop.f32.mrb[0].mxu0
        %v4009 = vadd.f32 %v3697, %v4008
        %4010 = vmatprep.mubr.f32.mxu0 %v3579
        %4011 = vmatmul.mubr.f32.gmra.mrb[0].mxu0 %v3578
        %v4012 = vpop.f32.mrb[0].mxu0
        %v4013 = vadd.f32 %v3693, %v4012
        %v4014 = vpop.f32.mrb[0].mxu0
        %v4015 = vadd.f32 %v3697, %v4014
        %4016 = vmatprep.mubr.f32.mxu0 %v3581
        %4017 = vmatmul.mubr.f32.gmra.mrb[0].mxu0 %v3580
        %v4018 = vpop.f32.mrb[0].mxu0
        %v4019 = vadd.f32 %v3693, %v4018
        %v4020 = vpop.f32.mrb[0].mxu0
        %v4021 = vadd.f32 %v3697, %v4020
        %4022 = vmatprep.mubr.f32.mxu0 %v3583
        %4023 = vmatmul.mubr.f32.gmra.mrb[0].mxu0 %v3582
        %v4024 = vpop.f32.mrb[0].mxu0
        %v4025 = vadd.f32 %v3693, %v4024
        %v4026 = vpop.f32.mrb[0].mxu0
        %v4027 = vadd.f32 %v3697, %v4026
        %4028 = vmatprep.mubr.f32.mxu0 %v3585
        %4029 = vmatmul.mubr.f32.gmra.mrb[0].mxu0 %v3584
        %v4030 = vpop.f32.mrb[0].mxu0
        %v4031 = vadd.f32 %v3693, %v4030
        %v4032 = vpop.f32.mrb[0].mxu0
        %v4033 = vadd.f32 %v3697, %v4032
        %4034 = vmatprep.mubr.f32.mxu0 %v3587
        %4035 = vmatmul.mubr.f32.gmra.mrb[0].mxu0 %v3586
        %v4036 = vpop.f32.mrb[0].mxu0
        %v4037 = vadd.f32 %v3693, %v4036
        %v4038 = vpop.f32.mrb[0].mxu0
        %v4039 = vadd.f32 %v3697, %v4038
        %4040 = vmatprep.mubr.f32.mxu0 %v3589
        %4041 = vmatmul.mubr.f32.gmra.mrb[0].mxu0 %v3588
        %v4042 = vpop.f32.mrb[0].mxu0
        %v4043 = vadd.f32 %v3693, %v4042
        %v4044 = vpop.f32.mrb[0].mxu0
        %v4045 = vadd.f32 %v3697, %v4044
        %4046 = vmatprep.mubr.f32.mxu0 %v3591
        %4047 = vmatmul.mubr.f32.gmra.mrb[0].mxu0 %v3590
        %v4048 = vpop.f32.mrb[0].mxu0
        %v4049 = vadd.f32 %v3693, %v4048
        %v4050 = vpop.f32.mrb[0].mxu0
        %v4051 = vadd.f32 %v3697, %v4050
        %4052 = vmatprep.mubr.f32.mxu0 %v3593
        %4053 = vmatmul.mubr.f32.gmra.mrb[0].mxu0 %v3592
        %v4054 = vpop.f32.mrb[0].mxu0
        %v4055 = vadd.f32 %v3693, %v4054
        %v4056 = vpop.f32.mrb[0].mxu0
        %v4057 = vadd.f32 %v3697, %v4056
        %4058 = vmatprep.mubr.f32.mxu0 %v3595
        %4059 = vmatmul.mubr.f32.gmra.mrb[0].mxu0 %v3594
        %v4060 = vpop.f32.mrb[0].mxu0
        %v4061 = vadd.f32 %v3693, %v4060
        %v4062 = vpop.f32.mrb[0].mxu0
        %v4063 = vadd.f32 %v3697, %v4062
        %4064 = vmatprep.mubr.f32.mxu0 %v3597
        %4065 = vmatmul.mubr.f32.gmra.mrb[0].mxu0 %v3596
        %v4066 = vpop.f32.mrb[0].mxu0
        %v4067 = vadd.f32 %v3693, %v4066
        %v4068 = vpop.f32.mrb[0].mxu0
        %v4069 = vadd.f32 %v3697, %v4068
        %4070 = vmatprep.mubr.f32.mxu0 %v3599
        %4071 = vmatmul.mubr.f32.gmra.mrb[0].mxu0 %v3598
        %v4072 = vpop.f32.mrb[0].mxu0
        %v4073 = vadd.f32 %v3693, %v4072
        %v4074 = vpop.f32.mrb[0].mxu0
        %v4075 = vadd.f32 %v3697, %v4074
        %4076 = vmatprep.mubr.f32.mxu0 %v3601
        %4077 = vmatmul.mubr.f32.gmra.mrb[0].mxu0 %v3600
        %v4078 = vpop.f32.mrb[0].mxu0
        %v4079 = vadd.f32 %v3693, %v4078
        %v4080 = vpop.f32.mrb[0].mxu0
        %v4081 = vadd.f32 %v3697, %v4080
        %4082 = vmatprep.mubr.f32.mxu0 %v3603
        %4083 = vmatmul.mubr.f32.gmra.mrb[0].mxu0 %v3602
        %v4084 = vpop.f32.mrb[0].mxu0
        %v4085 = vadd.f32 %v3693, %v4084
        %v4086 = vpop.f32.mrb[0].mxu0
        %v4087 = vadd.f32 %v3697, %v4086
        %4088 = vmatprep.mubr.f32.mxu0 %v3605
        %4089 = vmatmul.mubr.f32.gmra.mrb[0].mxu0 %v3604
        %v4090 = vpop.f32.mrb[0].mxu0
        %v4091 = vadd.f32 %v3693, %v4090
        %v4092 = vpop.f32.mrb[0].mxu0
        %v4093 = vadd.f32 %v3697, %v4092
        %4094 = vmatprep.mubr.f32.mxu0 %v3607
        %4095 = vmatmul.mubr.f32.gmra.mrb[0].mxu0 %v3606
        %v4096 = vpop.f32.mrb[0].mxu0
        %v4097 = vadd.f32 %v3693, %v4096
        %v4098 = vpop.f32.mrb[0].mxu0
        %v4099 = vadd.f32 %v3697, %v4098
        %4100 = vmatprep.mubr.f32.mxu0 %v3609
        %4101 = vmatmul.mubr.f32.gmra.mrb[0].mxu0 %v3608
        %v4102 = vpop.f32.mrb[0].mxu0
        %v4103 = vadd.f32 %v3693, %v4102
        %v4104 = vpop.f32.mrb[0].mxu0
        %v4105 = vadd.f32 %v3697, %v4104
        %4106 = vmatprep.mubr.f32.mxu0 %v3611
        %4107 = vmatmul.mubr.f32.gmra.mrb[0].mxu0 %v3610
        %v4108 = vpop.f32.mrb[0].mxu0
        %v4109 = vadd.f32 %v3693, %v4108
        %v4110 = vpop.f32.mrb[0].mxu0
        %v4111 = vadd.f32 %v3697, %v4110
        %4112 = vmatprep.mubr.f32.mxu0 %v3613
        %4113 = vmatmul.mubr.f32.gmra.mrb[0].mxu0 %v3612
        %v4114 = vpop.f32.mrb[0].mxu0
        %v4115 = vadd.f32 %v3693, %v4114
        %v4116 = vpop.f32.mrb[0].mxu0
        %v4117 = vadd.f32 %v3697, %v4116
        %4118 = vmatprep.mubr.f32.mxu0 %v3615
        %4119 = vmatmul.mubr.f32.gmra.mrb[0].mxu0 %v3614
        %v4120 = vpop.f32.mrb[0].mxu0
        %v4121 = vadd.f32 %v3693, %v4120
        %v4122 = vpop.f32.mrb[0].mxu0
        %v4123 = vadd.f32 %v3697, %v4122
        %4124 = vmatprep.mubr.f32.mxu0 %v3617
        %4125 = vmatmul.mubr.f32.gmra.mrb[0].mxu0 %v3616
        %v4126 = vpop.f32.mrb[0].mxu0
        %v4127 = vadd.f32 %v3693, %v4126
        %v4128 = vpop.f32.mrb[0].mxu0
        %v4129 = vadd.f32 %v3697, %v4128
        %4130 = vmatprep.mubr.f32.mxu0 %v3619
        %4131 = vmatmul.mubr.f32.gmra.mrb[0].mxu0 %v3618
        %v4132 = vpop.f32.mrb[0].mxu0
        %v4133 = vadd.f32 %v3693, %v4132
        %v4134 = vpop.f32.mrb[0].mxu0
        %v4135 = vadd.f32 %v3697, %v4134
        %4136 = vmatprep.mubr.f32.mxu0 %v3621
        %4137 = vmatmul.mubr.f32.gmra.mrb[0].mxu0 %v3620
        %v4138 = vpop.f32.mrb[0].mxu0
        %v4139 = vadd.f32 %v3693, %v4138
        %v4140 = vpop.f32.mrb[0].mxu0
        %v4141 = vadd.f32 %v3697, %v4140
        %4142 = vmatprep.mubr.f32.mxu0 %v3623
        %4143 = vmatmul.mubr.f32.gmra.mrb[0].mxu0 %v3622
        %v4144 = vpop.f32.mrb[0].mxu0
        %v4145 = vadd.f32 %v3693, %v4144
        %v4146 = vpop.f32.mrb[0].mxu0
        %v4147 = vadd.f32 %v3697, %v4146
        %4148 = vdwg.mxu0
        %v4149 = vmax.f32 %v3767, 0.0
        %v4150 = vmax.f32 %v3769, 0.0
        %v4151 = vmax.f32 %v3773, 0.0
        %v4152 = vmax.f32 %v3775, 0.0
        %v4153 = vmax.f32 %v3779, 0.0
        %v4154 = vmax.f32 %v3781, 0.0
        %v4155 = vmax.f32 %v3785, 0.0
        %v4156 = vmax.f32 %v3787, 0.0
        %v4157 = vmax.f32 %v3791, 0.0
        %v4158 = vmax.f32 %v3793, 0.0
        %v4159 = vmax.f32 %v3797, 0.0
        %v4160 = vmax.f32 %v3799, 0.0
        %v4161 = vmax.f32 %v3803, 0.0
        %v4162 = vmax.f32 %v3805, 0.0
        %v4163 = vmax.f32 %v3809, 0.0
        %v4164 = vmax.f32 %v3811, 0.0
        %v4165 = vmax.f32 %v3815, 0.0
        %v4166 = vmax.f32 %v3817, 0.0
        %v4167 = vmax.f32 %v3821, 0.0
        %v4168 = vmax.f32 %v3823, 0.0
        %v4169 = vmax.f32 %v3827, 0.0
        %v4170 = vmax.f32 %v3829, 0.0
        %v4171 = vmax.f32 %v3833, 0.0
        %v4172 = vmax.f32 %v3835, 0.0
        %v4173 = vmax.f32 %v3839, 0.0
        %v4174 = vmax.f32 %v3841, 0.0
        %v4175 = vmax.f32 %v3845, 0.0
        %v4176 = vmax.f32 %v3847, 0.0
        %v4177 = vmax.f32 %v3851, 0.0
        %v4178 = vmax.f32 %v3853, 0.0
        %v4179 = vmax.f32 %v3857, 0.0
        %v4180 = vmax.f32 %v3859, 0.0
        %v4181 = vmax.f32 %v3863, 0.0
        %v4182 = vmax.f32 %v3865, 0.0
        %v4183 = vmax.f32 %v3869, 0.0
        %v4184 = vmax.f32 %v3871, 0.0
        %v4185 = vmax.f32 %v3875, 0.0
        %v4186 = vmax.f32 %v3877, 0.0
        %v4187 = vmax.f32 %v3881, 0.0
        %v4188 = vmax.f32 %v3883, 0.0
        %v4189 = vmax.f32 %v3887, 0.0
        %v4190 = vmax.f32 %v3889, 0.0
        %v4191 = vmax.f32 %v3893, 0.0
        %v4192 = vmax.f32 %v3895, 0.0
        %v4193 = vmax.f32 %v3899, 0.0
        %v4194 = vmax.f32 %v3901, 0.0
        %v4195 = vmax.f32 %v3905, 0.0
        %v4196 = vmax.f32 %v3907, 0.0
        %v4197 = vmax.f32 %v3911, 0.0
        %v4198 = vmax.f32 %v3913, 0.0
        %v4199 = vmax.f32 %v3917, 0.0
        %v4200 = vmax.f32 %v3919, 0.0
        %v4201 = vmax.f32 %v3923, 0.0
        %v4202 = vmax.f32 %v3925, 0.0
        %v4203 = vmax.f32 %v3929, 0.0
        %v4204 = vmax.f32 %v3931, 0.0
        %v4205 = vmax.f32 %v3935, 0.0
        %v4206 = vmax.f32 %v3937, 0.0
        %v4207 = vmax.f32 %v3941, 0.0
        %v4208 = vmax.f32 %v3943, 0.0
        %v4209 = vmax.f32 %v3947, 0.0
        %v4210 = vmax.f32 %v3949, 0.0
        %v4211 = vmax.f32 %v3953, 0.0
        %v4212 = vmax.f32 %v3955, 0.0
        %v4213 = vmax.f32 %v3959, 0.0
        %v4214 = vmax.f32 %v3961, 0.0
        %v4215 = vmax.f32 %v3965, 0.0
        %v4216 = vmax.f32 %v3967, 0.0
        %v4217 = vmax.f32 %v3971, 0.0
        %v4218 = vmax.f32 %v3973, 0.0
        %v4219 = vmax.f32 %v3977, 0.0
        %v4220 = vmax.f32 %v3979, 0.0
        %v4221 = vmax.f32 %v3983, 0.0
        %v4222 = vmax.f32 %v3985, 0.0
        %v4223 = vmax.f32 %v3989, 0.0
        %v4224 = vmax.f32 %v3991, 0.0
        %v4225 = vmax.f32 %v3995, 0.0
        %v4226 = vmax.f32 %v3997, 0.0
        %v4227 = vmax.f32 %v4001, 0.0
        %v4228 = vmax.f32 %v4003, 0.0
        %v4229 = vmax.f32 %v4007, 0.0
        %v4230 = vmax.f32 %v4009, 0.0
        %v4231 = vmax.f32 %v4013, 0.0
        %v4232 = vmax.f32 %v4015, 0.0
        %v4233 = vmax.f32 %v4019, 0.0
        %v4234 = vmax.f32 %v4021, 0.0
        %v4235 = vmax.f32 %v4025, 0.0
        %v4236 = vmax.f32 %v4027, 0.0
        %v4237 = vmax.f32 %v4031, 0.0
        %v4238 = vmax.f32 %v4033, 0.0
        %v4239 = vmax.f32 %v4037, 0.0
        %v4240 = vmax.f32 %v4039, 0.0
        %v4241 = vmax.f32 %v4043, 0.0
        %v4242 = vmax.f32 %v4045, 0.0
        %v4243 = vmax.f32 %v4049, 0.0
        %v4244 = vmax.f32 %v4051, 0.0
        %v4245 = vmax.f32 %v4055, 0.0
        %v4246 = vmax.f32 %v4057, 0.0
        %v4247 = vmax.f32 %v4061, 0.0
        %v4248 = vmax.f32 %v4063, 0.0
        %v4249 = vmax.f32 %v4067, 0.0
        %v4250 = vmax.f32 %v4069, 0.0
        %v4251 = vmax.f32 %v4073, 0.0
        %v4252 = vmax.f32 %v4075, 0.0
        %v4253 = vmax.f32 %v4079, 0.0
        %v4254 = vmax.f32 %v4081, 0.0
        %v4255 = vmax.f32 %v4085, 0.0
        %v4256 = vmax.f32 %v4087, 0.0
        %v4257 = vmax.f32 %v4091, 0.0
        %v4258 = vmax.f32 %v4093, 0.0
        %v4259 = vmax.f32 %v4097, 0.0
        %v4260 = vmax.f32 %v4099, 0.0
        %v4261 = vmax.f32 %v4103, 0.0
        %v4262 = vmax.f32 %v4105, 0.0
        %v4263 = vmax.f32 %v4109, 0.0
        %v4264 = vmax.f32 %v4111, 0.0
        %v4265 = vmax.f32 %v4115, 0.0
        %v4266 = vmax.f32 %v4117, 0.0
        %v4267 = vmax.f32 %v4121, 0.0
        %v4268 = vmax.f32 %v4123, 0.0
        %v4269 = vmax.f32 %v4127, 0.0
        %v4270 = vmax.f32 %v4129, 0.0
        %v4271 = vmax.f32 %v4133, 0.0
        %v4272 = vmax.f32 %v4135, 0.0
        %v4273 = vmax.f32 %v4139, 0.0
        %v4274 = vmax.f32 %v4141, 0.0
        %v4275 = vmax.f32 %v4145, 0.0
        %v4276 = vmax.f32 %v4147, 0.0
        %v4277 = vld [vmem:[#allocation5] sm:$0xff]
        %v4278 = vld [vmem:[#allocation5 + $0x8] sm:$0xff]
        %v4279 = vld [vmem:[#allocation5 + $0x10] sm:$0xff]
        %v4280 = vld [vmem:[#allocation5 + $0x18] sm:$0xff]
        %v4281 = vld [vmem:[#allocation5 + $0x20] sm:$0xff]
        %v4282 = vld [vmem:[#allocation5 + $0x28] sm:$0xff]
        %v4283 = vld [vmem:[#allocation5 + $0x30] sm:$0xff]
        %v4284 = vld [vmem:[#allocation5 + $0x38] sm:$0xff]
        %v4285 = vld [vmem:[#allocation5 + $0x40] sm:$0xff]
        %v4286 = vld [vmem:[#allocation5 + $0x48] sm:$0xff]
        %v4287 = vld [vmem:[#allocation5 + $0x50] sm:$0xff]
        %v4288 = vld [vmem:[#allocation5 + $0x58] sm:$0xff]
        %v4289 = vld [vmem:[#allocation5 + $0x60] sm:$0xff]
        %v4290 = vld [vmem:[#allocation5 + $0x68] sm:$0xff]
        %v4291 = vld [vmem:[#allocation5 + $0x70] sm:$0xff]
        %v4292 = vld [vmem:[#allocation5 + $0x78] sm:$0xff]
        %v4293 = vld [vmem:[#allocation5 + $0x80] sm:$0xff]
        %v4294 = vld [vmem:[#allocation5 + $0x88] sm:$0xff]
        %v4295 = vld [vmem:[#allocation5 + $0x90] sm:$0xff]
        %v4296 = vld [vmem:[#allocation5 + $0x98] sm:$0xff]
        %v4297 = vld [vmem:[#allocation5 + $0xa0] sm:$0xff]
        %v4298 = vld [vmem:[#allocation5 + $0xa8] sm:$0xff]
        %v4299 = vld [vmem:[#allocation5 + $0xb0] sm:$0xff]
        %v4300 = vld [vmem:[#allocation5 + $0xb8] sm:$0xff]
        %v4301 = vld [vmem:[#allocation5 + $0xc0] sm:$0xff]
        %v4302 = vld [vmem:[#allocation5 + $0xc8] sm:$0xff]
        %v4303 = vld [vmem:[#allocation5 + $0xd0] sm:$0xff]
        %v4304 = vld [vmem:[#allocation5 + $0xd8] sm:$0xff]
        %v4305 = vld [vmem:[#allocation5 + $0xe0] sm:$0xff]
        %v4306 = vld [vmem:[#allocation5 + $0xe8] sm:$0xff]
        %v4307 = vld [vmem:[#allocation5 + $0xf0] sm:$0xff]
        %v4308 = vld [vmem:[#allocation5 + $0xf8] sm:$0xff]
        %v4309 = vld [vmem:[#allocation5 + $0x100] sm:$0xff]
        %v4310 = vld [vmem:[#allocation5 + $0x108] sm:$0xff]
        %v4311 = vld [vmem:[#allocation5 + $0x110] sm:$0xff]
        %v4312 = vld [vmem:[#allocation5 + $0x118] sm:$0xff]
        %v4313 = vld [vmem:[#allocation5 + $0x120] sm:$0xff]
        %v4314 = vld [vmem:[#allocation5 + $0x128] sm:$0xff]
        %v4315 = vld [vmem:[#allocation5 + $0x130] sm:$0xff]
        %v4316 = vld [vmem:[#allocation5 + $0x138] sm:$0xff]
        %v4317 = vld [vmem:[#allocation5 + $0x140] sm:$0xff]
        %v4318 = vld [vmem:[#allocation5 + $0x148] sm:$0xff]
        %v4319 = vld [vmem:[#allocation5 + $0x150] sm:$0xff]
        %v4320 = vld [vmem:[#allocation5 + $0x158] sm:$0xff]
        %v4321 = vld [vmem:[#allocation5 + $0x160] sm:$0xff]
        %v4322 = vld [vmem:[#allocation5 + $0x168] sm:$0xff]
        %v4323 = vld [vmem:[#allocation5 + $0x170] sm:$0xff]
        %v4324 = vld [vmem:[#allocation5 + $0x178] sm:$0xff]
        %v4325 = vld [vmem:[#allocation5 + $0x180] sm:$0xff]
        %v4326 = vld [vmem:[#allocation5 + $0x188] sm:$0xff]
        %v4327 = vld [vmem:[#allocation5 + $0x190] sm:$0xff]
        %v4328 = vld [vmem:[#allocation5 + $0x198] sm:$0xff]
        %v4329 = vld [vmem:[#allocation5 + $0x1a0] sm:$0xff]
        %v4330 = vld [vmem:[#allocation5 + $0x1a8] sm:$0xff]
        %v4331 = vld [vmem:[#allocation5 + $0x1b0] sm:$0xff]
        %v4332 = vld [vmem:[#allocation5 + $0x1b8] sm:$0xff]
        %v4333 = vld [vmem:[#allocation5 + $0x1c0] sm:$0xff]
        %v4334 = vld [vmem:[#allocation5 + $0x1c8] sm:$0xff]
        %v4335 = vld [vmem:[#allocation5 + $0x1d0] sm:$0xff]
        %v4336 = vld [vmem:[#allocation5 + $0x1d8] sm:$0xff]
        %v4337 = vld [vmem:[#allocation5 + $0x1e0] sm:$0xff]
        %v4338 = vld [vmem:[#allocation5 + $0x1e8] sm:$0xff]
        %v4339 = vld [vmem:[#allocation5 + $0x1f0] sm:$0xff]
        %v4340 = vld [vmem:[#allocation5 + $0x1f8] sm:$0xff]
        %v4341 = vld [vmem:[%s10] sm:$0x3]
        %v4343 = vlaneseq
        %v4344 = vshrl.u32 %v4343, 7
        %v4345 = vsub.s32 0, %v4344
        %v4346 = vrot.slane %v4341, %v4345
        %v4347 = vlaneseq
        %v4348 = vshrl.u32 %v4347, 7
        %v4349 = vsub.s32 1, %v4348
        %v4350 = vrot.slane %v4341, %v4349
        %4353 = vmatprep.subr.mxu0 %v4278
        %4354 = vmatpush1.msra.mxu0 %v4277
        %4355 = vmatprep.subr.mxu0 %v4280
        %4356 = vmatpush1.msra.mxu0 %v4279
        %4357 = vmatprep.subr.mxu0 %v4282
        %4358 = vmatpush1.msra.mxu0 %v4281
        %4359 = vmatprep.subr.mxu0 %v4284
        %4360 = vmatpush1.msra.mxu0 %v4283
        %4361 = vmatprep.subr.mxu0 %v4286
        %4362 = vmatpush1.msra.mxu0 %v4285
        %4363 = vmatprep.subr.mxu0 %v4288
        %4364 = vmatpush1.msra.mxu0 %v4287
        %4365 = vmatprep.subr.mxu0 %v4290
        %4366 = vmatpush1.msra.mxu0 %v4289
        %4367 = vmatprep.subr.mxu0 %v4292
        %4368 = vmatpush1.msra.mxu0 %v4291
        %4369 = vmatprep.subr.mxu0 %v4294
        %4370 = vmatpush1.msra.mxu0 %v4293
        %4371 = vmatprep.subr.mxu0 %v4296
        %4372 = vmatpush1.msra.mxu0 %v4295
        %4373 = vmatprep.subr.mxu0 %v4298
        %4374 = vmatpush1.msra.mxu0 %v4297
        %4375 = vmatprep.subr.mxu0 %v4300
        %4376 = vmatpush1.msra.mxu0 %v4299
        %4377 = vmatprep.subr.mxu0 %v4302
        %4378 = vmatpush1.msra.mxu0 %v4301
        %4379 = vmatprep.subr.mxu0 %v4304
        %4380 = vmatpush1.msra.mxu0 %v4303
        %4381 = vmatprep.subr.mxu0 %v4306
        %4382 = vmatpush1.msra.mxu0 %v4305
        %4383 = vmatprep.subr.mxu0 %v4308
        %4384 = vmatpush1.msra.mxu0 %v4307
        %4385 = vmatprep.subr.mxu0 %v4310
        %4386 = vmatpush1.msra.mxu0 %v4309
        %4387 = vmatprep.subr.mxu0 %v4312
        %4388 = vmatpush1.msra.mxu0 %v4311
        %4389 = vmatprep.subr.mxu0 %v4314
        %4390 = vmatpush1.msra.mxu0 %v4313
        %4391 = vmatprep.subr.mxu0 %v4316
        %4392 = vmatpush1.msra.mxu0 %v4315
        %4393 = vmatprep.subr.mxu0 %v4318
        %4394 = vmatpush1.msra.mxu0 %v4317
        %4395 = vmatprep.subr.mxu0 %v4320
        %4396 = vmatpush1.msra.mxu0 %v4319
        %4397 = vmatprep.subr.mxu0 %v4322
        %4398 = vmatpush1.msra.mxu0 %v4321
        %4399 = vmatprep.subr.mxu0 %v4324
        %4400 = vmatpush1.msra.mxu0 %v4323
        %4401 = vmatprep.subr.mxu0 %v4326
        %4402 = vmatpush1.msra.mxu0 %v4325
        %4403 = vmatprep.subr.mxu0 %v4328
        %4404 = vmatpush1.msra.mxu0 %v4327
        %4405 = vmatprep.subr.mxu0 %v4330
        %4406 = vmatpush1.msra.mxu0 %v4329
        %4407 = vmatprep.subr.mxu0 %v4332
        %4408 = vmatpush1.msra.mxu0 %v4331
        %4409 = vmatprep.subr.mxu0 %v4334
        %4410 = vmatpush1.msra.mxu0 %v4333
        %4411 = vmatprep.subr.mxu0 %v4336
        %4412 = vmatpush1.msra.mxu0 %v4335
        %4413 = vmatprep.subr.mxu0 %v4338
        %4414 = vmatpush1.msra.mxu0 %v4337
        %4415 = vmatprep.subr.mxu0 %v4340
        %4416 = vmatpush1.msra.mxu0 %v4339
        %4417 = vmatprep.mubr.f32.mxu0 %v4150
        %4418 = vmatmul.mubr.f32.gmra.mrb[0].mxu0 %v4149
        %v4419 = vpop.f32.mrb[0].mxu0
        %v4420 = vadd.f32 %v4346, %v4419
        %v4421 = vpop.f32.mrb[0].mxu0
        %v4422 = vadd.f32 %v4350, %v4421
        %4423 = vmatprep.mubr.f32.mxu0 %v4152
        %4424 = vmatmul.mubr.f32.gmra.mrb[0].mxu0 %v4151
        %v4425 = vpop.f32.mrb[0].mxu0
        %v4426 = vadd.f32 %v4346, %v4425
        %v4427 = vpop.f32.mrb[0].mxu0
        %v4428 = vadd.f32 %v4350, %v4427
        %4429 = vmatprep.mubr.f32.mxu0 %v4154
        %4430 = vmatmul.mubr.f32.gmra.mrb[0].mxu0 %v4153
        %v4431 = vpop.f32.mrb[0].mxu0
        %v4432 = vadd.f32 %v4346, %v4431
        %v4433 = vpop.f32.mrb[0].mxu0
        %v4434 = vadd.f32 %v4350, %v4433
        %4435 = vmatprep.mubr.f32.mxu0 %v4156
        %4436 = vmatmul.mubr.f32.gmra.mrb[0].mxu0 %v4155
        %v4437 = vpop.f32.mrb[0].mxu0
        %v4438 = vadd.f32 %v4346, %v4437
        %v4439 = vpop.f32.mrb[0].mxu0
        %v4440 = vadd.f32 %v4350, %v4439
        %4441 = vmatprep.mubr.f32.mxu0 %v4158
        %4442 = vmatmul.mubr.f32.gmra.mrb[0].mxu0 %v4157
        %v4443 = vpop.f32.mrb[0].mxu0
        %v4444 = vadd.f32 %v4346, %v4443
        %v4445 = vpop.f32.mrb[0].mxu0
        %v4446 = vadd.f32 %v4350, %v4445
        %4447 = vmatprep.mubr.f32.mxu0 %v4160
        %4448 = vmatmul.mubr.f32.gmra.mrb[0].mxu0 %v4159
        %v4449 = vpop.f32.mrb[0].mxu0
        %v4450 = vadd.f32 %v4346, %v4449
        %v4451 = vpop.f32.mrb[0].mxu0
        %v4452 = vadd.f32 %v4350, %v4451
        %4453 = vmatprep.mubr.f32.mxu0 %v4162
        %4454 = vmatmul.mubr.f32.gmra.mrb[0].mxu0 %v4161
        %v4455 = vpop.f32.mrb[0].mxu0
        %v4456 = vadd.f32 %v4346, %v4455
        %v4457 = vpop.f32.mrb[0].mxu0
        %v4458 = vadd.f32 %v4350, %v4457
        %4459 = vmatprep.mubr.f32.mxu0 %v4164
        %4460 = vmatmul.mubr.f32.gmra.mrb[0].mxu0 %v4163
        %v4461 = vpop.f32.mrb[0].mxu0
        %v4462 = vadd.f32 %v4346, %v4461
        %v4463 = vpop.f32.mrb[0].mxu0
        %v4464 = vadd.f32 %v4350, %v4463
        %4465 = vmatprep.mubr.f32.mxu0 %v4166
        %4466 = vmatmul.mubr.f32.gmra.mrb[0].mxu0 %v4165
        %v4467 = vpop.f32.mrb[0].mxu0
        %v4468 = vadd.f32 %v4346, %v4467
        %v4469 = vpop.f32.mrb[0].mxu0
        %v4470 = vadd.f32 %v4350, %v4469
        %4471 = vmatprep.mubr.f32.mxu0 %v4168
        %4472 = vmatmul.mubr.f32.gmra.mrb[0].mxu0 %v4167
        %v4473 = vpop.f32.mrb[0].mxu0
        %v4474 = vadd.f32 %v4346, %v4473
        %v4475 = vpop.f32.mrb[0].mxu0
        %v4476 = vadd.f32 %v4350, %v4475
        %4477 = vmatprep.mubr.f32.mxu0 %v4170
        %4478 = vmatmul.mubr.f32.gmra.mrb[0].mxu0 %v4169
        %v4479 = vpop.f32.mrb[0].mxu0
        %v4480 = vadd.f32 %v4346, %v4479
        %v4481 = vpop.f32.mrb[0].mxu0
        %v4482 = vadd.f32 %v4350, %v4481
        %4483 = vmatprep.mubr.f32.mxu0 %v4172
        %4484 = vmatmul.mubr.f32.gmra.mrb[0].mxu0 %v4171
        %v4485 = vpop.f32.mrb[0].mxu0
        %v4486 = vadd.f32 %v4346, %v4485
        %v4487 = vpop.f32.mrb[0].mxu0
        %v4488 = vadd.f32 %v4350, %v4487
        %4489 = vmatprep.mubr.f32.mxu0 %v4174
        %4490 = vmatmul.mubr.f32.gmra.mrb[0].mxu0 %v4173
        %v4491 = vpop.f32.mrb[0].mxu0
        %v4492 = vadd.f32 %v4346, %v4491
        %v4493 = vpop.f32.mrb[0].mxu0
        %v4494 = vadd.f32 %v4350, %v4493
        %4495 = vmatprep.mubr.f32.mxu0 %v4176
        %4496 = vmatmul.mubr.f32.gmra.mrb[0].mxu0 %v4175
        %v4497 = vpop.f32.mrb[0].mxu0
        %v4498 = vadd.f32 %v4346, %v4497
        %v4499 = vpop.f32.mrb[0].mxu0
        %v4500 = vadd.f32 %v4350, %v4499
        %4501 = vmatprep.mubr.f32.mxu0 %v4178
        %4502 = vmatmul.mubr.f32.gmra.mrb[0].mxu0 %v4177
        %v4503 = vpop.f32.mrb[0].mxu0
        %v4504 = vadd.f32 %v4346, %v4503
        %v4505 = vpop.f32.mrb[0].mxu0
        %v4506 = vadd.f32 %v4350, %v4505
        %4507 = vmatprep.mubr.f32.mxu0 %v4180
        %4508 = vmatmul.mubr.f32.gmra.mrb[0].mxu0 %v4179
        %v4509 = vpop.f32.mrb[0].mxu0
        %v4510 = vadd.f32 %v4346, %v4509
        %v4511 = vpop.f32.mrb[0].mxu0
        %v4512 = vadd.f32 %v4350, %v4511
        %4513 = vmatprep.mubr.f32.mxu0 %v4182
        %4514 = vmatmul.mubr.f32.gmra.mrb[0].mxu0 %v4181
        %v4515 = vpop.f32.mrb[0].mxu0
        %v4516 = vadd.f32 %v4346, %v4515
        %v4517 = vpop.f32.mrb[0].mxu0
        %v4518 = vadd.f32 %v4350, %v4517
        %4519 = vmatprep.mubr.f32.mxu0 %v4184
        %4520 = vmatmul.mubr.f32.gmra.mrb[0].mxu0 %v4183
        %v4521 = vpop.f32.mrb[0].mxu0
        %v4522 = vadd.f32 %v4346, %v4521
        %v4523 = vpop.f32.mrb[0].mxu0
        %v4524 = vadd.f32 %v4350, %v4523
        %4525 = vmatprep.mubr.f32.mxu0 %v4186
        %4526 = vmatmul.mubr.f32.gmra.mrb[0].mxu0 %v4185
        %v4527 = vpop.f32.mrb[0].mxu0
        %v4528 = vadd.f32 %v4346, %v4527
        %v4529 = vpop.f32.mrb[0].mxu0
        %v4530 = vadd.f32 %v4350, %v4529
        %4531 = vmatprep.mubr.f32.mxu0 %v4188
        %4532 = vmatmul.mubr.f32.gmra.mrb[0].mxu0 %v4187
        %v4533 = vpop.f32.mrb[0].mxu0
        %v4534 = vadd.f32 %v4346, %v4533
        %v4535 = vpop.f32.mrb[0].mxu0
        %v4536 = vadd.f32 %v4350, %v4535
        %4537 = vmatprep.mubr.f32.mxu0 %v4190
        %4538 = vmatmul.mubr.f32.gmra.mrb[0].mxu0 %v4189
        %v4539 = vpop.f32.mrb[0].mxu0
        %v4540 = vadd.f32 %v4346, %v4539
        %v4541 = vpop.f32.mrb[0].mxu0
        %v4542 = vadd.f32 %v4350, %v4541
        %4543 = vmatprep.mubr.f32.mxu0 %v4192
        %4544 = vmatmul.mubr.f32.gmra.mrb[0].mxu0 %v4191
        %v4545 = vpop.f32.mrb[0].mxu0
        %v4546 = vadd.f32 %v4346, %v4545
        %v4547 = vpop.f32.mrb[0].mxu0
        %v4548 = vadd.f32 %v4350, %v4547
        %4549 = vmatprep.mubr.f32.mxu0 %v4194
        %4550 = vmatmul.mubr.f32.gmra.mrb[0].mxu0 %v4193
        %v4551 = vpop.f32.mrb[0].mxu0
        %v4552 = vadd.f32 %v4346, %v4551
        %v4553 = vpop.f32.mrb[0].mxu0
        %v4554 = vadd.f32 %v4350, %v4553
        %4555 = vmatprep.mubr.f32.mxu0 %v4196
        %4556 = vmatmul.mubr.f32.gmra.mrb[0].mxu0 %v4195
        %v4557 = vpop.f32.mrb[0].mxu0
        %v4558 = vadd.f32 %v4346, %v4557
        %v4559 = vpop.f32.mrb[0].mxu0
        %v4560 = vadd.f32 %v4350, %v4559
        %4561 = vmatprep.mubr.f32.mxu0 %v4198
        %4562 = vmatmul.mubr.f32.gmra.mrb[0].mxu0 %v4197
        %v4563 = vpop.f32.mrb[0].mxu0
        %v4564 = vadd.f32 %v4346, %v4563
        %v4565 = vpop.f32.mrb[0].mxu0
        %v4566 = vadd.f32 %v4350, %v4565
        %4567 = vmatprep.mubr.f32.mxu0 %v4200
        %4568 = vmatmul.mubr.f32.gmra.mrb[0].mxu0 %v4199
        %v4569 = vpop.f32.mrb[0].mxu0
        %v4570 = vadd.f32 %v4346, %v4569
        %v4571 = vpop.f32.mrb[0].mxu0
        %v4572 = vadd.f32 %v4350, %v4571
        %4573 = vmatprep.mubr.f32.mxu0 %v4202
        %4574 = vmatmul.mubr.f32.gmra.mrb[0].mxu0 %v4201
        %v4575 = vpop.f32.mrb[0].mxu0
        %v4576 = vadd.f32 %v4346, %v4575
        %v4577 = vpop.f32.mrb[0].mxu0
        %v4578 = vadd.f32 %v4350, %v4577
        %4579 = vmatprep.mubr.f32.mxu0 %v4204
        %4580 = vmatmul.mubr.f32.gmra.mrb[0].mxu0 %v4203
        %v4581 = vpop.f32.mrb[0].mxu0
        %v4582 = vadd.f32 %v4346, %v4581
        %v4583 = vpop.f32.mrb[0].mxu0
        %v4584 = vadd.f32 %v4350, %v4583
        %4585 = vmatprep.mubr.f32.mxu0 %v4206
        %4586 = vmatmul.mubr.f32.gmra.mrb[0].mxu0 %v4205
        %v4587 = vpop.f32.mrb[0].mxu0
        %v4588 = vadd.f32 %v4346, %v4587
        %v4589 = vpop.f32.mrb[0].mxu0
        %v4590 = vadd.f32 %v4350, %v4589
        %4591 = vmatprep.mubr.f32.mxu0 %v4208
        %4592 = vmatmul.mubr.f32.gmra.mrb[0].mxu0 %v4207
        %v4593 = vpop.f32.mrb[0].mxu0
        %v4594 = vadd.f32 %v4346, %v4593
        %v4595 = vpop.f32.mrb[0].mxu0
        %v4596 = vadd.f32 %v4350, %v4595
        %4597 = vmatprep.mubr.f32.mxu0 %v4210
        %4598 = vmatmul.mubr.f32.gmra.mrb[0].mxu0 %v4209
        %v4599 = vpop.f32.mrb[0].mxu0
        %v4600 = vadd.f32 %v4346, %v4599
        %v4601 = vpop.f32.mrb[0].mxu0
        %v4602 = vadd.f32 %v4350, %v4601
        %4603 = vmatprep.mubr.f32.mxu0 %v4212
        %4604 = vmatmul.mubr.f32.gmra.mrb[0].mxu0 %v4211
        %v4605 = vpop.f32.mrb[0].mxu0
        %v4606 = vadd.f32 %v4346, %v4605
        %v4607 = vpop.f32.mrb[0].mxu0
        %v4608 = vadd.f32 %v4350, %v4607
        %4609 = vmatprep.mubr.f32.mxu0 %v4214
        %4610 = vmatmul.mubr.f32.gmra.mrb[0].mxu0 %v4213
        %v4611 = vpop.f32.mrb[0].mxu0
        %v4612 = vadd.f32 %v4346, %v4611
        %v4613 = vpop.f32.mrb[0].mxu0
        %v4614 = vadd.f32 %v4350, %v4613
        %4615 = vmatprep.mubr.f32.mxu0 %v4216
        %4616 = vmatmul.mubr.f32.gmra.mrb[0].mxu0 %v4215
        %v4617 = vpop.f32.mrb[0].mxu0
        %v4618 = vadd.f32 %v4346, %v4617
        %v4619 = vpop.f32.mrb[0].mxu0
        %v4620 = vadd.f32 %v4350, %v4619
        %4621 = vmatprep.mubr.f32.mxu0 %v4218
        %4622 = vmatmul.mubr.f32.gmra.mrb[0].mxu0 %v4217
        %v4623 = vpop.f32.mrb[0].mxu0
        %v4624 = vadd.f32 %v4346, %v4623
        %v4625 = vpop.f32.mrb[0].mxu0
        %v4626 = vadd.f32 %v4350, %v4625
        %4627 = vmatprep.mubr.f32.mxu0 %v4220
        %4628 = vmatmul.mubr.f32.gmra.mrb[0].mxu0 %v4219
        %v4629 = vpop.f32.mrb[0].mxu0
        %v4630 = vadd.f32 %v4346, %v4629
        %v4631 = vpop.f32.mrb[0].mxu0
        %v4632 = vadd.f32 %v4350, %v4631
        %4633 = vmatprep.mubr.f32.mxu0 %v4222
        %4634 = vmatmul.mubr.f32.gmra.mrb[0].mxu0 %v4221
        %v4635 = vpop.f32.mrb[0].mxu0
        %v4636 = vadd.f32 %v4346, %v4635
        %v4637 = vpop.f32.mrb[0].mxu0
        %v4638 = vadd.f32 %v4350, %v4637
        %4639 = vmatprep.mubr.f32.mxu0 %v4224
        %4640 = vmatmul.mubr.f32.gmra.mrb[0].mxu0 %v4223
        %v4641 = vpop.f32.mrb[0].mxu0
        %v4642 = vadd.f32 %v4346, %v4641
        %v4643 = vpop.f32.mrb[0].mxu0
        %v4644 = vadd.f32 %v4350, %v4643
        %4645 = vmatprep.mubr.f32.mxu0 %v4226
        %4646 = vmatmul.mubr.f32.gmra.mrb[0].mxu0 %v4225
        %v4647 = vpop.f32.mrb[0].mxu0
        %v4648 = vadd.f32 %v4346, %v4647
        %v4649 = vpop.f32.mrb[0].mxu0
        %v4650 = vadd.f32 %v4350, %v4649
        %4651 = vmatprep.mubr.f32.mxu0 %v4228
        %4652 = vmatmul.mubr.f32.gmra.mrb[0].mxu0 %v4227
        %v4653 = vpop.f32.mrb[0].mxu0
        %v4654 = vadd.f32 %v4346, %v4653
        %v4655 = vpop.f32.mrb[0].mxu0
        %v4656 = vadd.f32 %v4350, %v4655
        %4657 = vmatprep.mubr.f32.mxu0 %v4230
        %4658 = vmatmul.mubr.f32.gmra.mrb[0].mxu0 %v4229
        %v4659 = vpop.f32.mrb[0].mxu0
        %v4660 = vadd.f32 %v4346, %v4659
        %v4661 = vpop.f32.mrb[0].mxu0
        %v4662 = vadd.f32 %v4350, %v4661
        %4663 = vmatprep.mubr.f32.mxu0 %v4232
        %4664 = vmatmul.mubr.f32.gmra.mrb[0].mxu0 %v4231
        %v4665 = vpop.f32.mrb[0].mxu0
        %v4666 = vadd.f32 %v4346, %v4665
        %v4667 = vpop.f32.mrb[0].mxu0
        %v4668 = vadd.f32 %v4350, %v4667
        %4669 = vmatprep.mubr.f32.mxu0 %v4234
        %4670 = vmatmul.mubr.f32.gmra.mrb[0].mxu0 %v4233
        %v4671 = vpop.f32.mrb[0].mxu0
        %v4672 = vadd.f32 %v4346, %v4671
        %v4673 = vpop.f32.mrb[0].mxu0
        %v4674 = vadd.f32 %v4350, %v4673
        %4675 = vmatprep.mubr.f32.mxu0 %v4236
        %4676 = vmatmul.mubr.f32.gmra.mrb[0].mxu0 %v4235
        %v4677 = vpop.f32.mrb[0].mxu0
        %v4678 = vadd.f32 %v4346, %v4677
        %v4679 = vpop.f32.mrb[0].mxu0
        %v4680 = vadd.f32 %v4350, %v4679
        %4681 = vmatprep.mubr.f32.mxu0 %v4238
        %4682 = vmatmul.mubr.f32.gmra.mrb[0].mxu0 %v4237
        %v4683 = vpop.f32.mrb[0].mxu0
        %v4684 = vadd.f32 %v4346, %v4683
        %v4685 = vpop.f32.mrb[0].mxu0
        %v4686 = vadd.f32 %v4350, %v4685
        %4687 = vmatprep.mubr.f32.mxu0 %v4240
        %4688 = vmatmul.mubr.f32.gmra.mrb[0].mxu0 %v4239
        %v4689 = vpop.f32.mrb[0].mxu0
        %v4690 = vadd.f32 %v4346, %v4689
        %v4691 = vpop.f32.mrb[0].mxu0
        %v4692 = vadd.f32 %v4350, %v4691
        %4693 = vmatprep.mubr.f32.mxu0 %v4242
        %4694 = vmatmul.mubr.f32.gmra.mrb[0].mxu0 %v4241
        %v4695 = vpop.f32.mrb[0].mxu0
        %v4696 = vadd.f32 %v4346, %v4695
        %v4697 = vpop.f32.mrb[0].mxu0
        %v4698 = vadd.f32 %v4350, %v4697
        %4699 = vmatprep.mubr.f32.mxu0 %v4244
        %4700 = vmatmul.mubr.f32.gmra.mrb[0].mxu0 %v4243
        %v4701 = vpop.f32.mrb[0].mxu0
        %v4702 = vadd.f32 %v4346, %v4701
        %v4703 = vpop.f32.mrb[0].mxu0
        %v4704 = vadd.f32 %v4350, %v4703
        %4705 = vmatprep.mubr.f32.mxu0 %v4246
        %4706 = vmatmul.mubr.f32.gmra.mrb[0].mxu0 %v4245
        %v4707 = vpop.f32.mrb[0].mxu0
        %v4708 = vadd.f32 %v4346, %v4707
        %v4709 = vpop.f32.mrb[0].mxu0
        %v4710 = vadd.f32 %v4350, %v4709
        %4711 = vmatprep.mubr.f32.mxu0 %v4248
        %4712 = vmatmul.mubr.f32.gmra.mrb[0].mxu0 %v4247
        %v4713 = vpop.f32.mrb[0].mxu0
        %v4714 = vadd.f32 %v4346, %v4713
        %v4715 = vpop.f32.mrb[0].mxu0
        %v4716 = vadd.f32 %v4350, %v4715
        %4717 = vmatprep.mubr.f32.mxu0 %v4250
        %4718 = vmatmul.mubr.f32.gmra.mrb[0].mxu0 %v4249
        %v4719 = vpop.f32.mrb[0].mxu0
        %v4720 = vadd.f32 %v4346, %v4719
        %v4721 = vpop.f32.mrb[0].mxu0
        %v4722 = vadd.f32 %v4350, %v4721
        %4723 = vmatprep.mubr.f32.mxu0 %v4252
        %4724 = vmatmul.mubr.f32.gmra.mrb[0].mxu0 %v4251
        %v4725 = vpop.f32.mrb[0].mxu0
        %v4726 = vadd.f32 %v4346, %v4725
        %v4727 = vpop.f32.mrb[0].mxu0
        %v4728 = vadd.f32 %v4350, %v4727
        %4729 = vmatprep.mubr.f32.mxu0 %v4254
        %4730 = vmatmul.mubr.f32.gmra.mrb[0].mxu0 %v4253
        %v4731 = vpop.f32.mrb[0].mxu0
        %v4732 = vadd.f32 %v4346, %v4731
        %v4733 = vpop.f32.mrb[0].mxu0
        %v4734 = vadd.f32 %v4350, %v4733
        %4735 = vmatprep.mubr.f32.mxu0 %v4256
        %4736 = vmatmul.mubr.f32.gmra.mrb[0].mxu0 %v4255
        %v4737 = vpop.f32.mrb[0].mxu0
        %v4738 = vadd.f32 %v4346, %v4737
        %v4739 = vpop.f32.mrb[0].mxu0
        %v4740 = vadd.f32 %v4350, %v4739
        %4741 = vmatprep.mubr.f32.mxu0 %v4258
        %4742 = vmatmul.mubr.f32.gmra.mrb[0].mxu0 %v4257
        %v4743 = vpop.f32.mrb[0].mxu0
        %v4744 = vadd.f32 %v4346, %v4743
        %v4745 = vpop.f32.mrb[0].mxu0
        %v4746 = vadd.f32 %v4350, %v4745
        %4747 = vmatprep.mubr.f32.mxu0 %v4260
        %4748 = vmatmul.mubr.f32.gmra.mrb[0].mxu0 %v4259
        %v4749 = vpop.f32.mrb[0].mxu0
        %v4750 = vadd.f32 %v4346, %v4749
        %v4751 = vpop.f32.mrb[0].mxu0
        %v4752 = vadd.f32 %v4350, %v4751
        %4753 = vmatprep.mubr.f32.mxu0 %v4262
        %4754 = vmatmul.mubr.f32.gmra.mrb[0].mxu0 %v4261
        %v4755 = vpop.f32.mrb[0].mxu0
        %v4756 = vadd.f32 %v4346, %v4755
        %v4757 = vpop.f32.mrb[0].mxu0
        %v4758 = vadd.f32 %v4350, %v4757
        %4759 = vmatprep.mubr.f32.mxu0 %v4264
        %4760 = vmatmul.mubr.f32.gmra.mrb[0].mxu0 %v4263
        %v4761 = vpop.f32.mrb[0].mxu0
        %v4762 = vadd.f32 %v4346, %v4761
        %v4763 = vpop.f32.mrb[0].mxu0
        %v4764 = vadd.f32 %v4350, %v4763
        %4765 = vmatprep.mubr.f32.mxu0 %v4266
        %4766 = vmatmul.mubr.f32.gmra.mrb[0].mxu0 %v4265
        %v4767 = vpop.f32.mrb[0].mxu0
        %v4768 = vadd.f32 %v4346, %v4767
        %v4769 = vpop.f32.mrb[0].mxu0
        %v4770 = vadd.f32 %v4350, %v4769
        %4771 = vmatprep.mubr.f32.mxu0 %v4268
        %4772 = vmatmul.mubr.f32.gmra.mrb[0].mxu0 %v4267
        %v4773 = vpop.f32.mrb[0].mxu0
        %v4774 = vadd.f32 %v4346, %v4773
        %v4775 = vpop.f32.mrb[0].mxu0
        %v4776 = vadd.f32 %v4350, %v4775
        %4777 = vmatprep.mubr.f32.mxu0 %v4270
        %4778 = vmatmul.mubr.f32.gmra.mrb[0].mxu0 %v4269
        %v4779 = vpop.f32.mrb[0].mxu0
        %v4780 = vadd.f32 %v4346, %v4779
        %v4781 = vpop.f32.mrb[0].mxu0
        %v4782 = vadd.f32 %v4350, %v4781
        %4783 = vmatprep.mubr.f32.mxu0 %v4272
        %4784 = vmatmul.mubr.f32.gmra.mrb[0].mxu0 %v4271
        %v4785 = vpop.f32.mrb[0].mxu0
        %v4786 = vadd.f32 %v4346, %v4785
        %v4787 = vpop.f32.mrb[0].mxu0
        %v4788 = vadd.f32 %v4350, %v4787
        %4789 = vmatprep.mubr.f32.mxu0 %v4274
        %4790 = vmatmul.mubr.f32.gmra.mrb[0].mxu0 %v4273
        %v4791 = vpop.f32.mrb[0].mxu0
        %v4792 = vadd.f32 %v4346, %v4791
        %v4793 = vpop.f32.mrb[0].mxu0
        %v4794 = vadd.f32 %v4350, %v4793
        %4795 = vmatprep.mubr.f32.mxu0 %v4276
        %4796 = vmatmul.mubr.f32.gmra.mrb[0].mxu0 %v4275
        %v4797 = vpop.f32.mrb[0].mxu0
        %v4798 = vadd.f32 %v4346, %v4797
        %v4799 = vpop.f32.mrb[0].mxu0
        %v4800 = vadd.f32 %v4350, %v4799
        %4801 = vdwg.mxu0
        %v4802 = vmax.f32 %v4420, 0.0
        %v4803 = vmax.f32 %v4422, 0.0
        %v4804 = vmax.f32 %v4426, 0.0
        %v4805 = vmax.f32 %v4428, 0.0
        %v4806 = vmax.f32 %v4432, 0.0
        %v4807 = vmax.f32 %v4434, 0.0
        %v4808 = vmax.f32 %v4438, 0.0
        %v4809 = vmax.f32 %v4440, 0.0
        %v4810 = vmax.f32 %v4444, 0.0
        %v4811 = vmax.f32 %v4446, 0.0
        %v4812 = vmax.f32 %v4450, 0.0
        %v4813 = vmax.f32 %v4452, 0.0
        %v4814 = vmax.f32 %v4456, 0.0
        %v4815 = vmax.f32 %v4458, 0.0
        %v4816 = vmax.f32 %v4462, 0.0
        %v4817 = vmax.f32 %v4464, 0.0
        %v4818 = vmax.f32 %v4468, 0.0
        %v4819 = vmax.f32 %v4470, 0.0
        %v4820 = vmax.f32 %v4474, 0.0
        %v4821 = vmax.f32 %v4476, 0.0
        %v4822 = vmax.f32 %v4480, 0.0
        %v4823 = vmax.f32 %v4482, 0.0
        %v4824 = vmax.f32 %v4486, 0.0
        %v4825 = vmax.f32 %v4488, 0.0
        %v4826 = vmax.f32 %v4492, 0.0
        %v4827 = vmax.f32 %v4494, 0.0
        %v4828 = vmax.f32 %v4498, 0.0
        %v4829 = vmax.f32 %v4500, 0.0
        %v4830 = vmax.f32 %v4504, 0.0
        %v4831 = vmax.f32 %v4506, 0.0
        %v4832 = vmax.f32 %v4510, 0.0
        %v4833 = vmax.f32 %v4512, 0.0
        %v4834 = vmax.f32 %v4516, 0.0
        %v4835 = vmax.f32 %v4518, 0.0
        %v4836 = vmax.f32 %v4522, 0.0
        %v4837 = vmax.f32 %v4524, 0.0
        %v4838 = vmax.f32 %v4528, 0.0
        %v4839 = vmax.f32 %v4530, 0.0
        %v4840 = vmax.f32 %v4534, 0.0
        %v4841 = vmax.f32 %v4536, 0.0
        %v4842 = vmax.f32 %v4540, 0.0
        %v4843 = vmax.f32 %v4542, 0.0
        %v4844 = vmax.f32 %v4546, 0.0
        %v4845 = vmax.f32 %v4548, 0.0
        %v4846 = vmax.f32 %v4552, 0.0
        %v4847 = vmax.f32 %v4554, 0.0
        %v4848 = vmax.f32 %v4558, 0.0
        %v4849 = vmax.f32 %v4560, 0.0
        %v4850 = vmax.f32 %v4564, 0.0
        %v4851 = vmax.f32 %v4566, 0.0
        %v4852 = vmax.f32 %v4570, 0.0
        %v4853 = vmax.f32 %v4572, 0.0
        %v4854 = vmax.f32 %v4576, 0.0
        %v4855 = vmax.f32 %v4578, 0.0
        %v4856 = vmax.f32 %v4582, 0.0
        %v4857 = vmax.f32 %v4584, 0.0
        %v4858 = vmax.f32 %v4588, 0.0
        %v4859 = vmax.f32 %v4590, 0.0
        %v4860 = vmax.f32 %v4594, 0.0
        %v4861 = vmax.f32 %v4596, 0.0
        %v4862 = vmax.f32 %v4600, 0.0
        %v4863 = vmax.f32 %v4602, 0.0
        %v4864 = vmax.f32 %v4606, 0.0
        %v4865 = vmax.f32 %v4608, 0.0
        %v4866 = vmax.f32 %v4612, 0.0
        %v4867 = vmax.f32 %v4614, 0.0
        %v4868 = vmax.f32 %v4618, 0.0
        %v4869 = vmax.f32 %v4620, 0.0
        %v4870 = vmax.f32 %v4624, 0.0
        %v4871 = vmax.f32 %v4626, 0.0
        %v4872 = vmax.f32 %v4630, 0.0
        %v4873 = vmax.f32 %v4632, 0.0
        %v4874 = vmax.f32 %v4636, 0.0
        %v4875 = vmax.f32 %v4638, 0.0
        %v4876 = vmax.f32 %v4642, 0.0
        %v4877 = vmax.f32 %v4644, 0.0
        %v4878 = vmax.f32 %v4648, 0.0
        %v4879 = vmax.f32 %v4650, 0.0
        %v4880 = vmax.f32 %v4654, 0.0
        %v4881 = vmax.f32 %v4656, 0.0
        %v4882 = vmax.f32 %v4660, 0.0
        %v4883 = vmax.f32 %v4662, 0.0
        %v4884 = vmax.f32 %v4666, 0.0
        %v4885 = vmax.f32 %v4668, 0.0
        %v4886 = vmax.f32 %v4672, 0.0
        %v4887 = vmax.f32 %v4674, 0.0
        %v4888 = vmax.f32 %v4678, 0.0
        %v4889 = vmax.f32 %v4680, 0.0
        %v4890 = vmax.f32 %v4684, 0.0
        %v4891 = vmax.f32 %v4686, 0.0
        %v4892 = vmax.f32 %v4690, 0.0
        %v4893 = vmax.f32 %v4692, 0.0
        %v4894 = vmax.f32 %v4696, 0.0
        %v4895 = vmax.f32 %v4698, 0.0
        %v4896 = vmax.f32 %v4702, 0.0
        %v4897 = vmax.f32 %v4704, 0.0
        %v4898 = vmax.f32 %v4708, 0.0
        %v4899 = vmax.f32 %v4710, 0.0
        %v4900 = vmax.f32 %v4714, 0.0
        %v4901 = vmax.f32 %v4716, 0.0
        %v4902 = vmax.f32 %v4720, 0.0
        %v4903 = vmax.f32 %v4722, 0.0
        %v4904 = vmax.f32 %v4726, 0.0
        %v4905 = vmax.f32 %v4728, 0.0
        %v4906 = vmax.f32 %v4732, 0.0
        %v4907 = vmax.f32 %v4734, 0.0
        %v4908 = vmax.f32 %v4738, 0.0
        %v4909 = vmax.f32 %v4740, 0.0
        %v4910 = vmax.f32 %v4744, 0.0
        %v4911 = vmax.f32 %v4746, 0.0
        %v4912 = vmax.f32 %v4750, 0.0
        %v4913 = vmax.f32 %v4752, 0.0
        %v4914 = vmax.f32 %v4756, 0.0
        %v4915 = vmax.f32 %v4758, 0.0
        %v4916 = vmax.f32 %v4762, 0.0
        %v4917 = vmax.f32 %v4764, 0.0
        %v4918 = vmax.f32 %v4768, 0.0
        %v4919 = vmax.f32 %v4770, 0.0
        %v4920 = vmax.f32 %v4774, 0.0
        %v4921 = vmax.f32 %v4776, 0.0
        %v4922 = vmax.f32 %v4780, 0.0
        %v4923 = vmax.f32 %v4782, 0.0
        %v4924 = vmax.f32 %v4786, 0.0
        %v4925 = vmax.f32 %v4788, 0.0
        %v4926 = vmax.f32 %v4792, 0.0
        %v4927 = vmax.f32 %v4794, 0.0
        %v4928 = vmax.f32 %v4798, 0.0
        %v4929 = vmax.f32 %v4800, 0.0
        %v4930 = vld [vmem:[%s11] sm:$0x3]
        %v4932 = vlaneseq
        %v4933 = vshrl.u32 %v4932, 7
        %v4934 = vsub.s32 0, %v4933
        %v4935 = vrot.slane %v4930, %v4934
        %v4936 = vlaneseq
        %v4937 = vshrl.u32 %v4936, 7
        %v4938 = vsub.s32 1, %v4937
        %v4939 = vrot.slane %v4930, %v4938
        %v4942 = vmul.f32 %v4802, %v4935
        %v4943 = vmul.f32 %v4803, %v4939
        %v4944 = vmul.f32 %v4804, %v4935
        %v4945 = vmul.f32 %v4805, %v4939
        %v4946 = vmul.f32 %v4806, %v4935
        %v4947 = vmul.f32 %v4807, %v4939
        %v4948 = vmul.f32 %v4808, %v4935
        %v4949 = vmul.f32 %v4809, %v4939
        %v4950 = vmul.f32 %v4810, %v4935
        %v4951 = vmul.f32 %v4811, %v4939
        %v4952 = vmul.f32 %v4812, %v4935
        %v4953 = vmul.f32 %v4813, %v4939
        %v4954 = vmul.f32 %v4814, %v4935
        %v4955 = vmul.f32 %v4815, %v4939
        %v4956 = vmul.f32 %v4816, %v4935
        %v4957 = vmul.f32 %v4817, %v4939
        %v4958 = vmul.f32 %v4818, %v4935
        %v4959 = vmul.f32 %v4819, %v4939
        %v4960 = vmul.f32 %v4820, %v4935
        %v4961 = vmul.f32 %v4821, %v4939
        %v4962 = vmul.f32 %v4822, %v4935
        %v4963 = vmul.f32 %v4823, %v4939
        %v4964 = vmul.f32 %v4824, %v4935
        %v4965 = vmul.f32 %v4825, %v4939
        %v4966 = vmul.f32 %v4826, %v4935
        %v4967 = vmul.f32 %v4827, %v4939
        %v4968 = vmul.f32 %v4828, %v4935
        %v4969 = vmul.f32 %v4829, %v4939
        %v4970 = vmul.f32 %v4830, %v4935
        %v4971 = vmul.f32 %v4831, %v4939
        %v4972 = vmul.f32 %v4832, %v4935
        %v4973 = vmul.f32 %v4833, %v4939
        %v4974 = vmul.f32 %v4834, %v4935
        %v4975 = vmul.f32 %v4835, %v4939
        %v4976 = vmul.f32 %v4836, %v4935
        %v4977 = vmul.f32 %v4837, %v4939
        %v4978 = vmul.f32 %v4838, %v4935
        %v4979 = vmul.f32 %v4839, %v4939
        %v4980 = vmul.f32 %v4840, %v4935
        %v4981 = vmul.f32 %v4841, %v4939
        %v4982 = vmul.f32 %v4842, %v4935
        %v4983 = vmul.f32 %v4843, %v4939
        %v4984 = vmul.f32 %v4844, %v4935
        %v4985 = vmul.f32 %v4845, %v4939
        %v4986 = vmul.f32 %v4846, %v4935
        %v4987 = vmul.f32 %v4847, %v4939
        %v4988 = vmul.f32 %v4848, %v4935
        %v4989 = vmul.f32 %v4849, %v4939
        %v4990 = vmul.f32 %v4850, %v4935
        %v4991 = vmul.f32 %v4851, %v4939
        %v4992 = vmul.f32 %v4852, %v4935
        %v4993 = vmul.f32 %v4853, %v4939
        %v4994 = vmul.f32 %v4854, %v4935
        %v4995 = vmul.f32 %v4855, %v4939
        %v4996 = vmul.f32 %v4856, %v4935
        %v4997 = vmul.f32 %v4857, %v4939
        %v4998 = vmul.f32 %v4858, %v4935
        %v4999 = vmul.f32 %v4859, %v4939
        %v5000 = vmul.f32 %v4860, %v4935
        %v5001 = vmul.f32 %v4861, %v4939
        %v5002 = vmul.f32 %v4862, %v4935
        %v5003 = vmul.f32 %v4863, %v4939
        %v5004 = vmul.f32 %v4864, %v4935
        %v5005 = vmul.f32 %v4865, %v4939
        %v5006 = vmul.f32 %v4866, %v4935
        %v5007 = vmul.f32 %v4867, %v4939
        %v5008 = vmul.f32 %v4868, %v4935
        %v5009 = vmul.f32 %v4869, %v4939
        %v5010 = vmul.f32 %v4870, %v4935
        %v5011 = vmul.f32 %v4871, %v4939
        %v5012 = vmul.f32 %v4872, %v4935
        %v5013 = vmul.f32 %v4873, %v4939
        %v5014 = vmul.f32 %v4874, %v4935
        %v5015 = vmul.f32 %v4875, %v4939
        %v5016 = vmul.f32 %v4876, %v4935
        %v5017 = vmul.f32 %v4877, %v4939
        %v5018 = vmul.f32 %v4878, %v4935
        %v5019 = vmul.f32 %v4879, %v4939
        %v5020 = vmul.f32 %v4880, %v4935
        %v5021 = vmul.f32 %v4881, %v4939
        %v5022 = vmul.f32 %v4882, %v4935
        %v5023 = vmul.f32 %v4883, %v4939
        %v5024 = vmul.f32 %v4884, %v4935
        %v5025 = vmul.f32 %v4885, %v4939
        %v5026 = vmul.f32 %v4886, %v4935
        %v5027 = vmul.f32 %v4887, %v4939
        %v5028 = vmul.f32 %v4888, %v4935
        %v5029 = vmul.f32 %v4889, %v4939
        %v5030 = vmul.f32 %v4890, %v4935
        %v5031 = vmul.f32 %v4891, %v4939
        %v5032 = vmul.f32 %v4892, %v4935
        %v5033 = vmul.f32 %v4893, %v4939
        %v5034 = vmul.f32 %v4894, %v4935
        %v5035 = vmul.f32 %v4895, %v4939
        %v5036 = vmul.f32 %v4896, %v4935
        %v5037 = vmul.f32 %v4897, %v4939
        %v5038 = vmul.f32 %v4898, %v4935
        %v5039 = vmul.f32 %v4899, %v4939
        %v5040 = vmul.f32 %v4900, %v4935
        %v5041 = vmul.f32 %v4901, %v4939
        %v5042 = vmul.f32 %v4902, %v4935
        %v5043 = vmul.f32 %v4903, %v4939
        %v5044 = vmul.f32 %v4904, %v4935
        %v5045 = vmul.f32 %v4905, %v4939
        %v5046 = vmul.f32 %v4906, %v4935
        %v5047 = vmul.f32 %v4907, %v4939
        %v5048 = vmul.f32 %v4908, %v4935
        %v5049 = vmul.f32 %v4909, %v4939
        %v5050 = vmul.f32 %v4910, %v4935
        %v5051 = vmul.f32 %v4911, %v4939
        %v5052 = vmul.f32 %v4912, %v4935
        %v5053 = vmul.f32 %v4913, %v4939
        %v5054 = vmul.f32 %v4914, %v4935
        %v5055 = vmul.f32 %v4915, %v4939
        %v5056 = vmul.f32 %v4916, %v4935
        %v5057 = vmul.f32 %v4917, %v4939
        %v5058 = vmul.f32 %v4918, %v4935
        %v5059 = vmul.f32 %v4919, %v4939
        %v5060 = vmul.f32 %v4920, %v4935
        %v5061 = vmul.f32 %v4921, %v4939
        %v5062 = vmul.f32 %v4922, %v4935
        %v5063 = vmul.f32 %v4923, %v4939
        %v5064 = vmul.f32 %v4924, %v4935
        %v5065 = vmul.f32 %v4925, %v4939
        %v5066 = vmul.f32 %v4926, %v4935
        %v5067 = vmul.f32 %v4927, %v4939
        %v5068 = vmul.f32 %v4928, %v4935
        %v5069 = vmul.f32 %v4929, %v4939
        %v5070 = vadd.f32 %v4942, %v4943
        %5071 = vadd.xlane.f32.xlu0 %v5070
        %v5072 = vpop.xlane.xlu0 %5071
        %v5073 = vadd.f32 %v4944, %v4945
        %5074 = vadd.xlane.f32.xlu0 %v5073
        %v5075 = vpop.xlane.xlu0 %5074
        %v5076 = vadd.f32 %v4946, %v4947
        %5077 = vadd.xlane.f32.xlu0 %v5076
        %v5078 = vpop.xlane.xlu0 %5077
        %v5079 = vadd.f32 %v4948, %v4949
        %5080 = vadd.xlane.f32.xlu0 %v5079
        %v5081 = vpop.xlane.xlu0 %5080
        %v5082 = vadd.f32 %v4950, %v4951
        %5083 = vadd.xlane.f32.xlu0 %v5082
        %v5084 = vpop.xlane.xlu0 %5083
        %v5085 = vadd.f32 %v4952, %v4953
        %5086 = vadd.xlane.f32.xlu0 %v5085
        %v5087 = vpop.xlane.xlu0 %5086
        %v5088 = vadd.f32 %v4954, %v4955
        %5089 = vadd.xlane.f32.xlu0 %v5088
        %v5090 = vpop.xlane.xlu0 %5089
        %v5091 = vadd.f32 %v4956, %v4957
        %5092 = vadd.xlane.f32.xlu0 %v5091
        %v5093 = vpop.xlane.xlu0 %5092
        %v5094 = vadd.f32 %v4958, %v4959
        %5095 = vadd.xlane.f32.xlu0 %v5094
        %v5096 = vpop.xlane.xlu0 %5095
        %v5097 = vadd.f32 %v4960, %v4961
        %5098 = vadd.xlane.f32.xlu0 %v5097
        %v5099 = vpop.xlane.xlu0 %5098
        %v5100 = vadd.f32 %v4962, %v4963
        %5101 = vadd.xlane.f32.xlu0 %v5100
        %v5102 = vpop.xlane.xlu0 %5101
        %v5103 = vadd.f32 %v4964, %v4965
        %5104 = vadd.xlane.f32.xlu0 %v5103
        %v5105 = vpop.xlane.xlu0 %5104
        %v5106 = vadd.f32 %v4966, %v4967
        %5107 = vadd.xlane.f32.xlu0 %v5106
        %v5108 = vpop.xlane.xlu0 %5107
        %v5109 = vadd.f32 %v4968, %v4969
        %5110 = vadd.xlane.f32.xlu0 %v5109
        %v5111 = vpop.xlane.xlu0 %5110
        %v5112 = vadd.f32 %v4970, %v4971
        %5113 = vadd.xlane.f32.xlu0 %v5112
        %v5114 = vpop.xlane.xlu0 %5113
        %v5115 = vadd.f32 %v4972, %v4973
        %5116 = vadd.xlane.f32.xlu0 %v5115
        %v5117 = vpop.xlane.xlu0 %5116
        %v5118 = vadd.f32 %v4974, %v4975
        %5119 = vadd.xlane.f32.xlu0 %v5118
        %v5120 = vpop.xlane.xlu0 %5119
        %v5121 = vadd.f32 %v4976, %v4977
        %5122 = vadd.xlane.f32.xlu0 %v5121
        %v5123 = vpop.xlane.xlu0 %5122
        %v5124 = vadd.f32 %v4978, %v4979
        %5125 = vadd.xlane.f32.xlu0 %v5124
        %v5126 = vpop.xlane.xlu0 %5125
        %v5127 = vadd.f32 %v4980, %v4981
        %5128 = vadd.xlane.f32.xlu0 %v5127
        %v5129 = vpop.xlane.xlu0 %5128
        %v5130 = vadd.f32 %v4982, %v4983
        %5131 = vadd.xlane.f32.xlu0 %v5130
        %v5132 = vpop.xlane.xlu0 %5131
        %v5133 = vadd.f32 %v4984, %v4985
        %5134 = vadd.xlane.f32.xlu0 %v5133
        %v5135 = vpop.xlane.xlu0 %5134
        %v5136 = vadd.f32 %v4986, %v4987
        %5137 = vadd.xlane.f32.xlu0 %v5136
        %v5138 = vpop.xlane.xlu0 %5137
        %v5139 = vadd.f32 %v4988, %v4989
        %5140 = vadd.xlane.f32.xlu0 %v5139
        %v5141 = vpop.xlane.xlu0 %5140
        %v5142 = vadd.f32 %v4990, %v4991
        %5143 = vadd.xlane.f32.xlu0 %v5142
        %v5144 = vpop.xlane.xlu0 %5143
        %v5145 = vadd.f32 %v4992, %v4993
        %5146 = vadd.xlane.f32.xlu0 %v5145
        %v5147 = vpop.xlane.xlu0 %5146
        %v5148 = vadd.f32 %v4994, %v4995
        %5149 = vadd.xlane.f32.xlu0 %v5148
        %v5150 = vpop.xlane.xlu0 %5149
        %v5151 = vadd.f32 %v4996, %v4997
        %5152 = vadd.xlane.f32.xlu0 %v5151
        %v5153 = vpop.xlane.xlu0 %5152
        %v5154 = vadd.f32 %v4998, %v4999
        %5155 = vadd.xlane.f32.xlu0 %v5154
        %v5156 = vpop.xlane.xlu0 %5155
        %v5157 = vadd.f32 %v5000, %v5001
        %5158 = vadd.xlane.f32.xlu0 %v5157
        %v5159 = vpop.xlane.xlu0 %5158
        %v5160 = vadd.f32 %v5002, %v5003
        %5161 = vadd.xlane.f32.xlu0 %v5160
        %v5162 = vpop.xlane.xlu0 %5161
        %v5163 = vadd.f32 %v5004, %v5005
        %5164 = vadd.xlane.f32.xlu0 %v5163
        %v5165 = vpop.xlane.xlu0 %5164
        %v5166 = vadd.f32 %v5006, %v5007
        %5167 = vadd.xlane.f32.xlu0 %v5166
        %v5168 = vpop.xlane.xlu0 %5167
        %v5169 = vadd.f32 %v5008, %v5009
        %5170 = vadd.xlane.f32.xlu0 %v5169
        %v5171 = vpop.xlane.xlu0 %5170
        %v5172 = vadd.f32 %v5010, %v5011
        %5173 = vadd.xlane.f32.xlu0 %v5172
        %v5174 = vpop.xlane.xlu0 %5173
        %v5175 = vadd.f32 %v5012, %v5013
        %5176 = vadd.xlane.f32.xlu0 %v5175
        %v5177 = vpop.xlane.xlu0 %5176
        %v5178 = vadd.f32 %v5014, %v5015
        %5179 = vadd.xlane.f32.xlu0 %v5178
        %v5180 = vpop.xlane.xlu0 %5179
        %v5181 = vadd.f32 %v5016, %v5017
        %5182 = vadd.xlane.f32.xlu0 %v5181
        %v5183 = vpop.xlane.xlu0 %5182
        %v5184 = vadd.f32 %v5018, %v5019
        %5185 = vadd.xlane.f32.xlu0 %v5184
        %v5186 = vpop.xlane.xlu0 %5185
        %v5187 = vadd.f32 %v5020, %v5021
        %5188 = vadd.xlane.f32.xlu0 %v5187
        %v5189 = vpop.xlane.xlu0 %5188
        %v5190 = vadd.f32 %v5022, %v5023
        %5191 = vadd.xlane.f32.xlu0 %v5190
        %v5192 = vpop.xlane.xlu0 %5191
        %v5193 = vadd.f32 %v5024, %v5025
        %5194 = vadd.xlane.f32.xlu0 %v5193
        %v5195 = vpop.xlane.xlu0 %5194
        %v5196 = vadd.f32 %v5026, %v5027
        %5197 = vadd.xlane.f32.xlu0 %v5196
        %v5198 = vpop.xlane.xlu0 %5197
        %v5199 = vadd.f32 %v5028, %v5029
        %5200 = vadd.xlane.f32.xlu0 %v5199
        %v5201 = vpop.xlane.xlu0 %5200
        %v5202 = vadd.f32 %v5030, %v5031
        %5203 = vadd.xlane.f32.xlu0 %v5202
        %v5204 = vpop.xlane.xlu0 %5203
        %v5205 = vadd.f32 %v5032, %v5033
        %5206 = vadd.xlane.f32.xlu0 %v5205
        %v5207 = vpop.xlane.xlu0 %5206
        %v5208 = vadd.f32 %v5034, %v5035
        %5209 = vadd.xlane.f32.xlu0 %v5208
        %v5210 = vpop.xlane.xlu0 %5209
        %v5211 = vadd.f32 %v5036, %v5037
        %5212 = vadd.xlane.f32.xlu0 %v5211
        %v5213 = vpop.xlane.xlu0 %5212
        %v5214 = vadd.f32 %v5038, %v5039
        %5215 = vadd.xlane.f32.xlu0 %v5214
        %v5216 = vpop.xlane.xlu0 %5215
        %v5217 = vadd.f32 %v5040, %v5041
        %5218 = vadd.xlane.f32.xlu0 %v5217
        %v5219 = vpop.xlane.xlu0 %5218
        %v5220 = vadd.f32 %v5042, %v5043
        %5221 = vadd.xlane.f32.xlu0 %v5220
        %v5222 = vpop.xlane.xlu0 %5221
        %v5223 = vadd.f32 %v5044, %v5045
        %5224 = vadd.xlane.f32.xlu0 %v5223
        %v5225 = vpop.xlane.xlu0 %5224
        %v5226 = vadd.f32 %v5046, %v5047
        %5227 = vadd.xlane.f32.xlu0 %v5226
        %v5228 = vpop.xlane.xlu0 %5227
        %v5229 = vadd.f32 %v5048, %v5049
        %5230 = vadd.xlane.f32.xlu0 %v5229
        %v5231 = vpop.xlane.xlu0 %5230
        %v5232 = vadd.f32 %v5050, %v5051
        %5233 = vadd.xlane.f32.xlu0 %v5232
        %v5234 = vpop.xlane.xlu0 %5233
        %v5235 = vadd.f32 %v5052, %v5053
        %5236 = vadd.xlane.f32.xlu0 %v5235
        %v5237 = vpop.xlane.xlu0 %5236
        %v5238 = vadd.f32 %v5054, %v5055
        %5239 = vadd.xlane.f32.xlu0 %v5238
        %v5240 = vpop.xlane.xlu0 %5239
        %v5241 = vadd.f32 %v5056, %v5057
        %5242 = vadd.xlane.f32.xlu0 %v5241
        %v5243 = vpop.xlane.xlu0 %5242
        %v5244 = vadd.f32 %v5058, %v5059
        %5245 = vadd.xlane.f32.xlu0 %v5244
        %v5246 = vpop.xlane.xlu0 %5245
        %v5247 = vadd.f32 %v5060, %v5061
        %5248 = vadd.xlane.f32.xlu0 %v5247
        %v5249 = vpop.xlane.xlu0 %5248
        %v5250 = vadd.f32 %v5062, %v5063
        %5251 = vadd.xlane.f32.xlu0 %v5250
        %v5252 = vpop.xlane.xlu0 %5251
        %v5253 = vadd.f32 %v5064, %v5065
        %5254 = vadd.xlane.f32.xlu0 %v5253
        %v5255 = vpop.xlane.xlu0 %5254
        %v5256 = vadd.f32 %v5066, %v5067
        %5257 = vadd.xlane.f32.xlu0 %v5256
        %v5258 = vpop.xlane.xlu0 %5257
        %v5259 = vadd.f32 %v5068, %v5069
        %5260 = vadd.xlane.f32.xlu0 %v5259
        %v5261 = vpop.xlane.xlu0 %5260
        %v5262 = vld [vmem:[#allocation2] sm:$0x1]
        %v5264 = vlaneseq
        %v5265 = vshrl.u32 %v5264, 7
        %v5266 = vsub.s32 0, %v5265
        %v5267 = vrot.slane %v5262, %v5266
        %v5269 = vadd.f32 %v5072, %v5267
        %v5270 = vadd.f32 %v5075, %v5267
        %v5271 = vadd.f32 %v5078, %v5267
        %v5272 = vadd.f32 %v5081, %v5267
        %v5273 = vadd.f32 %v5084, %v5267
        %v5274 = vadd.f32 %v5087, %v5267
        %v5275 = vadd.f32 %v5090, %v5267
        %v5276 = vadd.f32 %v5093, %v5267
        %v5277 = vadd.f32 %v5096, %v5267
        %v5278 = vadd.f32 %v5099, %v5267
        %v5279 = vadd.f32 %v5102, %v5267
        %v5280 = vadd.f32 %v5105, %v5267
        %v5281 = vadd.f32 %v5108, %v5267
        %v5282 = vadd.f32 %v5111, %v5267
        %v5283 = vadd.f32 %v5114, %v5267
        %v5284 = vadd.f32 %v5117, %v5267
        %v5285 = vadd.f32 %v5120, %v5267
        %v5286 = vadd.f32 %v5123, %v5267
        %v5287 = vadd.f32 %v5126, %v5267
        %v5288 = vadd.f32 %v5129, %v5267
        %v5289 = vadd.f32 %v5132, %v5267
        %v5290 = vadd.f32 %v5135, %v5267
        %v5291 = vadd.f32 %v5138, %v5267
        %v5292 = vadd.f32 %v5141, %v5267
        %v5293 = vadd.f32 %v5144, %v5267
        %v5294 = vadd.f32 %v5147, %v5267
        %v5295 = vadd.f32 %v5150, %v5267
        %v5296 = vadd.f32 %v5153, %v5267
        %v5297 = vadd.f32 %v5156, %v5267
        %v5298 = vadd.f32 %v5159, %v5267
        %v5299 = vadd.f32 %v5162, %v5267
        %v5300 = vadd.f32 %v5165, %v5267
        %v5301 = vadd.f32 %v5168, %v5267
        %v5302 = vadd.f32 %v5171, %v5267
        %v5303 = vadd.f32 %v5174, %v5267
        %v5304 = vadd.f32 %v5177, %v5267
        %v5305 = vadd.f32 %v5180, %v5267
        %v5306 = vadd.f32 %v5183, %v5267
        %v5307 = vadd.f32 %v5186, %v5267
        %v5308 = vadd.f32 %v5189, %v5267
        %v5309 = vadd.f32 %v5192, %v5267
        %v5310 = vadd.f32 %v5195, %v5267
        %v5311 = vadd.f32 %v5198, %v5267
        %v5312 = vadd.f32 %v5201, %v5267
        %v5313 = vadd.f32 %v5204, %v5267
        %v5314 = vadd.f32 %v5207, %v5267
        %v5315 = vadd.f32 %v5210, %v5267
        %v5316 = vadd.f32 %v5213, %v5267
        %v5317 = vadd.f32 %v5216, %v5267
        %v5318 = vadd.f32 %v5219, %v5267
        %v5319 = vadd.f32 %v5222, %v5267
        %v5320 = vadd.f32 %v5225, %v5267
        %v5321 = vadd.f32 %v5228, %v5267
        %v5322 = vadd.f32 %v5231, %v5267
        %v5323 = vadd.f32 %v5234, %v5267
        %v5324 = vadd.f32 %v5237, %v5267
        %v5325 = vadd.f32 %v5240, %v5267
        %v5326 = vadd.f32 %v5243, %v5267
        %v5327 = vadd.f32 %v5246, %v5267
        %v5328 = vadd.f32 %v5249, %v5267
        %v5329 = vadd.f32 %v5252, %v5267
        %v5330 = vadd.f32 %v5255, %v5267
        %v5331 = vadd.f32 %v5258, %v5267
        %v5332 = vadd.f32 %v5261, %v5267
        %v5333 = vtanh.pop %v5269
        %v5334 = vtanh.pop %v5270
        %v5335 = vtanh.pop %v5271
        %v5336 = vtanh.pop %v5272
        %v5337 = vtanh.pop %v5273
        %v5338 = vtanh.pop %v5274
        %v5339 = vtanh.pop %v5275
        %v5340 = vtanh.pop %v5276
        %v5341 = vtanh.pop %v5277
        %v5342 = vtanh.pop %v5278
        %v5343 = vtanh.pop %v5279
        %v5344 = vtanh.pop %v5280
        %v5345 = vtanh.pop %v5281
        %v5346 = vtanh.pop %v5282
        %v5347 = vtanh.pop %v5283
        %v5348 = vtanh.pop %v5284
        %v5349 = vtanh.pop %v5285
        %v5350 = vtanh.pop %v5286
        %v5351 = vtanh.pop %v5287
        %v5352 = vtanh.pop %v5288
        %v5353 = vtanh.pop %v5289
        %v5354 = vtanh.pop %v5290
        %v5355 = vtanh.pop %v5291
        %v5356 = vtanh.pop %v5292
        %v5357 = vtanh.pop %v5293
        %v5358 = vtanh.pop %v5294
        %v5359 = vtanh.pop %v5295
        %v5360 = vtanh.pop %v5296
        %v5361 = vtanh.pop %v5297
        %v5362 = vtanh.pop %v5298
        %v5363 = vtanh.pop %v5299
        %v5364 = vtanh.pop %v5300
        %v5365 = vtanh.pop %v5301
        %v5366 = vtanh.pop %v5302
        %v5367 = vtanh.pop %v5303
        %v5368 = vtanh.pop %v5304
        %v5369 = vtanh.pop %v5305
        %v5370 = vtanh.pop %v5306
        %v5371 = vtanh.pop %v5307
        %v5372 = vtanh.pop %v5308
        %v5373 = vtanh.pop %v5309
        %v5374 = vtanh.pop %v5310
        %v5375 = vtanh.pop %v5311
        %v5376 = vtanh.pop %v5312
        %v5377 = vtanh.pop %v5313
        %v5378 = vtanh.pop %v5314
        %v5379 = vtanh.pop %v5315
        %v5380 = vtanh.pop %v5316
        %v5381 = vtanh.pop %v5317
        %v5382 = vtanh.pop %v5318
        %v5383 = vtanh.pop %v5319
        %v5384 = vtanh.pop %v5320
        %v5385 = vtanh.pop %v5321
        %v5386 = vtanh.pop %v5322
        %v5387 = vtanh.pop %v5323
        %v5388 = vtanh.pop %v5324
        %v5389 = vtanh.pop %v5325
        %v5390 = vtanh.pop %v5326
        %v5391 = vtanh.pop %v5327
        %v5392 = vtanh.pop %v5328
        %v5393 = vtanh.pop %v5329
        %v5394 = vtanh.pop %v5330
        %v5395 = vtanh.pop %v5331
        %v5396 = vtanh.pop %v5332
        %vm5397 = vcmask 7168
        %5398 = vst.msk [vmem:[%s474] sm:$0xff] %vm5397, %v5333
        %5399 = vst.msk [vmem:[%s474 + $0x8] sm:$0xff] %vm5397, %v5334
        %5400 = vst.msk [vmem:[%s474 + $0x10] sm:$0xff] %vm5397, %v5335
        %5401 = vst.msk [vmem:[%s474 + $0x18] sm:$0xff] %vm5397, %v5336
        %5402 = vst.msk [vmem:[%s474 + $0x20] sm:$0xff] %vm5397, %v5337
        %5403 = vst.msk [vmem:[%s474 + $0x28] sm:$0xff] %vm5397, %v5338
        %5404 = vst.msk [vmem:[%s474 + $0x30] sm:$0xff] %vm5397, %v5339
        %5405 = vst.msk [vmem:[%s474 + $0x38] sm:$0xff] %vm5397, %v5340
        %5406 = vst.msk [vmem:[%s474 + $0x40] sm:$0xff] %vm5397, %v5341
        %5407 = vst.msk [vmem:[%s474 + $0x48] sm:$0xff] %vm5397, %v5342
        %5408 = vst.msk [vmem:[%s474 + $0x50] sm:$0xff] %vm5397, %v5343
        %5409 = vst.msk [vmem:[%s474 + $0x58] sm:$0xff] %vm5397, %v5344
        %5410 = vst.msk [vmem:[%s474 + $0x60] sm:$0xff] %vm5397, %v5345
        %5411 = vst.msk [vmem:[%s474 + $0x68] sm:$0xff] %vm5397, %v5346
        %5412 = vst.msk [vmem:[%s474 + $0x70] sm:$0xff] %vm5397, %v5347
        %5413 = vst.msk [vmem:[%s474 + $0x78] sm:$0xff] %vm5397, %v5348
        %5414 = vst.msk [vmem:[%s474 + $0x80] sm:$0xff] %vm5397, %v5349
        %5415 = vst.msk [vmem:[%s474 + $0x88] sm:$0xff] %vm5397, %v5350
        %5416 = vst.msk [vmem:[%s474 + $0x90] sm:$0xff] %vm5397, %v5351
        %5417 = vst.msk [vmem:[%s474 + $0x98] sm:$0xff] %vm5397, %v5352
        %5418 = vst.msk [vmem:[%s474 + $0xa0] sm:$0xff] %vm5397, %v5353
        %5419 = vst.msk [vmem:[%s474 + $0xa8] sm:$0xff] %vm5397, %v5354
        %5420 = vst.msk [vmem:[%s474 + $0xb0] sm:$0xff] %vm5397, %v5355
        %5421 = vst.msk [vmem:[%s474 + $0xb8] sm:$0xff] %vm5397, %v5356
        %5422 = vst.msk [vmem:[%s474 + $0xc0] sm:$0xff] %vm5397, %v5357
        %5423 = vst.msk [vmem:[%s474 + $0xc8] sm:$0xff] %vm5397, %v5358
        %5424 = vst.msk [vmem:[%s474 + $0xd0] sm:$0xff] %vm5397, %v5359
        %5425 = vst.msk [vmem:[%s474 + $0xd8] sm:$0xff] %vm5397, %v5360
        %5426 = vst.msk [vmem:[%s474 + $0xe0] sm:$0xff] %vm5397, %v5361
        %5427 = vst.msk [vmem:[%s474 + $0xe8] sm:$0xff] %vm5397, %v5362
        %5428 = vst.msk [vmem:[%s474 + $0xf0] sm:$0xff] %vm5397, %v5363
        %5429 = vst.msk [vmem:[%s474 + $0xf8] sm:$0xff] %vm5397, %v5364
        %5430 = vst.msk [vmem:[%s474 + $0x100] sm:$0xff] %vm5397, %v5365
        %5431 = vst.msk [vmem:[%s474 + $0x108] sm:$0xff] %vm5397, %v5366
        %5432 = vst.msk [vmem:[%s474 + $0x110] sm:$0xff] %vm5397, %v5367
        %5433 = vst.msk [vmem:[%s474 + $0x118] sm:$0xff] %vm5397, %v5368
        %5434 = vst.msk [vmem:[%s474 + $0x120] sm:$0xff] %vm5397, %v5369
        %5435 = vst.msk [vmem:[%s474 + $0x128] sm:$0xff] %vm5397, %v5370
        %5436 = vst.msk [vmem:[%s474 + $0x130] sm:$0xff] %vm5397, %v5371
        %5437 = vst.msk [vmem:[%s474 + $0x138] sm:$0xff] %vm5397, %v5372
        %5438 = vst.msk [vmem:[%s474 + $0x140] sm:$0xff] %vm5397, %v5373
        %5439 = vst.msk [vmem:[%s474 + $0x148] sm:$0xff] %vm5397, %v5374
        %5440 = vst.msk [vmem:[%s474 + $0x150] sm:$0xff] %vm5397, %v5375
        %5441 = vst.msk [vmem:[%s474 + $0x158] sm:$0xff] %vm5397, %v5376
        %5442 = vst.msk [vmem:[%s474 + $0x160] sm:$0xff] %vm5397, %v5377
        %5443 = vst.msk [vmem:[%s474 + $0x168] sm:$0xff] %vm5397, %v5378
        %5444 = vst.msk [vmem:[%s474 + $0x170] sm:$0xff] %vm5397, %v5379
        %5445 = vst.msk [vmem:[%s474 + $0x178] sm:$0xff] %vm5397, %v5380
        %5446 = vst.msk [vmem:[%s474 + $0x180] sm:$0xff] %vm5397, %v5381
        %5447 = vst.msk [vmem:[%s474 + $0x188] sm:$0xff] %vm5397, %v5382
        %5448 = vst.msk [vmem:[%s474 + $0x190] sm:$0xff] %vm5397, %v5383
        %5449 = vst.msk [vmem:[%s474 + $0x198] sm:$0xff] %vm5397, %v5384
        %5450 = vst.msk [vmem:[%s474 + $0x1a0] sm:$0xff] %vm5397, %v5385
        %5451 = vst.msk [vmem:[%s474 + $0x1a8] sm:$0xff] %vm5397, %v5386
        %5452 = vst.msk [vmem:[%s474 + $0x1b0] sm:$0xff] %vm5397, %v5387
        %5453 = vst.msk [vmem:[%s474 + $0x1b8] sm:$0xff] %vm5397, %v5388
        %5454 = vst.msk [vmem:[%s474 + $0x1c0] sm:$0xff] %vm5397, %v5389
        %5455 = vst.msk [vmem:[%s474 + $0x1c8] sm:$0xff] %vm5397, %v5390
        %5456 = vst.msk [vmem:[%s474 + $0x1d0] sm:$0xff] %vm5397, %v5391
        %5457 = vst.msk [vmem:[%s474 + $0x1d8] sm:$0xff] %vm5397, %v5392
        %5458 = vst.msk [vmem:[%s474 + $0x1e0] sm:$0xff] %vm5397, %v5393
        %5459 = vst.msk [vmem:[%s474 + $0x1e8] sm:$0xff] %vm5397, %v5394
        %5460 = vst.msk [vmem:[%s474 + $0x1f0] sm:$0xff] %vm5397, %v5395
        %5461 = vst.msk [vmem:[%s474 + $0x1f8] sm:$0xff] %vm5397, %v5396
        %s5462 = smul.u32 64, %s28
        %p5463 = scmp.lt.s32.totalorder %s5462, 127
        %s5464 = scalar_select %p5463, %s5462, 127
        %s5465 = smul.addr %s5464, 8
        %s5466 = scalar_lea.vmem %s13, %s5465
        // Predicated region
        $region81: #{tpu_custom_call.1} parent=71 // pred_check
          %p5467 = pneg %p324
        $region82: #{tpu_custom_call.1} parent=71 // pred_check_branch
          %5469 = sbr.rel (%p5467) target = $region84
        $region83: #{tpu_custom_call.1} parent=71 // pred_region
          %s5470 = smul.u32 64, %s28
        $region84: #{tpu_custom_call.1} parent=71 // pred_fallthru
          _
      $region72: #{tpu_custom_call.1} parent=5 // pred_fallthru
        _
      %p5471 = scmp.le.s32.totalorder 2, %s23
      // Predicated region
      $region85: #{tpu_custom_call.1} parent=5 // pred_check
        %p5472 = pneg %p5471
      $region86: #{tpu_custom_call.1} parent=5 // pred_check_branch
        %5474 = sbr.rel (%p5472) target = $region88
      $region87: #{tpu_custom_call.1} parent=5 // pred_region
        %s5475 = ssub.s32 %s23, 2
        // Predicated region
        $region89: #{tpu_custom_call.1} parent=87 // pred_check
          %p5476 = pneg %p330
        $region90: #{tpu_custom_call.1} parent=87 // pred_check_branch
          %5478 = sbr.rel (%p5476) target = $region92
        $region91: #{tpu_custom_call.1} parent=87 // pred_region
          %s5479 = smul.u32 64, %s29
          %p5480 = scmp.lt.s32.totalorder %s5479, 127
          %s5481 = scalar_select %p5480, %s5479, 127
          %s5482 = smul.addr %s5481, 8
          %s5483 = scalar_lea.vmem %s13, %s5482
        $region92: #{tpu_custom_call.1} parent=87 // pred_fallthru
          _
      $region88: #{tpu_custom_call.1} parent=5 // pred_fallthru
        _
    $region6: #{tpu_custom_call.1} parent=1 // loop_footer
      %s27 = sadd.s32 1, %s23
    $region7: #{tpu_custom_call.1} parent=1 // loop_footer_branch
      %22 = sbr.rel target = $region3
    $region8: #{tpu_custom_call.1} parent=1 // loop_exit
      _
    %5484 = vsyncpa [#allocation4], 1
    %s5485 = scalar_lea.sflag [#allocation4], 1
    %5486 = vsyncpa %s5485, 1
    %5487 = vsyncpa [#allocation6], 1

</llo_original>
